<compile_context>
chip_gen: v6e
topology: v6e:2x2x1
jax: 0.10.0
libtpu: 0.0.40
codegen_flags: <defaults>
</compile_context>

<pallas_src>
import functools
import math

import jax
import jax.numpy as jnp
from jax import lax
from jax.experimental import pallas as pl
from jax.experimental.pallas import tpu as pltpu


def _round_up(x: int, m: int) -> int:
    return ((x + m - 1) // m) * m


def _sagnn_kernel(n_real, num_heads,
                  x_ref, kt_ref, v_ref,
                  ws_ref, bs_ref, wq_ref, bq_ref, wo_ref, bo_ref,
                  wc_ref, bc_ref,
                  diff2_ref, sig_ref):
    f32 = jnp.float32
    tq, d = x_ref.shape
    n_kv = v_ref.shape[0]
    dh = d // num_heads
    scale = 1.0 / math.sqrt(dh)

    x_t = x_ref[...]                                               # (TQ, D) bf16

    # Static embedding: tanh(X @ Ws + bs).  bf16 MXU, f32 accumulate + tanh.
    s_emb = jnp.tanh(jnp.dot(x_t, ws_ref[...], preferred_element_type=f32)
                     + bs_ref[...])                                # (TQ, D) f32

    # Dynamic embedding: multi-head self-attention.  Q is projected per tile;
    # K^T / V were projected in the wrapper and sit whole in VMEM.
    q = (jnp.dot(x_t, wq_ref[...], preferred_element_type=f32)
         + bq_ref[...]).astype(x_t.dtype)                          # (TQ, D) bf16

    # Key-padding bias, broadcast ONCE (hoisted out of the head loop).
    key_ids = lax.broadcasted_iota(jnp.int32, (tq, n_kv), 1)
    key_bias = jnp.where(key_ids < n_real, 0.0, -1e30).astype(f32)  # (TQ, Nk)

    heads = []
    for h in range(num_heads):
        lo = h * dh
        q_h = q[:, lo:lo + dh]                     # (TQ, dh) bf16
        kt_h = kt_ref[lo:lo + dh, :]               # (dh, Nk) bf16 (sublane slice)
        v_h = v_ref[:, lo:lo + dh]                 # (Nk, dh) bf16
        s = (jnp.dot(q_h, kt_h, preferred_element_type=f32) * scale
             + key_bias)                                           # (TQ, Nk) f32
        m = jnp.max(s, axis=-1, keepdims=True)
        p = jnp.exp(s - m)
        inv = pl.reciprocal(jnp.sum(p, axis=-1, keepdims=True), approx=True)
        attn = (p * inv).astype(v_h.dtype)                         # (TQ, Nk) bf16
        heads.append(jnp.dot(attn, v_h, preferred_element_type=f32))
    # Lane-concat the per-head outputs -> one full-width output projection.
    o_cat = jnp.concatenate(heads, axis=-1).astype(x_t.dtype)      # (TQ, D) bf16
    d_emb = (jnp.dot(o_cat, wo_ref[...], preferred_element_type=f32)
             + bo_ref[...])                                        # (TQ, D) f32

    diff = s_emb - d_emb
    diff2 = diff * diff                                            # (TQ, D) f32
    diff2_ref[...] = diff2.astype(diff2_ref.dtype)

    # cls + sigmoid; zero out padded query rows so the wrapper mean is exact.
    logit = (jnp.dot(diff2.astype(x_t.dtype), wc_ref[...],
                     preferred_element_type=f32) + bc_ref[...])    # (TQ, 1)
    sig = jax.nn.sigmoid(logit)
    row_ids = (lax.broadcasted_iota(jnp.int32, (tq, 1), 0)
               + pl.program_id(0) * tq)
    sig_ref[...] = jnp.where(row_ids < n_real, sig, 0.0).astype(sig_ref.dtype)


def sagnn_aggregator(x, params, num_heads, *, tile_q=None):
    """Pallas forward of SAGNNAggregator.

    x: [N, D] vertex features.
    params: ws/wq/wk/wv/wo: [D, D] (in_features, out_features layout, i.e.
            torch W.T); bs/bq/bk/bv/bo: [D]; wc: [D, 1]; bc: [1].
    Returns (outputs.mean() scalar, (s_embed - d_embed)**2 of shape [N, D]).
    """
    n, d = x.shape
    assert d % num_heads == 0
    cdt = jnp.bfloat16
    f32 = jnp.float32

    try:
        vmem_cap = int(getattr(pltpu.get_tpu_info(), "vmem_capacity_bytes",
                               64 * 2 ** 20))
    except Exception:  # pragma: no cover - conservative default (v7x-sized)
        vmem_cap = 64 * 2 ** 20

    if tile_q is None:
        # Bigger tiles on 128 MiB parts (v5e/v6e); stay at 256 on v7x (64 MiB).
        tile_q = 512 if vmem_cap >= 96 * 2 ** 20 else 256
    tq = min(_round_up(tile_q, 8), _round_up(n, 8))
    n_pad = _round_up(n, tq)
    grid = (n_pad // tq,)

    # bf16 compute copies of X and the matmul weights; biases stay f32.
    xc = x.astype(cdt)
    ws, wq, wk, wv, wo = (params[k].astype(cdt)
                          for k in ("ws", "wq", "wk", "wv", "wo"))
    wc = params["wc"].reshape(d, 1).astype(cdt)
    bs, bq, bk, bv, bo = (params[k].reshape(1, d).astype(f32)
                          for k in ("bs", "bq", "bk", "bv", "bo"))
    bc = params["bc"].reshape(1, 1).astype(f32)

    # K / V projections hoisted out of the kernel (lets the grid axis be
    # "parallel" and removes the serial step-0 prologue).  K is transposed so
    # per-head slices inside the kernel are sublane slices.
    n_kv = _round_up(n, 8)
    k = (jnp.dot(xc, wk, preferred_element_type=f32) + bk).astype(cdt)
    v = (jnp.dot(xc, wv, preferred_element_type=f32) + bv).astype(cdt)
    if n_kv != n:
        k = jnp.pad(k, ((0, n_kv - n), (0, 0)))
        v = jnp.pad(v, ((0, n_kv - n), (0, 0)))
    kt = k.T                                                       # (D, Nk)

    x_pad = xc if n_pad == n else jnp.pad(xc, ((0, n_pad - n), (0, 0)))

    const_args = (kt, v, ws, bs, wq, bq, wo, bo, wc, bc)

    out_shape = (jax.ShapeDtypeStruct((n_pad, d), x.dtype),   # diff^2 tiles
                 jax.ShapeDtypeStruct((n_pad, 1), f32))       # per-row sigmoid
    out_specs = (pl.BlockSpec((tq, d), lambda i: (i, 0)),
                 pl.BlockSpec((tq, 1), lambda i: (i, 0)))

    out_itm = jnp.dtype(x.dtype).itemsize
    cost = pl.CostEstimate(
        flops=(3 * 2 * n_pad * d * d          # ws / wq / wo projections
               + 4 * n_pad * n_kv * d         # scores + attn @ V (all heads)
               + 2 * n_pad * d                # cls
               + 8 * n_pad * d),              # elementwise
        transcendentals=n_pad * d + num_heads * n_pad * n_kv + 2 * n_pad,
        bytes_accessed=(n_pad * d * 2 + 2 * n_kv * d * 2
                        + (3 * d * d + d) * 2 + (3 * d + 1) * 4
                        + n_pad * d * out_itm + n_pad * 4),
    )
    cparams = pltpu.CompilerParams(
        dimension_semantics=("parallel",),
        vmem_limit_bytes=max(32 * 2 ** 20, int(0.75 * vmem_cap)),
    )

    kernel = functools.partial(_sagnn_kernel, n, num_heads)

    def _run(unblocked_consts):
        if unblocked_consts:
            # Whole-array VMEM residents: copied once, NOT double-buffered.
            const_specs = [pl.BlockSpec(memory_space=pltpu.MemorySpace.VMEM)
                           for _ in const_args]
        else:
            # Fallback: full-block, constant-index specs (pipelined).
            const_specs = [pl.BlockSpec(a.shape,
                                        lambda i, _nd=a.ndim: (0,) * _nd)
                           for a in const_args]
        in_specs = [pl.BlockSpec((tq, d), lambda i: (i, 0))] + const_specs
        return pl.pallas_call(
            kernel,
            out_shape=out_shape,
            grid_spec=pltpu.PrefetchScalarGridSpec(
                num_scalar_prefetch=0,
                grid=grid,
                in_specs=in_specs,
                out_specs=out_specs,
            ),
            compiler_params=cparams,
            cost_estimate=cost,
        )(x_pad, *const_args)

    try:
        diff2_pad, sig_pad = _run(True)
    except Exception:
        # Compatibility fallback for Pallas versions without whole-array VMEM
        # input specs.
        diff2_pad, sig_pad = _run(False)

    mean = (jnp.sum(sig_pad) / n).astype(x.dtype)
    return mean, diff2_pad[:n]


def _reference(x, params, num_heads):
    f32 = jnp.float32
    xf = x.astype(f32)
    n, d = x.shape
    dh = d // num_heads
    s_emb = jnp.tanh(xf @ params["ws"] + params["bs"])
    q = xf @ params["wq"] + params["bq"]
    k = xf @ params["wk"] + params["bk"]
    v = xf @ params["wv"] + params["bv"]
    heads = []
    for h in range(num_heads):
        qh, kh, vh = (t[:, h * dh:(h + 1) * dh] for t in (q, k, v))
        sc = (qh @ kh.T) * (1.0 / math.sqrt(dh))
        heads.append(jax.nn.softmax(sc, axis=-1) @ vh)
    d_emb = jnp.concatenate(heads, axis=-1) @ params["wo"] + params["bo"]
    diff2 = (s_emb - d_emb) ** 2
    out = jax.nn.sigmoid(diff2 @ params["wc"].reshape(d, 1)
                         + params["bc"].reshape(1, 1))
    return out.mean(), diff2


if __name__ == "__main__":
    # 36 vertices, dim_vertex=128 (lane-dense), 4 heads.  N is deliberately not
    # a multiple of 8/16 so both query- and key-padding mask paths run.
    N, D, H = 36, 128, 4

    key = jax.random.PRNGKey(0)
    ks = jax.random.split(key, 13)
    sc = 1.0 / math.sqrt(D)

    def init(k, shape, scale):
        return jax.random.normal(k, shape, jnp.float32) * scale

    params = {
        "ws": init(ks[0], (D, D), sc), "bs": init(ks[1], (D,), 0.01),
        "wq": init(ks[2], (D, D), sc), "bq": init(ks[3], (D,), 0.01),
        "wk": init(ks[4], (D, D), sc), "bk": init(ks[5], (D,), 0.01),
        "wv": init(ks[6], (D, D), sc), "bv": init(ks[7], (D,), 0.01),
        "wo": init(ks[8], (D, D), sc), "bo": init(ks[9], (D,), 0.01),
        "wc": init(ks[10], (D, 1), sc), "bc": init(ks[11], (1,), 0.01),
    }
    x = jax.random.normal(ks[12], (N, D), jnp.float32)

    # tile_q forced small so the demo exercises several parallel grid tiles;
    # production default is 256 (v7x) / 512 (v5e, v6e).
    mean_out, diff2 = sagnn_aggregator(x, params, num_heads=H, tile_q=16)
    jax.block_until_ready((mean_out, diff2))

    ref_mean, ref_diff2 = _reference(x, params, H)

    assert mean_out.shape == () and diff2.shape == (N, D)
    err_d = float(jnp.max(jnp.abs(diff2 - ref_diff2)))
    assert jnp.allclose(diff2, ref_diff2, atol=3e-2, rtol=3e-2), err_d
    assert jnp.allclose(mean_out, ref_mean, atol=1e-2, rtol=1e-2), \
        (float(mean_out), float(ref_mean))

    print("KERNEL_OK")
</pallas_src>

<mosaic_0001>
module attributes {stable_mosaic.version = 11 : i64} {
  func.func @_sagnn_kernel(%arg0: i32, %arg1: memref<16x128xbf16, #tpu.memory_space<vmem>>, %arg2: memref<128x40xbf16, #tpu.memory_space<vmem>>, %arg3: memref<40x128xbf16, #tpu.memory_space<vmem>>, %arg4: memref<128x128xbf16, #tpu.memory_space<vmem>>, %arg5: memref<1x128xf32, #tpu.memory_space<vmem>>, %arg6: memref<128x128xbf16, #tpu.memory_space<vmem>>, %arg7: memref<1x128xf32, #tpu.memory_space<vmem>>, %arg8: memref<128x128xbf16, #tpu.memory_space<vmem>>, %arg9: memref<1x128xf32, #tpu.memory_space<vmem>>, %arg10: memref<128x1xbf16, #tpu.memory_space<vmem>>, %arg11: memref<1x1xf32, #tpu.memory_space<vmem>>, %arg12: memref<16x128xf32, #tpu.memory_space<vmem>>, %arg13: memref<16x1xf32, #tpu.memory_space<vmem>>) attributes {dimension_semantics = [#tpu.dimension_semantics<parallel>], iteration_bounds = array<i64: 3>, scalar_prefetch = 0 : i64, scratch_operands = 0 : i64, tpu.core_type = #tpu.core_type<tc>, window_params = [{transform_indices = @transform_0, window_bounds = array<i64: 16, 128>}, {pipeline_mode = #tpu.pipeline_mode<synchronous>, transform_indices = @transform_1, window_bounds = array<i64: 128, 40>}, {pipeline_mode = #tpu.pipeline_mode<synchronous>, transform_indices = @transform_2, window_bounds = array<i64: 40, 128>}, {pipeline_mode = #tpu.pipeline_mode<synchronous>, transform_indices = @transform_3, window_bounds = array<i64: 128, 128>}, {pipeline_mode = #tpu.pipeline_mode<synchronous>, transform_indices = @transform_4, window_bounds = array<i64: 1, 128>}, {pipeline_mode = #tpu.pipeline_mode<synchronous>, transform_indices = @transform_5, window_bounds = array<i64: 128, 128>}, {pipeline_mode = #tpu.pipeline_mode<synchronous>, transform_indices = @transform_6, window_bounds = array<i64: 1, 128>}, {pipeline_mode = #tpu.pipeline_mode<synchronous>, transform_indices = @transform_7, window_bounds = array<i64: 128, 128>}, {pipeline_mode = #tpu.pipeline_mode<synchronous>, transform_indices = @transform_8, window_bounds = array<i64: 1, 128>}, {pipeline_mode = #tpu.pipeline_mode<synchronous>, transform_indices = @transform_9, window_bounds = array<i64: 128, 1>}, {pipeline_mode = #tpu.pipeline_mode<synchronous>, transform_indices = @transform_10, window_bounds = array<i64: 1, 1>}, {transform_indices = @transform_11, window_bounds = array<i64: 16, 128>}, {transform_indices = @transform_12, window_bounds = array<i64: 16, 1>}]} {
    %c0 = arith.constant 0 : index
    %c0_0 = arith.constant 0 : index
    %0 = vector.load %arg1[%c0, %c0_0] : memref<16x128xbf16, #tpu.memory_space<vmem>>, vector<16x128xbf16>
    %c0_1 = arith.constant 0 : index
    %c0_2 = arith.constant 0 : index
    %1 = vector.load %arg4[%c0_1, %c0_2] : memref<128x128xbf16, #tpu.memory_space<vmem>>, vector<128x128xbf16>
    %cst = arith.constant dense<0.000000e+00> : vector<16x128xf32>
    %2 = tpu.matmul %0, %1, %cst {dimension_numbers = #tpu.dot_dimension_numbers<[1], [0], [0], [1], [0, 0, 1, 1], [], []>} : vector<16x128xbf16>, vector<128x128xbf16>, vector<16x128xf32> -> vector<16x128xf32>
    %c0_3 = arith.constant 0 : index
    %c0_4 = arith.constant 0 : index
    %3 = vector.load %arg5[%c0_3, %c0_4] : memref<1x128xf32, #tpu.memory_space<vmem>>, vector<1x128xf32>
    %4 = vector.broadcast %3 : vector<1x128xf32> to vector<16x128xf32>
    %5 = arith.addf %2, %4 : vector<16x128xf32>
    %6 = math.tanh %5 : vector<16x128xf32>
    %c0_5 = arith.constant 0 : index
    %c0_6 = arith.constant 0 : index
    %7 = vector.load %arg6[%c0_5, %c0_6] : memref<128x128xbf16, #tpu.memory_space<vmem>>, vector<128x128xbf16>
    %cst_7 = arith.constant dense<0.000000e+00> : vector<16x128xf32>
    %8 = tpu.matmul %0, %7, %cst_7 {dimension_numbers = #tpu.dot_dimension_numbers<[1], [0], [0], [1], [0, 0, 1, 1], [], []>} : vector<16x128xbf16>, vector<128x128xbf16>, vector<16x128xf32> -> vector<16x128xf32>
    %c0_8 = arith.constant 0 : index
    %c0_9 = arith.constant 0 : index
    %9 = vector.load %arg7[%c0_8, %c0_9] : memref<1x128xf32, #tpu.memory_space<vmem>>, vector<1x128xf32>
    %10 = vector.broadcast %9 : vector<1x128xf32> to vector<16x128xf32>
    %11 = arith.addf %8, %10 : vector<16x128xf32>
    %12 = arith.truncf %11 : vector<16x128xf32> to vector<16x128xbf16>
    %13 = tpu.iota {dimensions = array<i32: 1>} : vector<16x40xi32>
    %c36_i32 = arith.constant 36 : i32
    %14 = vector.broadcast %c36_i32 : i32 to vector<16x40xi32>
    %15 = arith.cmpi slt, %13, %14 : vector<16x40xi32>
    %cst_10 = arith.constant 0.000000e+00 : f32
    %cst_11 = arith.constant -1.000000e+30 : f32
    %16 = vector.broadcast %cst_10 : f32 to vector<16x40xf32>
    %17 = vector.broadcast %cst_11 : f32 to vector<16x40xf32>
    %18 = arith.select %15, %16, %17 : vector<16x40xi1>, vector<16x40xf32>
    %19 = vector.extract_strided_slice %12 {offsets = [0, 0], sizes = [16, 32], strides = [1, 1]} : vector<16x128xbf16> to vector<16x32xbf16>
    %c0_12 = arith.constant 0 : index
    %c0_13 = arith.constant 0 : index
    %20 = vector.load %arg2[%c0_12, %c0_13] : memref<128x40xbf16, #tpu.memory_space<vmem>>, vector<32x40xbf16>
    %c0_14 = arith.constant 0 : index
    %c0_15 = arith.constant 0 : index
    %21 = vector.load %arg3[%c0_14, %c0_15] : memref<40x128xbf16, #tpu.memory_space<vmem>>, vector<40x32xbf16>
    %cst_16 = arith.constant dense<0.000000e+00> : vector<16x40xf32>
    %22 = tpu.matmul %19, %20, %cst_16 {dimension_numbers = #tpu.dot_dimension_numbers<[1], [0], [0], [1], [0, 0, 1, 1], [], []>} : vector<16x32xbf16>, vector<32x40xbf16>, vector<16x40xf32> -> vector<16x40xf32>
    %cst_17 = arith.constant 0.176776692 : f32
    %23 = vector.broadcast %cst_17 : f32 to vector<16x40xf32>
    %24 = arith.mulf %22, %23 : vector<16x40xf32>
    %25 = arith.addf %24, %18 : vector<16x40xf32>
    %cst_18 = arith.constant dense<0xFF800000> : vector<16xf32>
    %26 = vector.multi_reduction <maximumf>, %25, %cst_18 [1] : vector<16x40xf32> to vector<16xf32>
    %27 = vector.shape_cast %26 : vector<16xf32> to vector<16x1xf32>
    %28 = vector.broadcast %27 : vector<16x1xf32> to vector<16x40xf32>
    %29 = arith.subf %25, %28 : vector<16x40xf32>
    %30 = math.exp %29 : vector<16x40xf32>
    %cst_19 = arith.constant dense<0.000000e+00> : vector<16xf32>
    %31 = vector.multi_reduction <add>, %30, %cst_19 [1] : vector<16x40xf32> to vector<16xf32>
    %32 = vector.shape_cast %31 : vector<16xf32> to vector<16x1xf32>
    %33 = tpu.reciprocal %32 {approx = true} : vector<16x1xf32> -> vector<16x1xf32>
    %34 = vector.broadcast %33 : vector<16x1xf32> to vector<16x40xf32>
    %35 = arith.mulf %30, %34 : vector<16x40xf32>
    %36 = arith.truncf %35 : vector<16x40xf32> to vector<16x40xbf16>
    %cst_20 = arith.constant dense<0.000000e+00> : vector<16x32xf32>
    %37 = tpu.matmul %36, %21, %cst_20 {dimension_numbers = #tpu.dot_dimension_numbers<[1], [0], [0], [1], [0, 0, 1, 1], [], []>} : vector<16x40xbf16>, vector<40x32xbf16>, vector<16x32xf32> -> vector<16x32xf32>
    %38 = vector.extract_strided_slice %12 {offsets = [0, 32], sizes = [16, 32], strides = [1, 1]} : vector<16x128xbf16> to vector<16x32xbf16>
    %c32 = arith.constant 32 : index
    %c0_21 = arith.constant 0 : index
    %39 = vector.load %arg2[%c32, %c0_21] : memref<128x40xbf16, #tpu.memory_space<vmem>>, vector<32x40xbf16>
    %c0_22 = arith.constant 0 : index
    %c32_23 = arith.constant 32 : index
    %40 = vector.load %arg3[%c0_22, %c32_23] : memref<40x128xbf16, #tpu.memory_space<vmem>>, vector<40x32xbf16>
    %cst_24 = arith.constant dense<0.000000e+00> : vector<16x40xf32>
    %41 = tpu.matmul %38, %39, %cst_24 {dimension_numbers = #tpu.dot_dimension_numbers<[1], [0], [0], [1], [0, 0, 1, 1], [], []>} : vector<16x32xbf16>, vector<32x40xbf16>, vector<16x40xf32> -> vector<16x40xf32>
    %cst_25 = arith.constant 0.176776692 : f32
    %42 = vector.broadcast %cst_25 : f32 to vector<16x40xf32>
    %43 = arith.mulf %41, %42 : vector<16x40xf32>
    %44 = arith.addf %43, %18 : vector<16x40xf32>
    %cst_26 = arith.constant dense<0xFF800000> : vector<16xf32>
    %45 = vector.multi_reduction <maximumf>, %44, %cst_26 [1] : vector<16x40xf32> to vector<16xf32>
    %46 = vector.shape_cast %45 : vector<16xf32> to vector<16x1xf32>
    %47 = vector.broadcast %46 : vector<16x1xf32> to vector<16x40xf32>
    %48 = arith.subf %44, %47 : vector<16x40xf32>
    %49 = math.exp %48 : vector<16x40xf32>
    %cst_27 = arith.constant dense<0.000000e+00> : vector<16xf32>
    %50 = vector.multi_reduction <add>, %49, %cst_27 [1] : vector<16x40xf32> to vector<16xf32>
    %51 = vector.shape_cast %50 : vector<16xf32> to vector<16x1xf32>
    %52 = tpu.reciprocal %51 {approx = true} : vector<16x1xf32> -> vector<16x1xf32>
    %53 = vector.broadcast %52 : vector<16x1xf32> to vector<16x40xf32>
    %54 = arith.mulf %49, %53 : vector<16x40xf32>
    %55 = arith.truncf %54 : vector<16x40xf32> to vector<16x40xbf16>
    %cst_28 = arith.constant dense<0.000000e+00> : vector<16x32xf32>
    %56 = tpu.matmul %55, %40, %cst_28 {dimension_numbers = #tpu.dot_dimension_numbers<[1], [0], [0], [1], [0, 0, 1, 1], [], []>} : vector<16x40xbf16>, vector<40x32xbf16>, vector<16x32xf32> -> vector<16x32xf32>
    %57 = vector.extract_strided_slice %12 {offsets = [0, 64], sizes = [16, 32], strides = [1, 1]} : vector<16x128xbf16> to vector<16x32xbf16>
    %c64 = arith.constant 64 : index
    %c0_29 = arith.constant 0 : index
    %58 = vector.load %arg2[%c64, %c0_29] : memref<128x40xbf16, #tpu.memory_space<vmem>>, vector<32x40xbf16>
    %c0_30 = arith.constant 0 : index
    %c64_31 = arith.constant 64 : index
    %59 = vector.load %arg3[%c0_30, %c64_31] : memref<40x128xbf16, #tpu.memory_space<vmem>>, vector<40x32xbf16>
    %cst_32 = arith.constant dense<0.000000e+00> : vector<16x40xf32>
    %60 = tpu.matmul %57, %58, %cst_32 {dimension_numbers = #tpu.dot_dimension_numbers<[1], [0], [0], [1], [0, 0, 1, 1], [], []>} : vector<16x32xbf16>, vector<32x40xbf16>, vector<16x40xf32> -> vector<16x40xf32>
    %cst_33 = arith.constant 0.176776692 : f32
    %61 = vector.broadcast %cst_33 : f32 to vector<16x40xf32>
    %62 = arith.mulf %60, %61 : vector<16x40xf32>
    %63 = arith.addf %62, %18 : vector<16x40xf32>
    %cst_34 = arith.constant dense<0xFF800000> : vector<16xf32>
    %64 = vector.multi_reduction <maximumf>, %63, %cst_34 [1] : vector<16x40xf32> to vector<16xf32>
    %65 = vector.shape_cast %64 : vector<16xf32> to vector<16x1xf32>
    %66 = vector.broadcast %65 : vector<16x1xf32> to vector<16x40xf32>
    %67 = arith.subf %63, %66 : vector<16x40xf32>
    %68 = math.exp %67 : vector<16x40xf32>
    %cst_35 = arith.constant dense<0.000000e+00> : vector<16xf32>
    %69 = vector.multi_reduction <add>, %68, %cst_35 [1] : vector<16x40xf32> to vector<16xf32>
    %70 = vector.shape_cast %69 : vector<16xf32> to vector<16x1xf32>
    %71 = tpu.reciprocal %70 {approx = true} : vector<16x1xf32> -> vector<16x1xf32>
    %72 = vector.broadcast %71 : vector<16x1xf32> to vector<16x40xf32>
    %73 = arith.mulf %68, %72 : vector<16x40xf32>
    %74 = arith.truncf %73 : vector<16x40xf32> to vector<16x40xbf16>
    %cst_36 = arith.constant dense<0.000000e+00> : vector<16x32xf32>
    %75 = tpu.matmul %74, %59, %cst_36 {dimension_numbers = #tpu.dot_dimension_numbers<[1], [0], [0], [1], [0, 0, 1, 1], [], []>} : vector<16x40xbf16>, vector<40x32xbf16>, vector<16x32xf32> -> vector<16x32xf32>
    %76 = vector.extract_strided_slice %12 {offsets = [0, 96], sizes = [16, 32], strides = [1, 1]} : vector<16x128xbf16> to vector<16x32xbf16>
    %c96 = arith.constant 96 : index
    %c0_37 = arith.constant 0 : index
    %77 = vector.load %arg2[%c96, %c0_37] : memref<128x40xbf16, #tpu.memory_space<vmem>>, vector<32x40xbf16>
    %c0_38 = arith.constant 0 : index
    %c96_39 = arith.constant 96 : index
    %78 = vector.load %arg3[%c0_38, %c96_39] : memref<40x128xbf16, #tpu.memory_space<vmem>>, vector<40x32xbf16>
    %cst_40 = arith.constant dense<0.000000e+00> : vector<16x40xf32>
    %79 = tpu.matmul %76, %77, %cst_40 {dimension_numbers = #tpu.dot_dimension_numbers<[1], [0], [0], [1], [0, 0, 1, 1], [], []>} : vector<16x32xbf16>, vector<32x40xbf16>, vector<16x40xf32> -> vector<16x40xf32>
    %cst_41 = arith.constant 0.176776692 : f32
    %80 = vector.broadcast %cst_41 : f32 to vector<16x40xf32>
    %81 = arith.mulf %79, %80 : vector<16x40xf32>
    %82 = arith.addf %81, %18 : vector<16x40xf32>
    %cst_42 = arith.constant dense<0xFF800000> : vector<16xf32>
    %83 = vector.multi_reduction <maximumf>, %82, %cst_42 [1] : vector<16x40xf32> to vector<16xf32>
    %84 = vector.shape_cast %83 : vector<16xf32> to vector<16x1xf32>
    %85 = vector.broadcast %84 : vector<16x1xf32> to vector<16x40xf32>
    %86 = arith.subf %82, %85 : vector<16x40xf32>
    %87 = math.exp %86 : vector<16x40xf32>
    %cst_43 = arith.constant dense<0.000000e+00> : vector<16xf32>
    %88 = vector.multi_reduction <add>, %87, %cst_43 [1] : vector<16x40xf32> to vector<16xf32>
    %89 = vector.shape_cast %88 : vector<16xf32> to vector<16x1xf32>
    %90 = tpu.reciprocal %89 {approx = true} : vector<16x1xf32> -> vector<16x1xf32>
    %91 = vector.broadcast %90 : vector<16x1xf32> to vector<16x40xf32>
    %92 = arith.mulf %87, %91 : vector<16x40xf32>
    %93 = arith.truncf %92 : vector<16x40xf32> to vector<16x40xbf16>
    %cst_44 = arith.constant dense<0.000000e+00> : vector<16x32xf32>
    %94 = tpu.matmul %93, %78, %cst_44 {dimension_numbers = #tpu.dot_dimension_numbers<[1], [0], [0], [1], [0, 0, 1, 1], [], []>} : vector<16x40xbf16>, vector<40x32xbf16>, vector<16x32xf32> -> vector<16x32xf32>
    %95 = tpu.concatenate %37, %56, %75, %94 in 1 : vector<16x32xf32>, vector<16x32xf32>, vector<16x32xf32>, vector<16x32xf32> -> vector<16x128xf32>
    %96 = arith.truncf %95 : vector<16x128xf32> to vector<16x128xbf16>
    %c0_45 = arith.constant 0 : index
    %c0_46 = arith.constant 0 : index
    %97 = vector.load %arg8[%c0_45, %c0_46] : memref<128x128xbf16, #tpu.memory_space<vmem>>, vector<128x128xbf16>
    %cst_47 = arith.constant dense<0.000000e+00> : vector<16x128xf32>
    %98 = tpu.matmul %96, %97, %cst_47 {dimension_numbers = #tpu.dot_dimension_numbers<[1], [0], [0], [1], [0, 0, 1, 1], [], []>} : vector<16x128xbf16>, vector<128x128xbf16>, vector<16x128xf32> -> vector<16x128xf32>
    %c0_48 = arith.constant 0 : index
    %c0_49 = arith.constant 0 : index
    %99 = vector.load %arg9[%c0_48, %c0_49] : memref<1x128xf32, #tpu.memory_space<vmem>>, vector<1x128xf32>
    %100 = vector.broadcast %99 : vector<1x128xf32> to vector<16x128xf32>
    %101 = arith.addf %98, %100 : vector<16x128xf32>
    %102 = arith.subf %6, %101 : vector<16x128xf32>
    %103 = arith.mulf %102, %102 : vector<16x128xf32>
    %c0_50 = arith.constant 0 : index
    %c0_51 = arith.constant 0 : index
    %104 = vector.load %arg12[%c0_50, %c0_51] : memref<16x128xf32, #tpu.memory_space<vmem>>, vector<16x128xf32>
    tpu.vector_store %arg12[%c0_50, %c0_51], %103 {strides = array<i32>} : memref<16x128xf32, #tpu.memory_space<vmem>>, vector<16x128xf32>,
    %105 = arith.truncf %103 : vector<16x128xf32> to vector<16x128xbf16>
    %c0_52 = arith.constant 0 : index
    %c0_53 = arith.constant 0 : index
    %106 = vector.load %arg10[%c0_52, %c0_53] : memref<128x1xbf16, #tpu.memory_space<vmem>>, vector<128x1xbf16>
    %cst_54 = arith.constant dense<0.000000e+00> : vector<16x1xf32>
    %107 = tpu.matmul %105, %106, %cst_54 {dimension_numbers = #tpu.dot_dimension_numbers<[1], [0], [0], [1], [0, 0, 1, 1], [], []>} : vector<16x128xbf16>, vector<128x1xbf16>, vector<16x1xf32> -> vector<16x1xf32>
    %c0_55 = arith.constant 0 : index
    %c0_56 = arith.constant 0 : index
    %108 = vector.load %arg11[%c0_55, %c0_56] : memref<1x1xf32, #tpu.memory_space<vmem>>, vector<1x1xf32>
    %109 = vector.broadcast %108 : vector<1x1xf32> to vector<16x1xf32>
    %110 = arith.addf %107, %109 : vector<16x1xf32>
    %111 = arith.negf %110 : vector<16x1xf32>
    %112 = math.exp %111 : vector<16x1xf32>
    %cst_57 = arith.constant 1.000000e+00 : f32
    %113 = vector.broadcast %cst_57 : f32 to vector<16x1xf32>
    %114 = arith.addf %113, %112 : vector<16x1xf32>
    %115 = arith.divf %113, %114 : vector<16x1xf32>
    %116 = tpu.iota {dimensions = array<i32: 0>} : vector<16x1xi32>
    %c16_i32 = arith.constant 16 : i32
    %117 = arith.muli %arg0, %c16_i32 : i32
    %118 = vector.broadcast %117 : i32 to vector<16x1xi32>
    %119 = arith.addi %116, %118 : vector<16x1xi32>
    %c36_i32_58 = arith.constant 36 : i32
    %120 = vector.broadcast %c36_i32_58 : i32 to vector<16x1xi32>
    %121 = arith.cmpi slt, %119, %120 : vector<16x1xi32>
    %cst_59 = arith.constant 0.000000e+00 : f32
    %122 = vector.broadcast %cst_59 : f32 to vector<16x1xf32>
    %123 = arith.select %121, %115, %122 : vector<16x1xi1>, vector<16x1xf32>
    %c0_60 = arith.constant 0 : index
    %c0_61 = arith.constant 0 : index
    %124 = vector.load %arg13[%c0_60, %c0_61] : memref<16x1xf32, #tpu.memory_space<vmem>>, vector<16x1xf32>
    tpu.vector_store %arg13[%c0_60, %c0_61], %123 {strides = array<i32>} : memref<16x1xf32, #tpu.memory_space<vmem>>, vector<16x1xf32>,
    return
  }
  func.func @transform_0(%arg0: i32) -> (i32, i32) {
    %c0_i32 = arith.constant 0 : i32
    %c0_i32_0 = arith.constant 0 : i32
    return %arg0, %c0_i32 : i32, i32
  }
  func.func @transform_1(%arg0: i32) -> (i32, i32) {
    %c0_i32 = arith.constant 0 : i32
    %c0_i32_0 = arith.constant 0 : i32
    %c0_i32_1 = arith.constant 0 : i32
    return %c0_i32, %c0_i32_0 : i32, i32
  }
  func.func @transform_2(%arg0: i32) -> (i32, i32) {
    %c0_i32 = arith.constant 0 : i32
    %c0_i32_0 = arith.constant 0 : i32
    %c0_i32_1 = arith.constant 0 : i32
    return %c0_i32, %c0_i32_0 : i32, i32
  }
  func.func @transform_3(%arg0: i32) -> (i32, i32) {
    %c0_i32 = arith.constant 0 : i32
    %c0_i32_0 = arith.constant 0 : i32
    %c0_i32_1 = arith.constant 0 : i32
    return %c0_i32, %c0_i32_0 : i32, i32
  }
  func.func @transform_4(%arg0: i32) -> (i32, i32) {
    %c0_i32 = arith.constant 0 : i32
    %c0_i32_0 = arith.constant 0 : i32
    %c0_i32_1 = arith.constant 0 : i32
    return %c0_i32, %c0_i32_0 : i32, i32
  }
  func.func @transform_5(%arg0: i32) -> (i32, i32) {
    %c0_i32 = arith.constant 0 : i32
    %c0_i32_0 = arith.constant 0 : i32
    %c0_i32_1 = arith.constant 0 : i32
    return %c0_i32, %c0_i32_0 : i32, i32
  }
  func.func @transform_6(%arg0: i32) -> (i32, i32) {
    %c0_i32 = arith.constant 0 : i32
    %c0_i32_0 = arith.constant 0 : i32
    %c0_i32_1 = arith.constant 0 : i32
    return %c0_i32, %c0_i32_0 : i32, i32
  }
  func.func @transform_7(%arg0: i32) -> (i32, i32) {
    %c0_i32 = arith.constant 0 : i32
    %c0_i32_0 = arith.constant 0 : i32
    %c0_i32_1 = arith.constant 0 : i32
    return %c0_i32, %c0_i32_0 : i32, i32
  }
  func.func @transform_8(%arg0: i32) -> (i32, i32) {
    %c0_i32 = arith.constant 0 : i32
    %c0_i32_0 = arith.constant 0 : i32
    %c0_i32_1 = arith.constant 0 : i32
    return %c0_i32, %c0_i32_0 : i32, i32
  }
  func.func @transform_9(%arg0: i32) -> (i32, i32) {
    %c0_i32 = arith.constant 0 : i32
    %c0_i32_0 = arith.constant 0 : i32
    %c0_i32_1 = arith.constant 0 : i32
    return %c0_i32, %c0_i32_0 : i32, i32
  }
  func.func @transform_10(%arg0: i32) -> (i32, i32) {
    %c0_i32 = arith.constant 0 : i32
    %c0_i32_0 = arith.constant 0 : i32
    %c0_i32_1 = arith.constant 0 : i32
    return %c0_i32, %c0_i32_0 : i32, i32
  }
  func.func @transform_11(%arg0: i32) -> (i32, i32) {
    %c0_i32 = arith.constant 0 : i32
    %c0_i32_0 = arith.constant 0 : i32
    return %arg0, %c0_i32 : i32, i32
  }
  func.func @transform_12(%arg0: i32) -> (i32, i32) {
    %c0_i32 = arith.constant 0 : i32
    %c0_i32_0 = arith.constant 0 : i32
    return %arg0, %c0_i32 : i32, i32
  }
}

module attributes {stable_mosaic.version = 11 : i64} {
  func.func @_sagnn_kernel(%arg0: i32, %arg1: memref<16x128xbf16, #tpu.memory_space<vmem>>, %arg2: memref<128x40xbf16, #tpu.memory_space<vmem>>, %arg3: memref<40x128xbf16, #tpu.memory_space<vmem>>, %arg4: memref<128x128xbf16, #tpu.memory_space<vmem>>, %arg5: memref<1x128xf32, #tpu.memory_space<vmem>>, %arg6: memref<128x128xbf16, #tpu.memory_space<vmem>>, %arg7: memref<1x128xf32, #tpu.memory_space<vmem>>, %arg8: memref<128x128xbf16, #tpu.memory_space<vmem>>, %arg9: memref<1x128xf32, #tpu.memory_space<vmem>>, %arg10: memref<128x1xbf16, #tpu.memory_space<vmem>>, %arg11: memref<1x1xf32, #tpu.memory_space<vmem>>, %arg12: memref<16x128xf32, #tpu.memory_space<vmem>>, %arg13: memref<16x1xf32, #tpu.memory_space<vmem>>) attributes {dimension_semantics = [#tpu.dimension_semantics<parallel>], iteration_bounds = array<i64: 3>, scalar_prefetch = 0 : i64, scratch_operands = 0 : i64, tpu.core_type = #tpu.core_type<tc>, window_params = [{transform_indices = @transform_0, window_bounds = array<i64: 16, 128>}, {pipeline_mode = #tpu.pipeline_mode<synchronous>, transform_indices = @transform_1, window_bounds = array<i64: 128, 40>}, {pipeline_mode = #tpu.pipeline_mode<synchronous>, transform_indices = @transform_2, window_bounds = array<i64: 40, 128>}, {pipeline_mode = #tpu.pipeline_mode<synchronous>, transform_indices = @transform_3, window_bounds = array<i64: 128, 128>}, {pipeline_mode = #tpu.pipeline_mode<synchronous>, transform_indices = @transform_4, window_bounds = array<i64: 1, 128>}, {pipeline_mode = #tpu.pipeline_mode<synchronous>, transform_indices = @transform_5, window_bounds = array<i64: 128, 128>}, {pipeline_mode = #tpu.pipeline_mode<synchronous>, transform_indices = @transform_6, window_bounds = array<i64: 1, 128>}, {pipeline_mode = #tpu.pipeline_mode<synchronous>, transform_indices = @transform_7, window_bounds = array<i64: 128, 128>}, {pipeline_mode = #tpu.pipeline_mode<synchronous>, transform_indices = @transform_8, window_bounds = array<i64: 1, 128>}, {pipeline_mode = #tpu.pipeline_mode<synchronous>, transform_indices = @transform_9, window_bounds = array<i64: 128, 1>}, {pipeline_mode = #tpu.pipeline_mode<synchronous>, transform_indices = @transform_10, window_bounds = array<i64: 1, 1>}, {transform_indices = @transform_11, window_bounds = array<i64: 16, 128>}, {transform_indices = @transform_12, window_bounds = array<i64: 16, 1>}]} {
    %c0 = arith.constant 0 : index
    %c0_0 = arith.constant 0 : index
    %0 = vector.load %arg1[%c0, %c0_0] : memref<16x128xbf16, #tpu.memory_space<vmem>>, vector<16x128xbf16>
    %c0_1 = arith.constant 0 : index
    %c0_2 = arith.constant 0 : index
    %1 = vector.load %arg4[%c0_1, %c0_2] : memref<128x128xbf16, #tpu.memory_space<vmem>>, vector<128x128xbf16>
    %cst = arith.constant dense<0.000000e+00> : vector<16x128xf32>
    %2 = tpu.matmul %0, %1, %cst {dimension_numbers = #tpu.dot_dimension_numbers<[1], [0], [0], [1], [0, 0, 1, 1], [], []>} : vector<16x128xbf16>, vector<128x128xbf16>, vector<16x128xf32> -> vector<16x128xf32>
    %c0_3 = arith.constant 0 : index
    %c0_4 = arith.constant 0 : index
    %3 = vector.load %arg5[%c0_3, %c0_4] : memref<1x128xf32, #tpu.memory_space<vmem>>, vector<1x128xf32>
    %4 = vector.broadcast %3 : vector<1x128xf32> to vector<16x128xf32>
    %5 = arith.addf %2, %4 : vector<16x128xf32>
    %6 = math.tanh %5 : vector<16x128xf32>
    %c0_5 = arith.constant 0 : index
    %c0_6 = arith.constant 0 : index
    %7 = vector.load %arg6[%c0_5, %c0_6] : memref<128x128xbf16, #tpu.memory_space<vmem>>, vector<128x128xbf16>
    %cst_7 = arith.constant dense<0.000000e+00> : vector<16x128xf32>
    %8 = tpu.matmul %0, %7, %cst_7 {dimension_numbers = #tpu.dot_dimension_numbers<[1], [0], [0], [1], [0, 0, 1, 1], [], []>} : vector<16x128xbf16>, vector<128x128xbf16>, vector<16x128xf32> -> vector<16x128xf32>
    %c0_8 = arith.constant 0 : index
    %c0_9 = arith.constant 0 : index
    %9 = vector.load %arg7[%c0_8, %c0_9] : memref<1x128xf32, #tpu.memory_space<vmem>>, vector<1x128xf32>
    %10 = vector.broadcast %9 : vector<1x128xf32> to vector<16x128xf32>
    %11 = arith.addf %8, %10 : vector<16x128xf32>
    %12 = arith.truncf %11 : vector<16x128xf32> to vector<16x128xbf16>
    %13 = tpu.iota {dimensions = array<i32: 1>} : vector<16x40xi32>
    %c36_i32 = arith.constant 36 : i32
    %14 = vector.broadcast %c36_i32 : i32 to vector<16x40xi32>
    %15 = arith.cmpi slt, %13, %14 : vector<16x40xi32>
    %cst_10 = arith.constant 0.000000e+00 : f32
    %cst_11 = arith.constant -1.000000e+30 : f32
    %16 = vector.broadcast %cst_10 : f32 to vector<16x40xf32>
    %17 = vector.broadcast %cst_11 : f32 to vector<16x40xf32>
    %18 = arith.select %15, %16, %17 : vector<16x40xi1>, vector<16x40xf32>
    %19 = vector.extract_strided_slice %12 {offsets = [0, 0], sizes = [16, 32], strides = [1, 1]} : vector<16x128xbf16> to vector<16x32xbf16>
    %c0_12 = arith.constant 0 : index
    %c0_13 = arith.constant 0 : index
    %20 = vector.load %arg2[%c0_12, %c0_13] : memref<128x40xbf16, #tpu.memory_space<vmem>>, vector<32x40xbf16>
    %c0_14 = arith.constant 0 : index
    %c0_15 = arith.constant 0 : index
    %21 = vector.load %arg3[%c0_14, %c0_15] : memref<40x128xbf16, #tpu.memory_space<vmem>>, vector<40x32xbf16>
    %cst_16 = arith.constant dense<0.000000e+00> : vector<16x40xf32>
    %22 = tpu.matmul %19, %20, %cst_16 {dimension_numbers = #tpu.dot_dimension_numbers<[1], [0], [0], [1], [0, 0, 1, 1], [], []>} : vector<16x32xbf16>, vector<32x40xbf16>, vector<16x40xf32> -> vector<16x40xf32>
    %cst_17 = arith.constant 0.176776692 : f32
    %23 = vector.broadcast %cst_17 : f32 to vector<16x40xf32>
    %24 = arith.mulf %22, %23 : vector<16x40xf32>
    %25 = arith.addf %24, %18 : vector<16x40xf32>
    %cst_18 = arith.constant dense<0xFF800000> : vector<16xf32>
    %26 = vector.multi_reduction <maximumf>, %25, %cst_18 [1] : vector<16x40xf32> to vector<16xf32>
    %27 = vector.shape_cast %26 : vector<16xf32> to vector<16x1xf32>
    %28 = vector.broadcast %27 : vector<16x1xf32> to vector<16x40xf32>
    %29 = arith.subf %25, %28 : vector<16x40xf32>
    %30 = math.exp %29 : vector<16x40xf32>
    %cst_19 = arith.constant dense<0.000000e+00> : vector<16xf32>
    %31 = vector.multi_reduction <add>, %30, %cst_19 [1] : vector<16x40xf32> to vector<16xf32>
    %32 = vector.shape_cast %31 : vector<16xf32> to vector<16x1xf32>
    %33 = tpu.reciprocal %32 {approx = true} : vector<16x1xf32> -> vector<16x1xf32>
    %34 = vector.broadcast %33 : vector<16x1xf32> to vector<16x40xf32>
    %35 = arith.mulf %30, %34 : vector<16x40xf32>
    %36 = arith.truncf %35 : vector<16x40xf32> to vector<16x40xbf16>
    %cst_20 = arith.constant dense<0.000000e+00> : vector<16x32xf32>
    %37 = tpu.matmul %36, %21, %cst_20 {dimension_numbers = #tpu.dot_dimension_numbers<[1], [0], [0], [1], [0, 0, 1, 1], [], []>} : vector<16x40xbf16>, vector<40x32xbf16>, vector<16x32xf32> -> vector<16x32xf32>
    %38 = vector.extract_strided_slice %12 {offsets = [0, 32], sizes = [16, 32], strides = [1, 1]} : vector<16x128xbf16> to vector<16x32xbf16>
    %c32 = arith.constant 32 : index
    %c0_21 = arith.constant 0 : index
    %39 = vector.load %arg2[%c32, %c0_21] : memref<128x40xbf16, #tpu.memory_space<vmem>>, vector<32x40xbf16>
    %c0_22 = arith.constant 0 : index
    %c32_23 = arith.constant 32 : index
    %40 = vector.load %arg3[%c0_22, %c32_23] : memref<40x128xbf16, #tpu.memory_space<vmem>>, vector<40x32xbf16>
    %cst_24 = arith.constant dense<0.000000e+00> : vector<16x40xf32>
    %41 = tpu.matmul %38, %39, %cst_24 {dimension_numbers = #tpu.dot_dimension_numbers<[1], [0], [0], [1], [0, 0, 1, 1], [], []>} : vector<16x32xbf16>, vector<32x40xbf16>, vector<16x40xf32> -> vector<16x40xf32>
    %cst_25 = arith.constant 0.176776692 : f32
    %42 = vector.broadcast %cst_25 : f32 to vector<16x40xf32>
    %43 = arith.mulf %41, %42 : vector<16x40xf32>
    %44 = arith.addf %43, %18 : vector<16x40xf32>
    %cst_26 = arith.constant dense<0xFF800000> : vector<16xf32>
    %45 = vector.multi_reduction <maximumf>, %44, %cst_26 [1] : vector<16x40xf32> to vector<16xf32>
    %46 = vector.shape_cast %45 : vector<16xf32> to vector<16x1xf32>
    %47 = vector.broadcast %46 : vector<16x1xf32> to vector<16x40xf32>
    %48 = arith.subf %44, %47 : vector<16x40xf32>
    %49 = math.exp %48 : vector<16x40xf32>
    %cst_27 = arith.constant dense<0.000000e+00> : vector<16xf32>
    %50 = vector.multi_reduction <add>, %49, %cst_27 [1] : vector<16x40xf32> to vector<16xf32>
    %51 = vector.shape_cast %50 : vector<16xf32> to vector<16x1xf32>
    %52 = tpu.reciprocal %51 {approx = true} : vector<16x1xf32> -> vector<16x1xf32>
    %53 = vector.broadcast %52 : vector<16x1xf32> to vector<16x40xf32>
    %54 = arith.mulf %49, %53 : vector<16x40xf32>
    %55 = arith.truncf %54 : vector<16x40xf32> to vector<16x40xbf16>
    %cst_28 = arith.constant dense<0.000000e+00> : vector<16x32xf32>
    %56 = tpu.matmul %55, %40, %cst_28 {dimension_numbers = #tpu.dot_dimension_numbers<[1], [0], [0], [1], [0, 0, 1, 1], [], []>} : vector<16x40xbf16>, vector<40x32xbf16>, vector<16x32xf32> -> vector<16x32xf32>
    %57 = vector.extract_strided_slice %12 {offsets = [0, 64], sizes = [16, 32], strides = [1, 1]} : vector<16x128xbf16> to vector<16x32xbf16>
    %c64 = arith.constant 64 : index
    %c0_29 = arith.constant 0 : index
    %58 = vector.load %arg2[%c64, %c0_29] : memref<128x40xbf16, #tpu.memory_space<vmem>>, vector<32x40xbf16>
    %c0_30 = arith.constant 0 : index
    %c64_31 = arith.constant 64 : index
    %59 = vector.load %arg3[%c0_30, %c64_31] : memref<40x128xbf16, #tpu.memory_space<vmem>>, vector<40x32xbf16>
    %cst_32 = arith.constant dense<0.000000e+00> : vector<16x40xf32>
    %60 = tpu.matmul %57, %58, %cst_32 {dimension_numbers = #tpu.dot_dimension_numbers<[1], [0], [0], [1], [0, 0, 1, 1], [], []>} : vector<16x32xbf16>, vector<32x40xbf16>, vector<16x40xf32> -> vector<16x40xf32>
    %cst_33 = arith.constant 0.176776692 : f32
    %61 = vector.broadcast %cst_33 : f32 to vector<16x40xf32>
    %62 = arith.mulf %60, %61 : vector<16x40xf32>
    %63 = arith.addf %62, %18 : vector<16x40xf32>
    %cst_34 = arith.constant dense<0xFF800000> : vector<16xf32>
    %64 = vector.multi_reduction <maximumf>, %63, %cst_34 [1] : vector<16x40xf32> to vector<16xf32>
    %65 = vector.shape_cast %64 : vector<16xf32> to vector<16x1xf32>
    %66 = vector.broadcast %65 : vector<16x1xf32> to vector<16x40xf32>
    %67 = arith.subf %63, %66 : vector<16x40xf32>
    %68 = math.exp %67 : vector<16x40xf32>
    %cst_35 = arith.constant dense<0.000000e+00> : vector<16xf32>
    %69 = vector.multi_reduction <add>, %68, %cst_35 [1] : vector<16x40xf32> to vector<16xf32>
    %70 = vector.shape_cast %69 : vector<16xf32> to vector<16x1xf32>
    %71 = tpu.reciprocal %70 {approx = true} : vector<16x1xf32> -> vector<16x1xf32>
    %72 = vector.broadcast %71 : vector<16x1xf32> to vector<16x40xf32>
    %73 = arith.mulf %68, %72 : vector<16x40xf32>
    %74 = arith.truncf %73 : vector<16x40xf32> to vector<16x40xbf16>
    %cst_36 = arith.constant dense<0.000000e+00> : vector<16x32xf32>
    %75 = tpu.matmul %74, %59, %cst_36 {dimension_numbers = #tpu.dot_dimension_numbers<[1], [0], [0], [1], [0, 0, 1, 1], [], []>} : vector<16x40xbf16>, vector<40x32xbf16>, vector<16x32xf32> -> vector<16x32xf32>
    %76 = vector.extract_strided_slice %12 {offsets = [0, 96], sizes = [16, 32], strides = [1, 1]} : vector<16x128xbf16> to vector<16x32xbf16>
    %c96 = arith.constant 96 : index
    %c0_37 = arith.constant 0 : index
    %77 = vector.load %arg2[%c96, %c0_37] : memref<128x40xbf16, #tpu.memory_space<vmem>>, vector<32x40xbf16>
    %c0_38 = arith.constant 0 : index
    %c96_39 = arith.constant 96 : index
    %78 = vector.load %arg3[%c0_38, %c96_39] : memref<40x128xbf16, #tpu.memory_space<vmem>>, vector<40x32xbf16>
    %cst_40 = arith.constant dense<0.000000e+00> : vector<16x40xf32>
    %79 = tpu.matmul %76, %77, %cst_40 {dimension_numbers = #tpu.dot_dimension_numbers<[1], [0], [0], [1], [0, 0, 1, 1], [], []>} : vector<16x32xbf16>, vector<32x40xbf16>, vector<16x40xf32> -> vector<16x40xf32>
    %cst_41 = arith.constant 0.176776692 : f32
    %80 = vector.broadcast %cst_41 : f32 to vector<16x40xf32>
    %81 = arith.mulf %79, %80 : vector<16x40xf32>
    %82 = arith.addf %81, %18 : vector<16x40xf32>
    %cst_42 = arith.constant dense<0xFF800000> : vector<16xf32>
    %83 = vector.multi_reduction <maximumf>, %82, %cst_42 [1] : vector<16x40xf32> to vector<16xf32>
    %84 = vector.shape_cast %83 : vector<16xf32> to vector<16x1xf32>
    %85 = vector.broadcast %84 : vector<16x1xf32> to vector<16x40xf32>
    %86 = arith.subf %82, %85 : vector<16x40xf32>
    %87 = math.exp %86 : vector<16x40xf32>
    %cst_43 = arith.constant dense<0.000000e+00> : vector<16xf32>
    %88 = vector.multi_reduction <add>, %87, %cst_43 [1] : vector<16x40xf32> to vector<16xf32>
    %89 = vector.shape_cast %88 : vector<16xf32> to vector<16x1xf32>
    %90 = tpu.reciprocal %89 {approx = true} : vector<16x1xf32> -> vector<16x1xf32>
    %91 = vector.broadcast %90 : vector<16x1xf32> to vector<16x40xf32>
    %92 = arith.mulf %87, %91 : vector<16x40xf32>
    %93 = arith.truncf %92 : vector<16x40xf32> to vector<16x40xbf16>
    %cst_44 = arith.constant dense<0.000000e+00> : vector<16x32xf32>
    %94 = tpu.matmul %93, %78, %cst_44 {dimension_numbers = #tpu.dot_dimension_numbers<[1], [0], [0], [1], [0, 0, 1, 1], [], []>} : vector<16x40xbf16>, vector<40x32xbf16>, vector<16x32xf32> -> vector<16x32xf32>
    %95 = tpu.concatenate %37, %56, %75, %94 in 1 : vector<16x32xf32>, vector<16x32xf32>, vector<16x32xf32>, vector<16x32xf32> -> vector<16x128xf32>
    %96 = arith.truncf %95 : vector<16x128xf32> to vector<16x128xbf16>
    %c0_45 = arith.constant 0 : index
    %c0_46 = arith.constant 0 : index
    %97 = vector.load %arg8[%c0_45, %c0_46] : memref<128x128xbf16, #tpu.memory_space<vmem>>, vector<128x128xbf16>
    %cst_47 = arith.constant dense<0.000000e+00> : vector<16x128xf32>
    %98 = tpu.matmul %96, %97, %cst_47 {dimension_numbers = #tpu.dot_dimension_numbers<[1], [0], [0], [1], [0, 0, 1, 1], [], []>} : vector<16x128xbf16>, vector<128x128xbf16>, vector<16x128xf32> -> vector<16x128xf32>
    %c0_48 = arith.constant 0 : index
    %c0_49 = arith.constant 0 : index
    %99 = vector.load %arg9[%c0_48, %c0_49] : memref<1x128xf32, #tpu.memory_space<vmem>>, vector<1x128xf32>
    %100 = vector.broadcast %99 : vector<1x128xf32> to vector<16x128xf32>
    %101 = arith.addf %98, %100 : vector<16x128xf32>
    %102 = arith.subf %6, %101 : vector<16x128xf32>
    %103 = arith.mulf %102, %102 : vector<16x128xf32>
    %c0_50 = arith.constant 0 : index
    %c0_51 = arith.constant 0 : index
    %104 = vector.load %arg12[%c0_50, %c0_51] : memref<16x128xf32, #tpu.memory_space<vmem>>, vector<16x128xf32>
    tpu.vector_store %arg12[%c0_50, %c0_51], %103 {strides = array<i32>} : memref<16x128xf32, #tpu.memory_space<vmem>>, vector<16x128xf32>,
    %105 = arith.truncf %103 : vector<16x128xf32> to vector<16x128xbf16>
    %c0_52 = arith.constant 0 : index
    %c0_53 = arith.constant 0 : index
    %106 = vector.load %arg10[%c0_52, %c0_53] : memref<128x1xbf16, #tpu.memory_space<vmem>>, vector<128x1xbf16>
    %cst_54 = arith.constant dense<0.000000e+00> : vector<16x1xf32>
    %107 = tpu.matmul %105, %106, %cst_54 {dimension_numbers = #tpu.dot_dimension_numbers<[1], [0], [0], [1], [0, 0, 1, 1], [], []>} : vector<16x128xbf16>, vector<128x1xbf16>, vector<16x1xf32> -> vector<16x1xf32>
    %c0_55 = arith.constant 0 : index
    %c0_56 = arith.constant 0 : index
    %108 = vector.load %arg11[%c0_55, %c0_56] : memref<1x1xf32, #tpu.memory_space<vmem>>, vector<1x1xf32>
    %109 = vector.broadcast %108 : vector<1x1xf32> to vector<16x1xf32>
    %110 = arith.addf %107, %109 : vector<16x1xf32>
    %111 = arith.negf %110 : vector<16x1xf32>
    %112 = math.exp %111 : vector<16x1xf32>
    %cst_57 = arith.constant 1.000000e+00 : f32
    %113 = vector.broadcast %cst_57 : f32 to vector<16x1xf32>
    %114 = arith.addf %113, %112 : vector<16x1xf32>
    %115 = arith.divf %113, %114 : vector<16x1xf32>
    %116 = tpu.iota {dimensions = array<i32: 0>} : vector<16x1xi32>
    %c16_i32 = arith.constant 16 : i32
    %117 = arith.muli %arg0, %c16_i32 : i32
    %118 = vector.broadcast %117 : i32 to vector<16x1xi32>
    %119 = arith.addi %116, %118 : vector<16x1xi32>
    %c36_i32_58 = arith.constant 36 : i32
    %120 = vector.broadcast %c36_i32_58 : i32 to vector<16x1xi32>
    %121 = arith.cmpi slt, %119, %120 : vector<16x1xi32>
    %cst_59 = arith.constant 0.000000e+00 : f32
    %122 = vector.broadcast %cst_59 : f32 to vector<16x1xf32>
    %123 = arith.select %121, %115, %122 : vector<16x1xi1>, vector<16x1xf32>
    %c0_60 = arith.constant 0 : index
    %c0_61 = arith.constant 0 : index
    %124 = vector.load %arg13[%c0_60, %c0_61] : memref<16x1xf32, #tpu.memory_space<vmem>>, vector<16x1xf32>
    tpu.vector_store %arg13[%c0_60, %c0_61], %123 {strides = array<i32>} : memref<16x1xf32, #tpu.memory_space<vmem>>, vector<16x1xf32>,
    return
  }
  func.func @transform_0(%arg0: i32) -> (i32, i32) {
    %c0_i32 = arith.constant 0 : i32
    %c0_i32_0 = arith.constant 0 : i32
    return %arg0, %c0_i32 : i32, i32
  }
  func.func @transform_1(%arg0: i32) -> (i32, i32) {
    %c0_i32 = arith.constant 0 : i32
    %c0_i32_0 = arith.constant 0 : i32
    %c0_i32_1 = arith.constant 0 : i32
    return %c0_i32, %c0_i32_0 : i32, i32
  }
  func.func @transform_2(%arg0: i32) -> (i32, i32) {
    %c0_i32 = arith.constant 0 : i32
    %c0_i32_0 = arith.constant 0 : i32
    %c0_i32_1 = arith.constant 0 : i32
    return %c0_i32, %c0_i32_0 : i32, i32
  }
  func.func @transform_3(%arg0: i32) -> (i32, i32) {
    %c0_i32 = arith.constant 0 : i32
    %c0_i32_0 = arith.constant 0 : i32
    %c0_i32_1 = arith.constant 0 : i32
    return %c0_i32, %c0_i32_0 : i32, i32
  }
  func.func @transform_4(%arg0: i32) -> (i32, i32) {
    %c0_i32 = arith.constant 0 : i32
    %c0_i32_0 = arith.constant 0 : i32
    %c0_i32_1 = arith.constant 0 : i32
    return %c0_i32, %c0_i32_0 : i32, i32
  }
  func.func @transform_5(%arg0: i32) -> (i32, i32) {
    %c0_i32 = arith.constant 0 : i32
    %c0_i32_0 = arith.constant 0 : i32
    %c0_i32_1 = arith.constant 0 : i32
    return %c0_i32, %c0_i32_0 : i32, i32
  }
  func.func @transform_6(%arg0: i32) -> (i32, i32) {
    %c0_i32 = arith.constant 0 : i32
    %c0_i32_0 = arith.constant 0 : i32
    %c0_i32_1 = arith.constant 0 : i32
    return %c0_i32, %c0_i32_0 : i32, i32
  }
  func.func @transform_7(%arg0: i32) -> (i32, i32) {
    %c0_i32 = arith.constant 0 : i32
    %c0_i32_0 = arith.constant 0 : i32
    %c0_i32_1 = arith.constant 0 : i32
    return %c0_i32, %c0_i32_0 : i32, i32
  }
  func.func @transform_8(%arg0: i32) -> (i32, i32) {
    %c0_i32 = arith.constant 0 : i32
    %c0_i32_0 = arith.constant 0 : i32
    %c0_i32_1 = arith.constant 0 : i32
    return %c0_i32, %c0_i32_0 : i32, i32
  }
  func.func @transform_9(%arg0: i32) -> (i32, i32) {
    %c0_i32 = arith.constant 0 : i32
    %c0_i32_0 = arith.constant 0 : i32
    %c0_i32_1 = arith.constant 0 : i32
    return %c0_i32, %c0_i32_0 : i32, i32
  }
  func.func @transform_10(%arg0: i32) -> (i32, i32) {
    %c0_i32 = arith.constant 0 : i32
    %c0_i32_0 = arith.constant 0 : i32
    %c0_i32_1 = arith.constant 0 : i32
    return %c0_i32, %c0_i32_0 : i32, i32
  }
  func.func @transform_11(%arg0: i32) -> (i32, i32) {
    %c0_i32 = arith.constant 0 : i32
    %c0_i32_0 = arith.constant 0 : i32
    return %arg0, %c0_i32 : i32, i32
  }
  func.func @transform_12(%arg0: i32) -> (i32, i32) {
    %c0_i32 = arith.constant 0 : i32
    %c0_i32_0 = arith.constant 0 : i32
    return %arg0, %c0_i32 : i32, i32
  }
}

</mosaic_0001>

<llo_original>
// kernel: tpu_custom_call.1
$region0: #{tpu_custom_call.1}
  #allocation0 [shape = 'u32[]', space=smem, size = 0x4, offset = 0x4, fixed_abs, tag = 'smem constant byte address 0x4 - core index']
  #allocation1 [shape = 'u32[144,128]{1,0:T(1,128)}', space=vmem, size = 0x12000, scoped, tag = 'internal scratch']
  #allocation2 [shape = 'f32[1,1]{1,0:T(1,128)S(1)}', space=vmem, size = 0x200, scoped, tag = 'scoped memory for tpu_custom_call.1']
  %s0 = inlined_call_operand.hbm [shape: bf16[48,128], index: 0, kind: input, shape index: {}]
  %s1 = inlined_call_operand.vmem [shape: bf16[128,40], index: 1, kind: input, shape index: {}]
  %s2 = inlined_call_operand.vmem [shape: bf16[40,128], index: 2, kind: input, shape index: {}]
  %s3 = inlined_call_operand.vmem [shape: bf16[128,128], index: 3, kind: input, shape index: {}]
  %s4 = inlined_call_operand.vmem [shape: f32[1,128], index: 4, kind: input, shape index: {}]
  %s5 = inlined_call_operand.vmem [shape: bf16[128,128], index: 5, kind: input, shape index: {}]
  %s6 = inlined_call_operand.vmem [shape: f32[1,128], index: 6, kind: input, shape index: {}]
  %s7 = inlined_call_operand.hbm [shape: bf16[128,128], index: 7, kind: input, shape index: {}]
  %s8 = inlined_call_operand.vmem [shape: f32[1,128], index: 8, kind: input, shape index: {}]
  %s9 = inlined_call_operand.vmem [shape: bf16[128,1], index: 9, kind: input, shape index: {}]
  %s10 = inlined_call_operand.<no memory space> [shape: f32[1,1], index: 10, kind: input, shape index: {}]
  %s11 = inlined_call_operand.hbm [shape: f32[48,128], index: 11, kind: output, shape index: {0}]
  %s12 = inlined_call_operand.vmem [shape: f32[48,1], index: 12, kind: output, shape index: {1}]
  %13 = xla_tuple %s11, %s12
  %s14 = sld [smem:[#allocation0]]
  $region93: #{tpu_custom_call.1} parent=0
    _
  %s16 = ssub.s32 1, %s14
  %s17 = scalar_select 0, %s16, %s14
  %v18 = vstv %s10
  %19 = vst [vmem:[#allocation2] sm:$0x1] %v18
  $region1: #{tpu_custom_call.1} parent=0
    #allocation3 [shape = 'u8[8192]{0}', space=vmem, size = 0x2000, scoped, tag = 'input window, operand 0']
    #allocation4 [shape = 's32[2]{0}', space=sflag, size = 0x8, scoped, tag = 'scoped memory for tpu_custom_call.1']
    #allocation5 [shape = 's32[2]{0}', space=sflag, size = 0x8, scoped, tag = 'scoped memory for tpu_custom_call.1']
    #allocation6 [shape = 'u8[32768]{0}', space=vmem, size = 0x8000, scoped, tag = 'input window, operand 7, single buffered']
    #allocation7 [shape = 's32[1]{0}', space=sflag, size = 0x4, scoped, tag = 'scoped memory for tpu_custom_call.1']
    #allocation8 [shape = 'u8[16384]{0}', space=vmem, size = 0x4000, scoped, tag = 'output window, operand 0']
    %20 = vsyncpa [#allocation4], 0
    %s21 = scalar_lea.sflag [#allocation4], 1
    %22 = vsyncpa %s21, 0
    %23 = vsyncpa [#allocation7], 0
    %24 = vsyncpa [#allocation5], 0
    %s25 = scalar_lea.sflag [#allocation5], 1
    %26 = vsyncpa %s25, 0
    loop: start=0, step=1, limit=5
    $region2: #{tpu_custom_call.1} parent=1 // loop_pre_header
      _
    $region3: #{tpu_custom_call.1} parent=1 // loop_header
      %s28 = sphi 0, %s32
      %p29 = scmp.ge.s32.totalorder %s28, 5
      %s38 = sphi 0, %s40
      %s41 = sphi 0, %s38
      %s42 = sphi 0, %s41
      %s58 = sphi 0, %s42
      %s62 = sphi 0, %s62
      %s64 = sphi 0, %s62
      %s65 = sphi 0, %s64
      %s79 = sphi 0, %s65
      %s83 = sphi 0, %s83
      %s85 = sphi 0, %s83
      %s86 = sphi 0, %s85
      %s100 = sphi 0, %s86
      %s104 = sphi 0, %s104
      %s106 = sphi 0, %s104
      %s107 = sphi 0, %s106
      %s121 = sphi 0, %s107
      %s125 = sphi 0, %s125
      %s127 = sphi 0, %s125
      %s128 = sphi 0, %s127
      %s142 = sphi 0, %s128
      %s146 = sphi 0, %s146
      %s148 = sphi 0, %s146
      %s149 = sphi 0, %s148
      %s163 = sphi 0, %s149
      %s167 = sphi 0, %s167
      %s169 = sphi 0, %s167
      %s170 = sphi 0, %s169
      %s184 = sphi 0, %s170
      %s188 = sphi 0, %s188
      %s190 = sphi 0, %s188
      %s191 = sphi 0, %s190
      %s205 = sphi 0, %s191
      %s209 = sphi 0, %s209
      %s211 = sphi 0, %s209
      %s212 = sphi 0, %s211
      %s226 = sphi 0, %s212
      %s230 = sphi 0, %s230
      %s232 = sphi 0, %s230
      %s233 = sphi 0, %s232
      %s247 = sphi 0, %s233
      %s251 = sphi 0, %s251
      %s253 = sphi 0, %s251
      %s254 = sphi 0, %s253
      %s268 = sphi 0, %s254
      %s274 = sphi 0, %s276
      %s277 = sphi 0, %s274
      %s278 = sphi 0, %s277
      %s294 = sphi 0, %s278
      %s300 = sphi 0, %s302
      %s303 = sphi 0, %s300
      %s304 = sphi 0, %s303
      %s320 = sphi 0, %s304
    $region4: #{tpu_custom_call.1} parent=1 // loop_header_branch
      %31 = sbr.rel (%p29) target = $region8
    $region5: #{tpu_custom_call.1} parent=1 // loop_body
      %s33 = ssub.s32 %s28, 1
      %s34 = ssub.s32 %s28, 2
      %s35 = sadd.s32 %s28, 1
      %s36 = ssub.s32 %s28, %s35
      %p37 = scmp.eq.s32.totalorder %s36, 0
      %s39 = sadd.s32 %s38, 1
      %s40 = scalar_select %p37, %s38, %s39
      %p43 = pneg %p37
      %p44 = scmp.eq.s32.totalorder %s28, 2
      %p45 = por %p43, %p44
      %p46 = scmp.ne.s32.totalorder %s38, %s41
      %p47 = scmp.eq.s32.totalorder %s28, 0
      %p48 = por %p46, %p47
      %p49 = scmp.ne.s32.totalorder %s38, %s41
      %p50 = scmp.eq.s32.totalorder %s33, 2
      %p51 = por %p49, %p50
      %p52 = scmp.ne.s32.totalorder %s41, %s42
      %p53 = scmp.eq.s32.totalorder %s33, 0
      %p54 = por %p52, %p53
      %p55 = scmp.ne.s32.totalorder %s41, %s42
      %p56 = scmp.eq.s32.totalorder %s34, 2
      %p57 = por %p55, %p56
      %p59 = scmp.ne.s32.totalorder %s42, %s58
      %p60 = scmp.eq.s32.totalorder %s34, 0
      %p61 = por %p59, %p60
      %s63 = sadd.s32 %s62, 1
      %p66 = scmp.eq.s32.totalorder %s28, 2
      %p67 = scmp.ne.s32.totalorder %s62, %s64
      %p68 = scmp.eq.s32.totalorder %s28, 0
      %p69 = por %p67, %p68
      %p70 = scmp.ne.s32.totalorder %s62, %s64
      %p71 = scmp.eq.s32.totalorder %s33, 2
      %p72 = por %p70, %p71
      %p73 = scmp.ne.s32.totalorder %s64, %s65
      %p74 = scmp.eq.s32.totalorder %s33, 0
      %p75 = por %p73, %p74
      %p76 = scmp.ne.s32.totalorder %s64, %s65
      %p77 = scmp.eq.s32.totalorder %s34, 2
      %p78 = por %p76, %p77
      %p80 = scmp.ne.s32.totalorder %s65, %s79
      %p81 = scmp.eq.s32.totalorder %s34, 0
      %p82 = por %p80, %p81
      %s84 = sadd.s32 %s83, 1
      %p87 = scmp.eq.s32.totalorder %s28, 2
      %p88 = scmp.ne.s32.totalorder %s83, %s85
      %p89 = scmp.eq.s32.totalorder %s28, 0
      %p90 = por %p88, %p89
      %p91 = scmp.ne.s32.totalorder %s83, %s85
      %p92 = scmp.eq.s32.totalorder %s33, 2
      %p93 = por %p91, %p92
      %p94 = scmp.ne.s32.totalorder %s85, %s86
      %p95 = scmp.eq.s32.totalorder %s33, 0
      %p96 = por %p94, %p95
      %p97 = scmp.ne.s32.totalorder %s85, %s86
      %p98 = scmp.eq.s32.totalorder %s34, 2
      %p99 = por %p97, %p98
      %p101 = scmp.ne.s32.totalorder %s86, %s100
      %p102 = scmp.eq.s32.totalorder %s34, 0
      %p103 = por %p101, %p102
      %s105 = sadd.s32 %s104, 1
      %p108 = scmp.eq.s32.totalorder %s28, 2
      %p109 = scmp.ne.s32.totalorder %s104, %s106
      %p110 = scmp.eq.s32.totalorder %s28, 0
      %p111 = por %p109, %p110
      %p112 = scmp.ne.s32.totalorder %s104, %s106
      %p113 = scmp.eq.s32.totalorder %s33, 2
      %p114 = por %p112, %p113
      %p115 = scmp.ne.s32.totalorder %s106, %s107
      %p116 = scmp.eq.s32.totalorder %s33, 0
      %p117 = por %p115, %p116
      %p118 = scmp.ne.s32.totalorder %s106, %s107
      %p119 = scmp.eq.s32.totalorder %s34, 2
      %p120 = por %p118, %p119
      %p122 = scmp.ne.s32.totalorder %s107, %s121
      %p123 = scmp.eq.s32.totalorder %s34, 0
      %p124 = por %p122, %p123
      %s126 = sadd.s32 %s125, 1
      %p129 = scmp.eq.s32.totalorder %s28, 2
      %p130 = scmp.ne.s32.totalorder %s125, %s127
      %p131 = scmp.eq.s32.totalorder %s28, 0
      %p132 = por %p130, %p131
      %p133 = scmp.ne.s32.totalorder %s125, %s127
      %p134 = scmp.eq.s32.totalorder %s33, 2
      %p135 = por %p133, %p134
      %p136 = scmp.ne.s32.totalorder %s127, %s128
      %p137 = scmp.eq.s32.totalorder %s33, 0
      %p138 = por %p136, %p137
      %p139 = scmp.ne.s32.totalorder %s127, %s128
      %p140 = scmp.eq.s32.totalorder %s34, 2
      %p141 = por %p139, %p140
      %p143 = scmp.ne.s32.totalorder %s128, %s142
      %p144 = scmp.eq.s32.totalorder %s34, 0
      %p145 = por %p143, %p144
      %s147 = sadd.s32 %s146, 1
      %p150 = scmp.eq.s32.totalorder %s28, 2
      %p151 = scmp.ne.s32.totalorder %s146, %s148
      %p152 = scmp.eq.s32.totalorder %s28, 0
      %p153 = por %p151, %p152
      %p154 = scmp.ne.s32.totalorder %s146, %s148
      %p155 = scmp.eq.s32.totalorder %s33, 2
      %p156 = por %p154, %p155
      %p157 = scmp.ne.s32.totalorder %s148, %s149
      %p158 = scmp.eq.s32.totalorder %s33, 0
      %p159 = por %p157, %p158
      %p160 = scmp.ne.s32.totalorder %s148, %s149
      %p161 = scmp.eq.s32.totalorder %s34, 2
      %p162 = por %p160, %p161
      %p164 = scmp.ne.s32.totalorder %s149, %s163
      %p165 = scmp.eq.s32.totalorder %s34, 0
      %p166 = por %p164, %p165
      %s168 = sadd.s32 %s167, 1
      %p171 = scmp.eq.s32.totalorder %s28, 2
      %p172 = scmp.ne.s32.totalorder %s167, %s169
      %p173 = scmp.eq.s32.totalorder %s28, 0
      %p174 = por %p172, %p173
      %p175 = scmp.ne.s32.totalorder %s167, %s169
      %p176 = scmp.eq.s32.totalorder %s33, 2
      %p177 = por %p175, %p176
      %p178 = scmp.ne.s32.totalorder %s169, %s170
      %p179 = scmp.eq.s32.totalorder %s33, 0
      %p180 = por %p178, %p179
      %p181 = scmp.ne.s32.totalorder %s169, %s170
      %p182 = scmp.eq.s32.totalorder %s34, 2
      %p183 = por %p181, %p182
      %p185 = scmp.ne.s32.totalorder %s170, %s184
      %p186 = scmp.eq.s32.totalorder %s34, 0
      %p187 = por %p185, %p186
      %s189 = sadd.s32 %s188, 1
      %p192 = scmp.eq.s32.totalorder %s28, 2
      %p193 = scmp.ne.s32.totalorder %s188, %s190
      %p194 = scmp.eq.s32.totalorder %s28, 0
      %p195 = por %p193, %p194
      %p196 = scmp.ne.s32.totalorder %s188, %s190
      %p197 = scmp.eq.s32.totalorder %s33, 2
      %p198 = por %p196, %p197
      %p199 = scmp.ne.s32.totalorder %s190, %s191
      %p200 = scmp.eq.s32.totalorder %s33, 0
      %p201 = por %p199, %p200
      %p202 = scmp.ne.s32.totalorder %s190, %s191
      %p203 = scmp.eq.s32.totalorder %s34, 2
      %p204 = por %p202, %p203
      %p206 = scmp.ne.s32.totalorder %s191, %s205
      %p207 = scmp.eq.s32.totalorder %s34, 0
      %p208 = por %p206, %p207
      %s210 = sadd.s32 %s209, 1
      %p213 = scmp.eq.s32.totalorder %s28, 2
      %p214 = scmp.ne.s32.totalorder %s209, %s211
      %p215 = scmp.eq.s32.totalorder %s28, 0
      %p216 = por %p214, %p215
      %p217 = scmp.ne.s32.totalorder %s209, %s211
      %p218 = scmp.eq.s32.totalorder %s33, 2
      %p219 = por %p217, %p218
      %p220 = scmp.ne.s32.totalorder %s211, %s212
      %p221 = scmp.eq.s32.totalorder %s33, 0
      %p222 = por %p220, %p221
      %p223 = scmp.ne.s32.totalorder %s211, %s212
      %p224 = scmp.eq.s32.totalorder %s34, 2
      %p225 = por %p223, %p224
      %p227 = scmp.ne.s32.totalorder %s212, %s226
      %p228 = scmp.eq.s32.totalorder %s34, 0
      %p229 = por %p227, %p228
      %s231 = sadd.s32 %s230, 1
      %p234 = scmp.eq.s32.totalorder %s28, 2
      %p235 = scmp.ne.s32.totalorder %s230, %s232
      %p236 = scmp.eq.s32.totalorder %s28, 0
      %p237 = por %p235, %p236
      %p238 = scmp.ne.s32.totalorder %s230, %s232
      %p239 = scmp.eq.s32.totalorder %s33, 2
      %p240 = por %p238, %p239
      %p241 = scmp.ne.s32.totalorder %s232, %s233
      %p242 = scmp.eq.s32.totalorder %s33, 0
      %p243 = por %p241, %p242
      %p244 = scmp.ne.s32.totalorder %s232, %s233
      %p245 = scmp.eq.s32.totalorder %s34, 2
      %p246 = por %p244, %p245
      %p248 = scmp.ne.s32.totalorder %s233, %s247
      %p249 = scmp.eq.s32.totalorder %s34, 0
      %p250 = por %p248, %p249
      %s252 = sadd.s32 %s251, 1
      %p255 = scmp.eq.s32.totalorder %s28, 2
      %p256 = scmp.ne.s32.totalorder %s251, %s253
      %p257 = scmp.eq.s32.totalorder %s28, 0
      %p258 = por %p256, %p257
      %p259 = scmp.ne.s32.totalorder %s251, %s253
      %p260 = scmp.eq.s32.totalorder %s33, 2
      %p261 = por %p259, %p260
      %p262 = scmp.ne.s32.totalorder %s253, %s254
      %p263 = scmp.eq.s32.totalorder %s33, 0
      %p264 = por %p262, %p263
      %p265 = scmp.ne.s32.totalorder %s253, %s254
      %p266 = scmp.eq.s32.totalorder %s34, 2
      %p267 = por %p265, %p266
      %p269 = scmp.ne.s32.totalorder %s254, %s268
      %p270 = scmp.eq.s32.totalorder %s34, 0
      %p271 = por %p269, %p270
      %s272 = ssub.s32 %s28, %s35
      %p273 = scmp.eq.s32.totalorder %s272, 0
      %s275 = sadd.s32 %s274, 1
      %s276 = scalar_select %p273, %s274, %s275
      %p279 = pneg %p273
      %p280 = scmp.eq.s32.totalorder %s28, 2
      %p281 = por %p279, %p280
      %p282 = scmp.ne.s32.totalorder %s274, %s277
      %p283 = scmp.eq.s32.totalorder %s28, 0
      %p284 = por %p282, %p283
      %p285 = scmp.ne.s32.totalorder %s274, %s277
      %p286 = scmp.eq.s32.totalorder %s33, 2
      %p287 = por %p285, %p286
      %p288 = scmp.ne.s32.totalorder %s277, %s278
      %p289 = scmp.eq.s32.totalorder %s33, 0
      %p290 = por %p288, %p289
      %p291 = scmp.ne.s32.totalorder %s277, %s278
      %p292 = scmp.eq.s32.totalorder %s34, 2
      %p293 = por %p291, %p292
      %p295 = scmp.ne.s32.totalorder %s278, %s294
      %p296 = scmp.eq.s32.totalorder %s34, 0
      %p297 = por %p295, %p296
      %s298 = ssub.s32 %s28, %s35
      %p299 = scmp.eq.s32.totalorder %s298, 0
      %s301 = sadd.s32 %s300, 1
      %s302 = scalar_select %p299, %s300, %s301
      %p305 = pneg %p299
      %p306 = scmp.eq.s32.totalorder %s28, 2
      %p307 = por %p305, %p306
      %p308 = scmp.ne.s32.totalorder %s300, %s303
      %p309 = scmp.eq.s32.totalorder %s28, 0
      %p310 = por %p308, %p309
      %p311 = scmp.ne.s32.totalorder %s300, %s303
      %p312 = scmp.eq.s32.totalorder %s33, 2
      %p313 = por %p311, %p312
      %p314 = scmp.ne.s32.totalorder %s303, %s304
      %p315 = scmp.eq.s32.totalorder %s33, 0
      %p316 = por %p314, %p315
      %p317 = scmp.ne.s32.totalorder %s303, %s304
      %p318 = scmp.eq.s32.totalorder %s34, 2
      %p319 = por %p317, %p318
      %p321 = scmp.ne.s32.totalorder %s304, %s320
      %p322 = scmp.eq.s32.totalorder %s34, 0
      %p323 = por %p321, %p322
      %p324 = scmp.le.s32.totalorder 1, %s28
      %p325 = scmp.lt.s32.totalorder %s28, 4
      %p326 = pnand %p324, %p325
      %p327 = pneg %p326
      // Predicated region
      $region9: #{tpu_custom_call.1} parent=5 // pred_check
        _
      $region10: #{tpu_custom_call.1} parent=5 // pred_check_branch
        %329 = sbr.rel (%p326) target = $region12
      $region11: #{tpu_custom_call.1} parent=5 // pred_region
        %s330 = ssub.s32 %s28, 1
        // Predicated region
        $region13: #{tpu_custom_call.1} parent=11 // pred_check
          %p331 = pneg %p75
        $region14: #{tpu_custom_call.1} parent=11 // pred_check_branch
          %333 = sbr.rel (%p331) target = $region16
        $region15: #{tpu_custom_call.1} parent=11 // pred_region
          _
        $region16: #{tpu_custom_call.1} parent=11 // pred_fallthru
          _
        // Predicated region
        $region17: #{tpu_custom_call.1} parent=11 // pred_check
          %p334 = pneg %p96
        $region18: #{tpu_custom_call.1} parent=11 // pred_check_branch
          %336 = sbr.rel (%p334) target = $region20
        $region19: #{tpu_custom_call.1} parent=11 // pred_region
          _
        $region20: #{tpu_custom_call.1} parent=11 // pred_fallthru
          _
        // Predicated region
        $region21: #{tpu_custom_call.1} parent=11 // pred_check
          %p337 = pneg %p117
        $region22: #{tpu_custom_call.1} parent=11 // pred_check_branch
          %339 = sbr.rel (%p337) target = $region24
        $region23: #{tpu_custom_call.1} parent=11 // pred_region
          _
        $region24: #{tpu_custom_call.1} parent=11 // pred_fallthru
          _
        // Predicated region
        $region25: #{tpu_custom_call.1} parent=11 // pred_check
          %p340 = pneg %p138
        $region26: #{tpu_custom_call.1} parent=11 // pred_check_branch
          %342 = sbr.rel (%p340) target = $region28
        $region27: #{tpu_custom_call.1} parent=11 // pred_region
          _
        $region28: #{tpu_custom_call.1} parent=11 // pred_fallthru
          _
        // Predicated region
        $region29: #{tpu_custom_call.1} parent=11 // pred_check
          %p343 = pneg %p159
        $region30: #{tpu_custom_call.1} parent=11 // pred_check_branch
          %345 = sbr.rel (%p343) target = $region32
        $region31: #{tpu_custom_call.1} parent=11 // pred_region
          _
        $region32: #{tpu_custom_call.1} parent=11 // pred_fallthru
          _
        // Predicated region
        $region33: #{tpu_custom_call.1} parent=11 // pred_check
          %p346 = pneg %p180
        $region34: #{tpu_custom_call.1} parent=11 // pred_check_branch
          %348 = sbr.rel (%p346) target = $region36
        $region35: #{tpu_custom_call.1} parent=11 // pred_region
          _
        $region36: #{tpu_custom_call.1} parent=11 // pred_fallthru
          _
        // Predicated region
        $region37: #{tpu_custom_call.1} parent=11 // pred_check
          %p349 = pneg %p201
        $region38: #{tpu_custom_call.1} parent=11 // pred_check_branch
          %351 = sbr.rel (%p349) target = $region40
        $region39: #{tpu_custom_call.1} parent=11 // pred_region
          %s353 = ssub.s32 1024, 1024
          %354 = vsyncadd [#allocation7], %s353
          %s355 = sshll.u32 [#allocation6], 4
          %s356 = int_to_ptr.vmem [resolvable:$true] %s355
          %361 = dma.hbm_to_vmem [thread:$0]  %s7, 1024, %s356, [#allocation7], 64, 64, 4
        $region40: #{tpu_custom_call.1} parent=11 // pred_fallthru
          _
        // Predicated region
        $region41: #{tpu_custom_call.1} parent=11 // pred_check
          %p362 = pneg %p222
        $region42: #{tpu_custom_call.1} parent=11 // pred_check_branch
          %364 = sbr.rel (%p362) target = $region44
        $region43: #{tpu_custom_call.1} parent=11 // pred_region
          _
        $region44: #{tpu_custom_call.1} parent=11 // pred_fallthru
          _
        // Predicated region
        $region45: #{tpu_custom_call.1} parent=11 // pred_check
          %p365 = pneg %p243
        $region46: #{tpu_custom_call.1} parent=11 // pred_check_branch
          %367 = sbr.rel (%p365) target = $region48
        $region47: #{tpu_custom_call.1} parent=11 // pred_region
          _
        $region48: #{tpu_custom_call.1} parent=11 // pred_fallthru
          _
        // Predicated region
        $region49: #{tpu_custom_call.1} parent=11 // pred_check
          %p368 = pneg %p264
        $region50: #{tpu_custom_call.1} parent=11 // pred_check_branch
          %370 = sbr.rel (%p368) target = $region52
        $region51: #{tpu_custom_call.1} parent=11 // pred_region
          _
        $region52: #{tpu_custom_call.1} parent=11 // pred_fallthru
          _
      $region12: #{tpu_custom_call.1} parent=5 // pred_fallthru
        _
      %p371 = scmp.lt.s32.totalorder %s28, 3
      // Predicated region
      $region53: #{tpu_custom_call.1} parent=5 // pred_check
        %p372 = pneg %p371
      $region54: #{tpu_custom_call.1} parent=5 // pred_check_branch
        %374 = sbr.rel (%p372) target = $region56
      $region55: #{tpu_custom_call.1} parent=5 // pred_region
        // Predicated region
        $region57: #{tpu_custom_call.1} parent=55 // pred_check
          %p375 = pneg %p48
        $region58: #{tpu_custom_call.1} parent=55 // pred_check_branch
          %377 = sbr.rel (%p375) target = $region60
        $region59: #{tpu_custom_call.1} parent=55 // pred_region
          %s378 = sand.u32 %s38, 1
          %s379 = scalar_lea.sflag [#allocation4], %s378
          %s380 = sand.u32 %s38, 1
          %s381 = smul.addr %s380, 8
          %s382 = scalar_lea.vmem [#allocation3], %s381
          %s383 = smul.u32 2, %s28
          %s385 = ssub.s32 128, 128
          %386 = vsyncadd %s379, %s385
          %s387 = smul.addr %s383, 64
          %s388 = scalar_lea.hbm %s0, %s387
          %s389 = sshll.u32 %s382, 4
          %s390 = int_to_ptr.vmem [resolvable:$true] %s389
          %395 = dma.hbm_to_vmem [thread:$0]  %s388, 128, %s390, %s379, 64, 64, 4
        $region60: #{tpu_custom_call.1} parent=55 // pred_fallthru
          _
      $region56: #{tpu_custom_call.1} parent=5 // pred_fallthru
        _
      %p396 = scmp.le.s32.totalorder 1, %s28
      %p397 = scmp.lt.s32.totalorder %s28, 4
      %p398 = pnand %p396, %p397
      %p399 = pneg %p398
      // Predicated region
      $region61: #{tpu_custom_call.1} parent=5 // pred_check
        _
      $region62: #{tpu_custom_call.1} parent=5 // pred_check_branch
        %401 = sbr.rel (%p398) target = $region64
      $region63: #{tpu_custom_call.1} parent=5 // pred_region
        %s402 = ssub.s32 %s28, 1
        %s403 = sand.u32 %s41, 1
        %s404 = scalar_lea.sflag [#allocation4], %s403
        %s405 = sand.u32 %s41, 1
        %s406 = smul.addr %s405, 8
        %s407 = scalar_lea.vmem [#allocation3], %s406
        // Predicated region
        $region65: #{tpu_custom_call.1} parent=63 // pred_check
          %p408 = pneg %p54
        $region66: #{tpu_custom_call.1} parent=63 // pred_check_branch
          %410 = sbr.rel (%p408) target = $region68
        $region67: #{tpu_custom_call.1} parent=63 // pred_region
          %411 = dma.done %s404, 128
        $region68: #{tpu_custom_call.1} parent=63 // pred_fallthru
          _
        // Predicated region
        $region69: #{tpu_custom_call.1} parent=63 // pred_check
          %p412 = pneg %p201
        $region70: #{tpu_custom_call.1} parent=63 // pred_check_branch
          %414 = sbr.rel (%p412) target = $region72
        $region71: #{tpu_custom_call.1} parent=63 // pred_region
          %415 = dma.done [#allocation7], 1024
        $region72: #{tpu_custom_call.1} parent=63 // pred_fallthru
          _
        %s416 = sand.u32 %s41, 1
        %s417 = scalar_lea.sflag [#allocation4], %s416
        %s418 = sand.u32 %s41, 1
        %s419 = smul.addr %s418, 8
        %s420 = scalar_lea.vmem [#allocation3], %s419
        %p421 = pneg %p54
        %p422 = pneg %p51
        %p423 = pneg %p75
        %p424 = pneg %p72
        %p425 = pneg %p96
        %p426 = pneg %p93
        %p427 = pneg %p117
        %p428 = pneg %p114
        %p429 = pneg %p138
        %p430 = pneg %p135
        %p431 = pneg %p159
        %p432 = pneg %p156
        %p433 = pneg %p180
        %p434 = pneg %p177
        %p435 = pneg %p201
        %p436 = pneg %p198
        %p437 = pneg %p222
        %p438 = pneg %p219
        %p439 = pneg %p243
        %p440 = pneg %p240
        %p441 = pneg %p264
        %p442 = pneg %p261
        %p443 = pneg %p290
        %p444 = pneg %p287
        %s445 = sand.u32 %s277, 1
        %s446 = scalar_lea.sflag [#allocation5], %s445
        %s447 = sand.u32 %s277, 1
        %s448 = smul.addr %s447, 16
        %s449 = scalar_lea.vmem [#allocation8], %s448
        %p450 = pneg %p316
        %p451 = pneg %p313
        %s452 = smul.u32 2, %s33
        %p453 = scmp.lt.s32.totalorder %s452, 5
        %s454 = scalar_select %p453, %s452, 5
        %s455 = smul.addr %s454, 8
        %s456 = scalar_lea.vmem %s12, %s455
        %s457 = smul.u32 2, %s33
        %s458 = smul.u32 2, %s33
        %s459 = smul.u32 2, %s33
        %p460 = scmp.lt.s32.totalorder %s459, 5
        %s461 = scalar_select %p460, %s459, 5
        %s462 = smul.addr %s461, 8
        %s463 = scalar_lea.vmem %s12, %s462
        %s464 = smul.u32 2, %s33
        %v466 = vld [vmem:[%s407] sm:$0xf]
        %v467 = vld [vmem:[%s407 + $0x4] sm:$0xf]
        %v468 = vld [vmem:[%s3] sm:$0xf]
        %v469 = vld [vmem:[%s3 + $0x4] sm:$0xf]
        %v470 = vld [vmem:[%s3 + $0x8] sm:$0xf]
        %v471 = vld [vmem:[%s3 + $0xc] sm:$0xf]
        %v472 = vld [vmem:[%s3 + $0x10] sm:$0xf]
        %v473 = vld [vmem:[%s3 + $0x14] sm:$0xf]
        %v474 = vld [vmem:[%s3 + $0x18] sm:$0xf]
        %v475 = vld [vmem:[%s3 + $0x1c] sm:$0xf]
        %v476 = vld [vmem:[%s3 + $0x20] sm:$0xf]
        %v477 = vld [vmem:[%s3 + $0x24] sm:$0xf]
        %v478 = vld [vmem:[%s3 + $0x28] sm:$0xf]
        %v479 = vld [vmem:[%s3 + $0x2c] sm:$0xf]
        %v480 = vld [vmem:[%s3 + $0x30] sm:$0xf]
        %v481 = vld [vmem:[%s3 + $0x34] sm:$0xf]
        %v482 = vld [vmem:[%s3 + $0x38] sm:$0xf]
        %v483 = vld [vmem:[%s3 + $0x3c] sm:$0xf]
        %v484 = vld [vmem:[%s4] sm:$0x1]
        %v486 = vlaneseq
        %v487 = vshrl.u32 %v486, 7
        %v488 = vsub.s32 0, %v487
        %v489 = vrot.slane %v484, %v488
        %v493 = vunpack.c.l.b16 %v466
        %v494 = vunpack.c.l.b16 %v467
        %v495 = vpack.c.b16 %v494, %v493
        %v513 = vunpack.c.l.b16 %v468
        %v514 = vunpack.c.l.b16 %v469
        %v515 = vunpack.c.l.b16 %v470
        %v516 = vunpack.c.l.b16 %v471
        %v517 = vunpack.c.l.b16 %v472
        %v518 = vunpack.c.l.b16 %v473
        %v519 = vunpack.c.l.b16 %v474
        %v520 = vunpack.c.l.b16 %v475
        %v521 = vunpack.c.l.b16 %v476
        %v522 = vunpack.c.l.b16 %v477
        %v523 = vunpack.c.l.b16 %v478
        %v524 = vunpack.c.l.b16 %v479
        %v525 = vunpack.c.l.b16 %v480
        %v526 = vunpack.c.l.b16 %v481
        %v527 = vunpack.c.l.b16 %v482
        %v528 = vunpack.c.l.b16 %v483
        %v529 = vpack.c.b16 %v514, %v513
        %v530 = vpack.c.b16 %v516, %v515
        %v531 = vpack.c.b16 %v518, %v517
        %v532 = vpack.c.b16 %v520, %v519
        %v533 = vpack.c.b16 %v522, %v521
        %v534 = vpack.c.b16 %v524, %v523
        %v535 = vpack.c.b16 %v526, %v525
        %v536 = vpack.c.b16 %v528, %v527
        %545 = vmatprep.subr.bf16.mxu0 0
        %546 = vmatpush1.bf16.msra.mxu0 %v536
        %547 = vmatprep.subr.bf16.mxu0 0
        %548 = vmatpush1.bf16.msra.mxu0 %v535
        %549 = vmatprep.subr.bf16.mxu0 0
        %550 = vmatpush1.bf16.msra.mxu0 %v534
        %551 = vmatprep.subr.bf16.mxu0 0
        %552 = vmatpush1.bf16.msra.mxu0 %v533
        %553 = vmatprep.subr.bf16.mxu0 0
        %554 = vmatpush1.bf16.msra.mxu0 %v532
        %555 = vmatprep.subr.bf16.mxu0 0
        %556 = vmatpush1.bf16.msra.mxu0 %v531
        %557 = vmatprep.subr.bf16.mxu0 0
        %558 = vmatpush1.bf16.msra.mxu0 %v530
        %559 = vmatprep.subr.bf16.mxu0 0
        %560 = vmatpush1.bf16.msra.mxu0 %v529
        %561 = vmatprep.subr.bf16.mxu0 0
        %562 = vmatpush2.bf16.msra.mxu0 0
        %563 = vmatprep.subr.bf16.mxu0 0
        %564 = vmatpush2.bf16.msra.mxu0 0
        %565 = vmatprep.subr.bf16.mxu0 0
        %566 = vmatpush2.bf16.msra.mxu0 0
        %567 = vmatprep.subr.bf16.mxu0 0
        %568 = vmatpush2.bf16.msra.mxu0 0
        %569 = vmatprep.subr.bf16.mxu0 0
        %570 = vmatpush2.bf16.msra.mxu0 0
        %571 = vmatprep.subr.bf16.mxu0 0
        %572 = vmatpush2.bf16.msra.mxu0 0
        %573 = vmatprep.subr.bf16.mxu0 0
        %574 = vmatpush2.bf16.msra.mxu0 0
        %575 = vmatprep.subr.bf16.mxu0 0
        %576 = vmatpush2.bf16.msra.mxu0 0
        %577 = vmatprep.mubr.bf16.mxu0 0
        %578 = vmatmul.mubr.bf16.gmra.mxu0 %v495
        %v579 = vpop.f32.mrf.mxu0
        %v580 = vadd.f32 %v489, %v579
        %v581 = vpop.f32.mrf.mxu0
        %v582 = vpop.f32.mrf.mxu0
        %v583 = vadd.f32 %v489, %v582
        %v584 = vpop.f32.mrf.mxu0
        %585 = vdwg.mxu0
        %v586 = vtanh.pop %v580
        %v587 = vtanh.pop %v583
        %v588 = vld [vmem:[%s5] sm:$0xf]
        %v589 = vld [vmem:[%s5 + $0x4] sm:$0xf]
        %v590 = vld [vmem:[%s5 + $0x8] sm:$0xf]
        %v591 = vld [vmem:[%s5 + $0xc] sm:$0xf]
        %v592 = vld [vmem:[%s5 + $0x10] sm:$0xf]
        %v593 = vld [vmem:[%s5 + $0x14] sm:$0xf]
        %v594 = vld [vmem:[%s5 + $0x18] sm:$0xf]
        %v595 = vld [vmem:[%s5 + $0x1c] sm:$0xf]
        %v596 = vld [vmem:[%s5 + $0x20] sm:$0xf]
        %v597 = vld [vmem:[%s5 + $0x24] sm:$0xf]
        %v598 = vld [vmem:[%s5 + $0x28] sm:$0xf]
        %v599 = vld [vmem:[%s5 + $0x2c] sm:$0xf]
        %v600 = vld [vmem:[%s5 + $0x30] sm:$0xf]
        %v601 = vld [vmem:[%s5 + $0x34] sm:$0xf]
        %v602 = vld [vmem:[%s5 + $0x38] sm:$0xf]
        %v603 = vld [vmem:[%s5 + $0x3c] sm:$0xf]
        %v604 = vld [vmem:[%s6] sm:$0x1]
        %v606 = vlaneseq
        %v607 = vshrl.u32 %v606, 7
        %v608 = vsub.s32 0, %v607
        %v609 = vrot.slane %v604, %v608
        %v627 = vunpack.c.l.b16 %v588
        %v628 = vunpack.c.l.b16 %v589
        %v629 = vunpack.c.l.b16 %v590
        %v630 = vunpack.c.l.b16 %v591
        %v631 = vunpack.c.l.b16 %v592
        %v632 = vunpack.c.l.b16 %v593
        %v633 = vunpack.c.l.b16 %v594
        %v634 = vunpack.c.l.b16 %v595
        %v635 = vunpack.c.l.b16 %v596
        %v636 = vunpack.c.l.b16 %v597
        %v637 = vunpack.c.l.b16 %v598
        %v638 = vunpack.c.l.b16 %v599
        %v639 = vunpack.c.l.b16 %v600
        %v640 = vunpack.c.l.b16 %v601
        %v641 = vunpack.c.l.b16 %v602
        %v642 = vunpack.c.l.b16 %v603
        %v643 = vpack.c.b16 %v628, %v627
        %v644 = vpack.c.b16 %v630, %v629
        %v645 = vpack.c.b16 %v632, %v631
        %v646 = vpack.c.b16 %v634, %v633
        %v647 = vpack.c.b16 %v636, %v635
        %v648 = vpack.c.b16 %v638, %v637
        %v649 = vpack.c.b16 %v640, %v639
        %v650 = vpack.c.b16 %v642, %v641
        %659 = vmatprep.subr.bf16.mxu0 0
        %660 = vmatpush1.bf16.msra.mxu0 %v650
        %661 = vmatprep.subr.bf16.mxu0 0
        %662 = vmatpush1.bf16.msra.mxu0 %v649
        %663 = vmatprep.subr.bf16.mxu0 0
        %664 = vmatpush1.bf16.msra.mxu0 %v648
        %665 = vmatprep.subr.bf16.mxu0 0
        %666 = vmatpush1.bf16.msra.mxu0 %v647
        %667 = vmatprep.subr.bf16.mxu0 0
        %668 = vmatpush1.bf16.msra.mxu0 %v646
        %669 = vmatprep.subr.bf16.mxu0 0
        %670 = vmatpush1.bf16.msra.mxu0 %v645
        %671 = vmatprep.subr.bf16.mxu0 0
        %672 = vmatpush1.bf16.msra.mxu0 %v644
        %673 = vmatprep.subr.bf16.mxu0 0
        %674 = vmatpush1.bf16.msra.mxu0 %v643
        %675 = vmatprep.subr.bf16.mxu0 0
        %676 = vmatpush2.bf16.msra.mxu0 0
        %677 = vmatprep.subr.bf16.mxu0 0
        %678 = vmatpush2.bf16.msra.mxu0 0
        %679 = vmatprep.subr.bf16.mxu0 0
        %680 = vmatpush2.bf16.msra.mxu0 0
        %681 = vmatprep.subr.bf16.mxu0 0
        %682 = vmatpush2.bf16.msra.mxu0 0
        %683 = vmatprep.subr.bf16.mxu0 0
        %684 = vmatpush2.bf16.msra.mxu0 0
        %685 = vmatprep.subr.bf16.mxu0 0
        %686 = vmatpush2.bf16.msra.mxu0 0
        %687 = vmatprep.subr.bf16.mxu0 0
        %688 = vmatpush2.bf16.msra.mxu0 0
        %689 = vmatprep.subr.bf16.mxu0 0
        %690 = vmatpush2.bf16.msra.mxu0 0
        %691 = vmatprep.mubr.bf16.mxu0 0
        %692 = vmatmul.mubr.bf16.gmra.mxu0 %v495
        %v693 = vpop.f32.mrf.mxu0
        %v694 = vadd.f32 %v609, %v693
        %v695 = vpop.f32.mrf.mxu0
        %v696 = vpop.f32.mrf.mxu0
        %v697 = vadd.f32 %v609, %v696
        %v698 = vpop.f32.mrf.mxu0
        %699 = vdwg.mxu0
        %v700 = vpack.c.bf16 %v697, %v694
        %v701 = vlaneseq
        %v702 = vand.u32 %v701, 127
        %vm703 = vcmp.lt.s32.totalorder %v702, 36
        %v704 = vsel %vm703, 0.0, -1e+30
        %v705 = vld [vmem:[%s1] sm:$0xf]
        %v706 = vld [vmem:[%s1 + $0x4] sm:$0xf]
        %v707 = vld [vmem:[%s1 + $0x8] sm:$0xf]
        %v708 = vld [vmem:[%s1 + $0xc] sm:$0xf]
        %v709 = vld [vmem:[%s2] sm:$0xf]
        %v710 = vld [vmem:[%s2 + $0x4] sm:$0xf]
        %v711 = vld [vmem:[%s2 + $0x8] sm:$0xf]
        %v712 = vld [vmem:[%s2 + $0xc] sm:$0xf]
        %v713 = vld [vmem:[%s2 + $0x10] sm:$0xf]
        %v718 = vunpack.c.l.b16 %v705
        %v719 = vunpack.c.l.b16 %v706
        %v720 = vunpack.c.l.b16 %v707
        %v721 = vunpack.c.l.b16 %v708
        %v722 = vpack.c.b16 %v719, %v718
        %v723 = vpack.c.b16 %v721, %v720
        %vm726 = vcmask 261120
        %v728 = vsel %vm726, %v700, 0
        %730 = vmatprep.subr.bf16.mxu0 0
        %731 = vmatpush1.bf16.msra.mxu0 0
        %732 = vmatprep.subr.bf16.mxu0 0
        %733 = vmatpush1.bf16.msra.mxu0 0
        %734 = vmatprep.subr.bf16.mxu0 0
        %735 = vmatpush1.bf16.msra.mxu0 0
        %736 = vmatprep.subr.bf16.mxu0 0
        %737 = vmatpush1.bf16.msra.mxu0 0
        %738 = vmatprep.subr.bf16.mxu0 0
        %739 = vmatpush1.bf16.msra.mxu0 0
        %740 = vmatprep.subr.bf16.mxu0 0
        %741 = vmatpush1.bf16.msra.mxu0 0
        %742 = vmatprep.subr.bf16.mxu0 0
        %743 = vmatpush1.bf16.msra.mxu0 %v723
        %744 = vmatprep.subr.bf16.mxu0 0
        %745 = vmatpush1.bf16.msra.mxu0 %v722
        %746 = vmatprep.subr.bf16.mxu0 0
        %747 = vmatpush2.bf16.msra.mxu0 0
        %748 = vmatprep.subr.bf16.mxu0 0
        %749 = vmatpush2.bf16.msra.mxu0 0
        %750 = vmatprep.subr.bf16.mxu0 0
        %751 = vmatpush2.bf16.msra.mxu0 0
        %752 = vmatprep.subr.bf16.mxu0 0
        %753 = vmatpush2.bf16.msra.mxu0 0
        %754 = vmatprep.subr.bf16.mxu0 0
        %755 = vmatpush2.bf16.msra.mxu0 0
        %756 = vmatprep.subr.bf16.mxu0 0
        %757 = vmatpush2.bf16.msra.mxu0 0
        %758 = vmatprep.subr.bf16.mxu0 0
        %759 = vmatpush2.bf16.msra.mxu0 0
        %760 = vmatprep.subr.bf16.mxu0 0
        %761 = vmatpush2.bf16.msra.mxu0 0
        %762 = vmatprep.mubr.bf16.mxu0 0
        %763 = vmatmul.mubr.bf16.gmra.mxu0 %v728
        %v764 = vpop.f32.mrf.mxu0
        %v765 = vadd.f32 0.0, %v764
        %v766 = vpop.f32.mrf.mxu0
        %v767 = vpop.f32.mrf.mxu0
        %v768 = vadd.f32 0.0, %v767
        %v769 = vpop.f32.mrf.mxu0
        %770 = vdwg.mxu0
        %v771 = vmul.f32 %v765, 0.17677669
        %v772 = vmul.f32 %v768, 0.17677669
        %v773 = vadd.f32 %v771, %v704
        %v774 = vadd.f32 %v772, %v704
        %vm775 = vcmask 326656
        %v776 = vsel %vm775, %v773, -inf
        %777 = vmax.xlane.f32.xlu0 %v776
        %v778 = vpop.xlane.xlu0 %777
        %v779 = vsel %vm775, %v774, -inf
        %780 = vmax.xlane.f32.xlu0 %v779
        %v781 = vpop.xlane.xlu0 %780
        %v782 = vsub.f32 %v773, %v778
        %v783 = vsub.f32 %v774, %v781
        %v784 = vmul.f32 %v782, 1.442695
        %v785 = vpow.pop %v784
        %v786 = vmul.f32 %v783, 1.442695
        %v787 = vpow.pop %v786
        %v788 = vsel %vm775, %v785, 0.0
        %789 = vadd.xlane.f32.xlu0 %v788
        %v790 = vpop.xlane.xlu0 %789
        %v791 = vsel %vm775, %v787, 0.0
        %792 = vadd.xlane.f32.xlu0 %v791
        %v793 = vpop.xlane.xlu0 %792
        %v794 = vrcp.pop %v790
        %v795 = vrcp.pop %v793
        %v796 = vmul.f32 %v785, %v794
        %v797 = vmul.f32 %v787, %v795
        %v798 = vpack.c.bf16 %v797, %v796
        %v804 = vunpack.c.l.b16 %v709
        %v805 = vunpack.c.l.b16 %v710
        %v806 = vunpack.c.l.b16 %v711
        %v807 = vunpack.c.l.b16 %v712
        %v808 = vunpack.c.l.b16 %v713
        %v809 = vpack.c.b16 %v805, %v804
        %v810 = vpack.c.b16 %v807, %v806
        %v811 = vpack.c.b16 %v808, %v808
        %v815 = vsel %vm775, %v798, 0
        %vm817 = vcmask 1043456
        %v819 = vsel %vm817, %v811, 0
        %821 = vmatprep.subr.bf16.mxu0 0
        %822 = vmatpush1.bf16.msra.mxu0 0
        %823 = vmatprep.subr.bf16.mxu0 0
        %824 = vmatpush1.bf16.msra.mxu0 0
        %825 = vmatprep.subr.bf16.mxu0 0
        %826 = vmatpush1.bf16.msra.mxu0 0
        %827 = vmatprep.subr.bf16.mxu0 0
        %828 = vmatpush1.bf16.msra.mxu0 0
        %829 = vmatprep.subr.bf16.mxu0 0
        %830 = vmatpush1.bf16.msra.mxu0 0
        %831 = vmatprep.subr.bf16.mxu0 0
        %832 = vmatpush1.bf16.msra.mxu0 %v819
        %833 = vmatprep.subr.bf16.mxu0 0
        %834 = vmatpush1.bf16.msra.mxu0 %v810
        %835 = vmatprep.subr.bf16.mxu0 0
        %836 = vmatpush1.bf16.msra.mxu0 %v809
        %837 = vmatprep.subr.bf16.mxu0 0
        %838 = vmatpush2.bf16.msra.mxu0 0
        %839 = vmatprep.subr.bf16.mxu0 0
        %840 = vmatpush2.bf16.msra.mxu0 0
        %841 = vmatprep.subr.bf16.mxu0 0
        %842 = vmatpush2.bf16.msra.mxu0 0
        %843 = vmatprep.subr.bf16.mxu0 0
        %844 = vmatpush2.bf16.msra.mxu0 0
        %845 = vmatprep.subr.bf16.mxu0 0
        %846 = vmatpush2.bf16.msra.mxu0 0
        %847 = vmatprep.subr.bf16.mxu0 0
        %848 = vmatpush2.bf16.msra.mxu0 0
        %849 = vmatprep.subr.bf16.mxu0 0
        %850 = vmatpush2.bf16.msra.mxu0 0
        %851 = vmatprep.subr.bf16.mxu0 0
        %852 = vmatpush2.bf16.msra.mxu0 0
        %853 = vmatprep.mubr.bf16.mxu0 0
        %854 = vmatmul.mubr.bf16.gmra.mxu0 %v815
        %v855 = vpop.f32.mrf.mxu0
        %v856 = vadd.f32 0.0, %v855
        %v857 = vpop.f32.mrf.mxu0
        %v858 = vpop.f32.mrf.mxu0
        %v859 = vadd.f32 0.0, %v858
        %v860 = vpop.f32.mrf.mxu0
        %861 = vdwg.mxu0
        %v862 = vld [vmem:[%s1 + $0x10] sm:$0xf]
        %v863 = vld [vmem:[%s1 + $0x14] sm:$0xf]
        %v864 = vld [vmem:[%s1 + $0x18] sm:$0xf]
        %v865 = vld [vmem:[%s1 + $0x1c] sm:$0xf]
        %867 = vrot.lane.b32.xlu0 %v700, 96
        %v868 = vpop.permute.xlu0 %867
        %v873 = vunpack.c.l.b16 %v862
        %v874 = vunpack.c.l.b16 %v863
        %v875 = vunpack.c.l.b16 %v864
        %v876 = vunpack.c.l.b16 %v865
        %v877 = vpack.c.b16 %v874, %v873
        %v878 = vpack.c.b16 %v876, %v875
        %v882 = vsel %vm726, %v868, 0
        %884 = vmatprep.subr.bf16.mxu0 0
        %885 = vmatpush1.bf16.msra.mxu0 0
        %886 = vmatprep.subr.bf16.mxu0 0
        %887 = vmatpush1.bf16.msra.mxu0 0
        %888 = vmatprep.subr.bf16.mxu0 0
        %889 = vmatpush1.bf16.msra.mxu0 0
        %890 = vmatprep.subr.bf16.mxu0 0
        %891 = vmatpush1.bf16.msra.mxu0 0
        %892 = vmatprep.subr.bf16.mxu0 0
        %893 = vmatpush1.bf16.msra.mxu0 0
        %894 = vmatprep.subr.bf16.mxu0 0
        %895 = vmatpush1.bf16.msra.mxu0 0
        %896 = vmatprep.subr.bf16.mxu0 0
        %897 = vmatpush1.bf16.msra.mxu0 %v878
        %898 = vmatprep.subr.bf16.mxu0 0
        %899 = vmatpush1.bf16.msra.mxu0 %v877
        %900 = vmatprep.subr.bf16.mxu0 0
        %901 = vmatpush2.bf16.msra.mxu0 0
        %902 = vmatprep.subr.bf16.mxu0 0
        %903 = vmatpush2.bf16.msra.mxu0 0
        %904 = vmatprep.subr.bf16.mxu0 0
        %905 = vmatpush2.bf16.msra.mxu0 0
        %906 = vmatprep.subr.bf16.mxu0 0
        %907 = vmatpush2.bf16.msra.mxu0 0
        %908 = vmatprep.subr.bf16.mxu0 0
        %909 = vmatpush2.bf16.msra.mxu0 0
        %910 = vmatprep.subr.bf16.mxu0 0
        %911 = vmatpush2.bf16.msra.mxu0 0
        %912 = vmatprep.subr.bf16.mxu0 0
        %913 = vmatpush2.bf16.msra.mxu0 0
        %914 = vmatprep.subr.bf16.mxu0 0
        %915 = vmatpush2.bf16.msra.mxu0 0
        %916 = vmatprep.mubr.bf16.mxu0 0
        %917 = vmatmul.mubr.bf16.gmra.mxu0 %v882
        %v918 = vpop.f32.mrf.mxu0
        %v919 = vadd.f32 0.0, %v918
        %v920 = vpop.f32.mrf.mxu0
        %v921 = vpop.f32.mrf.mxu0
        %v922 = vadd.f32 0.0, %v921
        %v923 = vpop.f32.mrf.mxu0
        %924 = vdwg.mxu0
        %v925 = vmul.f32 %v919, 0.17677669
        %v926 = vmul.f32 %v922, 0.17677669
        %v927 = vadd.f32 %v925, %v704
        %v928 = vadd.f32 %v926, %v704
        %v929 = vsel %vm775, %v927, -inf
        %930 = vmax.xlane.f32.xlu0 %v929
        %v931 = vpop.xlane.xlu0 %930
        %v932 = vsel %vm775, %v928, -inf
        %933 = vmax.xlane.f32.xlu0 %v932
        %v934 = vpop.xlane.xlu0 %933
        %v935 = vsub.f32 %v927, %v931
        %v936 = vsub.f32 %v928, %v934
        %v937 = vmul.f32 %v935, 1.442695
        %v938 = vpow.pop %v937
        %v939 = vmul.f32 %v936, 1.442695
        %v940 = vpow.pop %v939
        %v941 = vsel %vm775, %v938, 0.0
        %942 = vadd.xlane.f32.xlu0 %v941
        %v943 = vpop.xlane.xlu0 %942
        %v944 = vsel %vm775, %v940, 0.0
        %945 = vadd.xlane.f32.xlu0 %v944
        %v946 = vpop.xlane.xlu0 %945
        %v947 = vrcp.pop %v943
        %v948 = vrcp.pop %v946
        %v949 = vmul.f32 %v938, %v947
        %v950 = vmul.f32 %v940, %v948
        %v951 = vpack.c.bf16 %v950, %v949
        %952 = vrot.lane.b32.xlu0 %v809, 96
        %v953 = vpop.permute.xlu0 %952
        %954 = vrot.lane.b32.xlu0 %v810, 96
        %v955 = vpop.permute.xlu0 %954
        %956 = vrot.lane.b32.xlu0 %v811, 96
        %v957 = vpop.permute.xlu0 %956
        %v961 = vsel %vm775, %v951, 0
        %v964 = vsel %vm817, %v957, 0
        %966 = vmatprep.subr.bf16.mxu0 0
        %967 = vmatpush1.bf16.msra.mxu0 0
        %968 = vmatprep.subr.bf16.mxu0 0
        %969 = vmatpush1.bf16.msra.mxu0 0
        %970 = vmatprep.subr.bf16.mxu0 0
        %971 = vmatpush1.bf16.msra.mxu0 0
        %972 = vmatprep.subr.bf16.mxu0 0
        %973 = vmatpush1.bf16.msra.mxu0 0
        %974 = vmatprep.subr.bf16.mxu0 0
        %975 = vmatpush1.bf16.msra.mxu0 0
        %976 = vmatprep.subr.bf16.mxu0 0
        %977 = vmatpush1.bf16.msra.mxu0 %v964
        %978 = vmatprep.subr.bf16.mxu0 0
        %979 = vmatpush1.bf16.msra.mxu0 %v955
        %980 = vmatprep.subr.bf16.mxu0 0
        %981 = vmatpush1.bf16.msra.mxu0 %v953
        %982 = vmatprep.subr.bf16.mxu0 0
        %983 = vmatpush2.bf16.msra.mxu0 0
        %984 = vmatprep.subr.bf16.mxu0 0
        %985 = vmatpush2.bf16.msra.mxu0 0
        %986 = vmatprep.subr.bf16.mxu0 0
        %987 = vmatpush2.bf16.msra.mxu0 0
        %988 = vmatprep.subr.bf16.mxu0 0
        %989 = vmatpush2.bf16.msra.mxu0 0
        %990 = vmatprep.subr.bf16.mxu0 0
        %991 = vmatpush2.bf16.msra.mxu0 0
        %992 = vmatprep.subr.bf16.mxu0 0
        %993 = vmatpush2.bf16.msra.mxu0 0
        %994 = vmatprep.subr.bf16.mxu0 0
        %995 = vmatpush2.bf16.msra.mxu0 0
        %996 = vmatprep.subr.bf16.mxu0 0
        %997 = vmatpush2.bf16.msra.mxu0 0
        %998 = vmatprep.mubr.bf16.mxu0 0
        %999 = vmatmul.mubr.bf16.gmra.mxu0 %v961
        %v1000 = vpop.f32.mrf.mxu0
        %v1001 = vadd.f32 0.0, %v1000
        %v1002 = vpop.f32.mrf.mxu0
        %v1003 = vpop.f32.mrf.mxu0
        %v1004 = vadd.f32 0.0, %v1003
        %v1005 = vpop.f32.mrf.mxu0
        %1006 = vdwg.mxu0
        %v1007 = vld [vmem:[%s1 + $0x20] sm:$0xf]
        %v1008 = vld [vmem:[%s1 + $0x24] sm:$0xf]
        %v1009 = vld [vmem:[%s1 + $0x28] sm:$0xf]
        %v1010 = vld [vmem:[%s1 + $0x2c] sm:$0xf]
        %1011 = vrot.lane.b32.xlu0 %v700, 64
        %v1012 = vpop.permute.xlu0 %1011
        %v1017 = vunpack.c.l.b16 %v1007
        %v1018 = vunpack.c.l.b16 %v1008
        %v1019 = vunpack.c.l.b16 %v1009
        %v1020 = vunpack.c.l.b16 %v1010
        %v1021 = vpack.c.b16 %v1018, %v1017
        %v1022 = vpack.c.b16 %v1020, %v1019
        %v1026 = vsel %vm726, %v1012, 0
        %1028 = vmatprep.subr.bf16.mxu0 0
        %1029 = vmatpush1.bf16.msra.mxu0 0
        %1030 = vmatprep.subr.bf16.mxu0 0
        %1031 = vmatpush1.bf16.msra.mxu0 0
        %1032 = vmatprep.subr.bf16.mxu0 0
        %1033 = vmatpush1.bf16.msra.mxu0 0
        %1034 = vmatprep.subr.bf16.mxu0 0
        %1035 = vmatpush1.bf16.msra.mxu0 0
        %1036 = vmatprep.subr.bf16.mxu0 0
        %1037 = vmatpush1.bf16.msra.mxu0 0
        %1038 = vmatprep.subr.bf16.mxu0 0
        %1039 = vmatpush1.bf16.msra.mxu0 0
        %1040 = vmatprep.subr.bf16.mxu0 0
        %1041 = vmatpush1.bf16.msra.mxu0 %v1022
        %1042 = vmatprep.subr.bf16.mxu0 0
        %1043 = vmatpush1.bf16.msra.mxu0 %v1021
        %1044 = vmatprep.subr.bf16.mxu0 0
        %1045 = vmatpush2.bf16.msra.mxu0 0
        %1046 = vmatprep.subr.bf16.mxu0 0
        %1047 = vmatpush2.bf16.msra.mxu0 0
        %1048 = vmatprep.subr.bf16.mxu0 0
        %1049 = vmatpush2.bf16.msra.mxu0 0
        %1050 = vmatprep.subr.bf16.mxu0 0
        %1051 = vmatpush2.bf16.msra.mxu0 0
        %1052 = vmatprep.subr.bf16.mxu0 0
        %1053 = vmatpush2.bf16.msra.mxu0 0
        %1054 = vmatprep.subr.bf16.mxu0 0
        %1055 = vmatpush2.bf16.msra.mxu0 0
        %1056 = vmatprep.subr.bf16.mxu0 0
        %1057 = vmatpush2.bf16.msra.mxu0 0
        %1058 = vmatprep.subr.bf16.mxu0 0
        %1059 = vmatpush2.bf16.msra.mxu0 0
        %1060 = vmatprep.mubr.bf16.mxu0 0
        %1061 = vmatmul.mubr.bf16.gmra.mxu0 %v1026
        %v1062 = vpop.f32.mrf.mxu0
        %v1063 = vadd.f32 0.0, %v1062
        %v1064 = vpop.f32.mrf.mxu0
        %v1065 = vpop.f32.mrf.mxu0
        %v1066 = vadd.f32 0.0, %v1065
        %v1067 = vpop.f32.mrf.mxu0
        %1068 = vdwg.mxu0
        %v1069 = vmul.f32 %v1063, 0.17677669
        %v1070 = vmul.f32 %v1066, 0.17677669
        %v1071 = vadd.f32 %v1069, %v704
        %v1072 = vadd.f32 %v1070, %v704
        %v1073 = vsel %vm775, %v1071, -inf
        %1074 = vmax.xlane.f32.xlu0 %v1073
        %v1075 = vpop.xlane.xlu0 %1074
        %v1076 = vsel %vm775, %v1072, -inf
        %1077 = vmax.xlane.f32.xlu0 %v1076
        %v1078 = vpop.xlane.xlu0 %1077
        %v1079 = vsub.f32 %v1071, %v1075
        %v1080 = vsub.f32 %v1072, %v1078
        %v1081 = vmul.f32 %v1079, 1.442695
        %v1082 = vpow.pop %v1081
        %v1083 = vmul.f32 %v1080, 1.442695
        %v1084 = vpow.pop %v1083
        %v1085 = vsel %vm775, %v1082, 0.0
        %1086 = vadd.xlane.f32.xlu0 %v1085
        %v1087 = vpop.xlane.xlu0 %1086
        %v1088 = vsel %vm775, %v1084, 0.0
        %1089 = vadd.xlane.f32.xlu0 %v1088
        %v1090 = vpop.xlane.xlu0 %1089
        %v1091 = vrcp.pop %v1087
        %v1092 = vrcp.pop %v1090
        %v1093 = vmul.f32 %v1082, %v1091
        %v1094 = vmul.f32 %v1084, %v1092
        %v1095 = vpack.c.bf16 %v1094, %v1093
        %1096 = vrot.lane.b32.xlu0 %v809, 64
        %v1097 = vpop.permute.xlu0 %1096
        %1098 = vrot.lane.b32.xlu0 %v810, 64
        %v1099 = vpop.permute.xlu0 %1098
        %1100 = vrot.lane.b32.xlu0 %v811, 64
        %v1101 = vpop.permute.xlu0 %1100
        %v1105 = vsel %vm775, %v1095, 0
        %v1108 = vsel %vm817, %v1101, 0
        %1110 = vmatprep.subr.bf16.mxu0 0
        %1111 = vmatpush1.bf16.msra.mxu0 0
        %1112 = vmatprep.subr.bf16.mxu0 0
        %1113 = vmatpush1.bf16.msra.mxu0 0
        %1114 = vmatprep.subr.bf16.mxu0 0
        %1115 = vmatpush1.bf16.msra.mxu0 0
        %1116 = vmatprep.subr.bf16.mxu0 0
        %1117 = vmatpush1.bf16.msra.mxu0 0
        %1118 = vmatprep.subr.bf16.mxu0 0
        %1119 = vmatpush1.bf16.msra.mxu0 0
        %1120 = vmatprep.subr.bf16.mxu0 0
        %1121 = vmatpush1.bf16.msra.mxu0 %v1108
        %1122 = vmatprep.subr.bf16.mxu0 0
        %1123 = vmatpush1.bf16.msra.mxu0 %v1099
        %1124 = vmatprep.subr.bf16.mxu0 0
        %1125 = vmatpush1.bf16.msra.mxu0 %v1097
        %1126 = vmatprep.subr.bf16.mxu0 0
        %1127 = vmatpush2.bf16.msra.mxu0 0
        %1128 = vmatprep.subr.bf16.mxu0 0
        %1129 = vmatpush2.bf16.msra.mxu0 0
        %1130 = vmatprep.subr.bf16.mxu0 0
        %1131 = vmatpush2.bf16.msra.mxu0 0
        %1132 = vmatprep.subr.bf16.mxu0 0
        %1133 = vmatpush2.bf16.msra.mxu0 0
        %1134 = vmatprep.subr.bf16.mxu0 0
        %1135 = vmatpush2.bf16.msra.mxu0 0
        %1136 = vmatprep.subr.bf16.mxu0 0
        %1137 = vmatpush2.bf16.msra.mxu0 0
        %1138 = vmatprep.subr.bf16.mxu0 0
        %1139 = vmatpush2.bf16.msra.mxu0 0
        %1140 = vmatprep.subr.bf16.mxu0 0
        %1141 = vmatpush2.bf16.msra.mxu0 0
        %1142 = vmatprep.mubr.bf16.mxu0 0
        %1143 = vmatmul.mubr.bf16.gmra.mxu0 %v1105
        %v1144 = vpop.f32.mrf.mxu0
        %v1145 = vadd.f32 0.0, %v1144
        %v1146 = vpop.f32.mrf.mxu0
        %v1147 = vpop.f32.mrf.mxu0
        %v1148 = vadd.f32 0.0, %v1147
        %v1149 = vpop.f32.mrf.mxu0
        %1150 = vdwg.mxu0
        %v1151 = vld [vmem:[%s1 + $0x30] sm:$0xf]
        %v1152 = vld [vmem:[%s1 + $0x34] sm:$0xf]
        %v1153 = vld [vmem:[%s1 + $0x38] sm:$0xf]
        %v1154 = vld [vmem:[%s1 + $0x3c] sm:$0xf]
        %1155 = vrot.lane.b32.xlu0 %v700, 32
        %v1156 = vpop.permute.xlu0 %1155
        %v1161 = vunpack.c.l.b16 %v1151
        %v1162 = vunpack.c.l.b16 %v1152
        %v1163 = vunpack.c.l.b16 %v1153
        %v1164 = vunpack.c.l.b16 %v1154
        %v1165 = vpack.c.b16 %v1162, %v1161
        %v1166 = vpack.c.b16 %v1164, %v1163
        %v1170 = vsel %vm726, %v1156, 0
        %1172 = vmatprep.subr.bf16.mxu0 0
        %1173 = vmatpush1.bf16.msra.mxu0 0
        %1174 = vmatprep.subr.bf16.mxu0 0
        %1175 = vmatpush1.bf16.msra.mxu0 0
        %1176 = vmatprep.subr.bf16.mxu0 0
        %1177 = vmatpush1.bf16.msra.mxu0 0
        %1178 = vmatprep.subr.bf16.mxu0 0
        %1179 = vmatpush1.bf16.msra.mxu0 0
        %1180 = vmatprep.subr.bf16.mxu0 0
        %1181 = vmatpush1.bf16.msra.mxu0 0
        %1182 = vmatprep.subr.bf16.mxu0 0
        %1183 = vmatpush1.bf16.msra.mxu0 0
        %1184 = vmatprep.subr.bf16.mxu0 0
        %1185 = vmatpush1.bf16.msra.mxu0 %v1166
        %1186 = vmatprep.subr.bf16.mxu0 0
        %1187 = vmatpush1.bf16.msra.mxu0 %v1165
        %1188 = vmatprep.subr.bf16.mxu0 0
        %1189 = vmatpush2.bf16.msra.mxu0 0
        %1190 = vmatprep.subr.bf16.mxu0 0
        %1191 = vmatpush2.bf16.msra.mxu0 0
        %1192 = vmatprep.subr.bf16.mxu0 0
        %1193 = vmatpush2.bf16.msra.mxu0 0
        %1194 = vmatprep.subr.bf16.mxu0 0
        %1195 = vmatpush2.bf16.msra.mxu0 0
        %1196 = vmatprep.subr.bf16.mxu0 0
        %1197 = vmatpush2.bf16.msra.mxu0 0
        %1198 = vmatprep.subr.bf16.mxu0 0
        %1199 = vmatpush2.bf16.msra.mxu0 0
        %1200 = vmatprep.subr.bf16.mxu0 0
        %1201 = vmatpush2.bf16.msra.mxu0 0
        %1202 = vmatprep.subr.bf16.mxu0 0
        %1203 = vmatpush2.bf16.msra.mxu0 0
        %1204 = vmatprep.mubr.bf16.mxu0 0
        %1205 = vmatmul.mubr.bf16.gmra.mxu0 %v1170
        %v1206 = vpop.f32.mrf.mxu0
        %v1207 = vadd.f32 0.0, %v1206
        %v1208 = vpop.f32.mrf.mxu0
        %v1209 = vpop.f32.mrf.mxu0
        %v1210 = vadd.f32 0.0, %v1209
        %v1211 = vpop.f32.mrf.mxu0
        %1212 = vdwg.mxu0
        %v1213 = vmul.f32 %v1207, 0.17677669
        %v1214 = vmul.f32 %v1210, 0.17677669
        %v1215 = vadd.f32 %v1213, %v704
        %v1216 = vadd.f32 %v1214, %v704
        %v1217 = vsel %vm775, %v1215, -inf
        %1218 = vmax.xlane.f32.xlu0 %v1217
        %v1219 = vpop.xlane.xlu0 %1218
        %v1220 = vsel %vm775, %v1216, -inf
        %1221 = vmax.xlane.f32.xlu0 %v1220
        %v1222 = vpop.xlane.xlu0 %1221
        %v1223 = vsub.f32 %v1215, %v1219
        %v1224 = vsub.f32 %v1216, %v1222
        %v1225 = vmul.f32 %v1223, 1.442695
        %v1226 = vpow.pop %v1225
        %v1227 = vmul.f32 %v1224, 1.442695
        %v1228 = vpow.pop %v1227
        %v1229 = vsel %vm775, %v1226, 0.0
        %1230 = vadd.xlane.f32.xlu0 %v1229
        %v1231 = vpop.xlane.xlu0 %1230
        %v1232 = vsel %vm775, %v1228, 0.0
        %1233 = vadd.xlane.f32.xlu0 %v1232
        %v1234 = vpop.xlane.xlu0 %1233
        %v1235 = vrcp.pop %v1231
        %v1236 = vrcp.pop %v1234
        %v1237 = vmul.f32 %v1226, %v1235
        %v1238 = vmul.f32 %v1228, %v1236
        %v1239 = vpack.c.bf16 %v1238, %v1237
        %1240 = vrot.lane.b32.xlu0 %v809, 32
        %v1241 = vpop.permute.xlu0 %1240
        %1242 = vrot.lane.b32.xlu0 %v810, 32
        %v1243 = vpop.permute.xlu0 %1242
        %1244 = vrot.lane.b32.xlu0 %v811, 32
        %v1245 = vpop.permute.xlu0 %1244
        %v1249 = vsel %vm775, %v1239, 0
        %v1252 = vsel %vm817, %v1245, 0
        %1254 = vmatprep.subr.bf16.mxu0 0
        %1255 = vmatpush1.bf16.msra.mxu0 0
        %1256 = vmatprep.subr.bf16.mxu0 0
        %1257 = vmatpush1.bf16.msra.mxu0 0
        %1258 = vmatprep.subr.bf16.mxu0 0
        %1259 = vmatpush1.bf16.msra.mxu0 0
        %1260 = vmatprep.subr.bf16.mxu0 0
        %1261 = vmatpush1.bf16.msra.mxu0 0
        %1262 = vmatprep.subr.bf16.mxu0 0
        %1263 = vmatpush1.bf16.msra.mxu0 0
        %1264 = vmatprep.subr.bf16.mxu0 0
        %1265 = vmatpush1.bf16.msra.mxu0 %v1252
        %1266 = vmatprep.subr.bf16.mxu0 0
        %1267 = vmatpush1.bf16.msra.mxu0 %v1243
        %1268 = vmatprep.subr.bf16.mxu0 0
        %1269 = vmatpush1.bf16.msra.mxu0 %v1241
        %1270 = vmatprep.subr.bf16.mxu0 0
        %1271 = vmatpush2.bf16.msra.mxu0 0
        %1272 = vmatprep.subr.bf16.mxu0 0
        %1273 = vmatpush2.bf16.msra.mxu0 0
        %1274 = vmatprep.subr.bf16.mxu0 0
        %1275 = vmatpush2.bf16.msra.mxu0 0
        %1276 = vmatprep.subr.bf16.mxu0 0
        %1277 = vmatpush2.bf16.msra.mxu0 0
        %1278 = vmatprep.subr.bf16.mxu0 0
        %1279 = vmatpush2.bf16.msra.mxu0 0
        %1280 = vmatprep.subr.bf16.mxu0 0
        %1281 = vmatpush2.bf16.msra.mxu0 0
        %1282 = vmatprep.subr.bf16.mxu0 0
        %1283 = vmatpush2.bf16.msra.mxu0 0
        %1284 = vmatprep.subr.bf16.mxu0 0
        %1285 = vmatpush2.bf16.msra.mxu0 0
        %1286 = vmatprep.mubr.bf16.mxu0 0
        %1287 = vmatmul.mubr.bf16.gmra.mxu0 %v1249
        %v1288 = vpop.f32.mrf.mxu0
        %v1289 = vadd.f32 0.0, %v1288
        %v1290 = vpop.f32.mrf.mxu0
        %v1291 = vpop.f32.mrf.mxu0
        %v1292 = vadd.f32 0.0, %v1291
        %v1293 = vpop.f32.mrf.mxu0
        %1294 = vdwg.mxu0
        %1297 = vrot.lane.b32.xlu0 %v1001, 32
        %v1298 = vpop.permute.xlu0 %1297
        %1299 = vrot.lane.b32.xlu0 %v1004, 32
        %v1300 = vpop.permute.xlu0 %1299
        %1305 = vrot.lane.b32.xlu0 %v1145, 64
        %v1306 = vpop.permute.xlu0 %1305
        %1307 = vrot.lane.b32.xlu0 %v1148, 64
        %v1308 = vpop.permute.xlu0 %1307
        %1313 = vrot.lane.b32.xlu0 %v1289, 96
        %v1314 = vpop.permute.xlu0 %1313
        %1315 = vrot.lane.b32.xlu0 %v1292, 96
        %v1316 = vpop.permute.xlu0 %1315
        %v1319 = vsel %vm726, %v856, %v1298
        %v1320 = vsel %vm726, %v859, %v1300
        %vm1321 = vcmask 523264
        %v1322 = vsel %vm1321, %v1319, %v1306
        %v1323 = vsel %vm1321, %v1320, %v1308
        %vm1324 = vcmask 785408
        %v1325 = vsel %vm1324, %v1322, %v1314
        %v1326 = vsel %vm1324, %v1323, %v1316
        %v1327 = vpack.c.bf16 %v1326, %v1325
        %v1328 = vld [vmem:[#allocation6] sm:$0xf]
        %v1329 = vld [vmem:[#allocation6 + $0x4] sm:$0xf]
        %v1330 = vld [vmem:[#allocation6 + $0x8] sm:$0xf]
        %v1331 = vld [vmem:[#allocation6 + $0xc] sm:$0xf]
        %v1332 = vld [vmem:[#allocation6 + $0x10] sm:$0xf]
        %v1333 = vld [vmem:[#allocation6 + $0x14] sm:$0xf]
        %v1334 = vld [vmem:[#allocation6 + $0x18] sm:$0xf]
        %v1335 = vld [vmem:[#allocation6 + $0x1c] sm:$0xf]
        %v1336 = vld [vmem:[#allocation6 + $0x20] sm:$0xf]
        %v1337 = vld [vmem:[#allocation6 + $0x24] sm:$0xf]
        %v1338 = vld [vmem:[#allocation6 + $0x28] sm:$0xf]
        %v1339 = vld [vmem:[#allocation6 + $0x2c] sm:$0xf]
        %v1340 = vld [vmem:[#allocation6 + $0x30] sm:$0xf]
        %v1341 = vld [vmem:[#allocation6 + $0x34] sm:$0xf]
        %v1342 = vld [vmem:[#allocation6 + $0x38] sm:$0xf]
        %v1343 = vld [vmem:[#allocation6 + $0x3c] sm:$0xf]
        %v1344 = vld [vmem:[%s8] sm:$0x1]
        %v1346 = vlaneseq
        %v1347 = vshrl.u32 %v1346, 7
        %v1348 = vsub.s32 0, %v1347
        %v1349 = vrot.slane %v1344, %v1348
        %v1367 = vunpack.c.l.b16 %v1328
        %v1368 = vunpack.c.l.b16 %v1329
        %v1369 = vunpack.c.l.b16 %v1330
        %v1370 = vunpack.c.l.b16 %v1331
        %v1371 = vunpack.c.l.b16 %v1332
        %v1372 = vunpack.c.l.b16 %v1333
        %v1373 = vunpack.c.l.b16 %v1334
        %v1374 = vunpack.c.l.b16 %v1335
        %v1375 = vunpack.c.l.b16 %v1336
        %v1376 = vunpack.c.l.b16 %v1337
        %v1377 = vunpack.c.l.b16 %v1338
        %v1378 = vunpack.c.l.b16 %v1339
        %v1379 = vunpack.c.l.b16 %v1340
        %v1380 = vunpack.c.l.b16 %v1341
        %v1381 = vunpack.c.l.b16 %v1342
        %v1382 = vunpack.c.l.b16 %v1343
        %v1383 = vpack.c.b16 %v1368, %v1367
        %v1384 = vpack.c.b16 %v1370, %v1369
        %v1385 = vpack.c.b16 %v1372, %v1371
        %v1386 = vpack.c.b16 %v1374, %v1373
        %v1387 = vpack.c.b16 %v1376, %v1375
        %v1388 = vpack.c.b16 %v1378, %v1377
        %v1389 = vpack.c.b16 %v1380, %v1379
        %v1390 = vpack.c.b16 %v1382, %v1381
        %1399 = vmatprep.subr.bf16.mxu0 0
        %1400 = vmatpush1.bf16.msra.mxu0 %v1390
        %1401 = vmatprep.subr.bf16.mxu0 0
        %1402 = vmatpush1.bf16.msra.mxu0 %v1389
        %1403 = vmatprep.subr.bf16.mxu0 0
        %1404 = vmatpush1.bf16.msra.mxu0 %v1388
        %1405 = vmatprep.subr.bf16.mxu0 0
        %1406 = vmatpush1.bf16.msra.mxu0 %v1387
        %1407 = vmatprep.subr.bf16.mxu0 0
        %1408 = vmatpush1.bf16.msra.mxu0 %v1386
        %1409 = vmatprep.subr.bf16.mxu0 0
        %1410 = vmatpush1.bf16.msra.mxu0 %v1385
        %1411 = vmatprep.subr.bf16.mxu0 0
        %1412 = vmatpush1.bf16.msra.mxu0 %v1384
        %1413 = vmatprep.subr.bf16.mxu0 0
        %1414 = vmatpush1.bf16.msra.mxu0 %v1383
        %1415 = vmatprep.subr.bf16.mxu0 0
        %1416 = vmatpush2.bf16.msra.mxu0 0
        %1417 = vmatprep.subr.bf16.mxu0 0
        %1418 = vmatpush2.bf16.msra.mxu0 0
        %1419 = vmatprep.subr.bf16.mxu0 0
        %1420 = vmatpush2.bf16.msra.mxu0 0
        %1421 = vmatprep.subr.bf16.mxu0 0
        %1422 = vmatpush2.bf16.msra.mxu0 0
        %1423 = vmatprep.subr.bf16.mxu0 0
        %1424 = vmatpush2.bf16.msra.mxu0 0
        %1425 = vmatprep.subr.bf16.mxu0 0
        %1426 = vmatpush2.bf16.msra.mxu0 0
        %1427 = vmatprep.subr.bf16.mxu0 0
        %1428 = vmatpush2.bf16.msra.mxu0 0
        %1429 = vmatprep.subr.bf16.mxu0 0
        %1430 = vmatpush2.bf16.msra.mxu0 0
        %1431 = vmatprep.mubr.bf16.mxu0 0
        %1432 = vmatmul.mubr.bf16.gmra.mxu0 %v1327
        %v1433 = vpop.f32.mrf.mxu0
        %v1434 = vadd.f32 %v1349, %v1433
        %v1435 = vpop.f32.mrf.mxu0
        %v1436 = vpop.f32.mrf.mxu0
        %v1437 = vadd.f32 %v1349, %v1436
        %v1438 = vpop.f32.mrf.mxu0
        %1439 = vdwg.mxu0
        %v1440 = vsub.f32 %v586, %v1434
        %v1441 = vsub.f32 %v587, %v1437
        %v1442 = vmul.f32 %v1440, %v1440
        %v1443 = vmul.f32 %v1441, %v1441
        %1444 = vst [vmem:[%s449] sm:$0xff] %v1442
        %1445 = vst [vmem:[%s449 + $0x8] sm:$0xff] %v1443
        %v1446 = vpack.c.bf16 %v1443, %v1442
        %v1447 = vld [vmem:[%s9] sm:$0xf]
        %v1448 = vld [vmem:[%s9 + $0x4] sm:$0xf]
        %v1449 = vld [vmem:[%s9 + $0x8] sm:$0xf]
        %v1450 = vld [vmem:[%s9 + $0xc] sm:$0xf]
        %v1451 = vld [vmem:[%s9 + $0x10] sm:$0xf]
        %v1452 = vld [vmem:[%s9 + $0x14] sm:$0xf]
        %v1453 = vld [vmem:[%s9 + $0x18] sm:$0xf]
        %v1454 = vld [vmem:[%s9 + $0x1c] sm:$0xf]
        %v1455 = vld [vmem:[%s9 + $0x20] sm:$0xf]
        %v1456 = vld [vmem:[%s9 + $0x24] sm:$0xf]
        %v1457 = vld [vmem:[%s9 + $0x28] sm:$0xf]
        %v1458 = vld [vmem:[%s9 + $0x2c] sm:$0xf]
        %v1459 = vld [vmem:[%s9 + $0x30] sm:$0xf]
        %v1460 = vld [vmem:[%s9 + $0x34] sm:$0xf]
        %v1461 = vld [vmem:[%s9 + $0x38] sm:$0xf]
        %v1462 = vld [vmem:[%s9 + $0x3c] sm:$0xf]
        %v1463 = vld [vmem:[#allocation2] sm:$0x1]
        %v1465 = vlaneseq
        %v1466 = vshrl.u32 %v1465, 7
        %v1467 = vsub.s32 0, %v1466
        %v1468 = vrot.slane %v1463, %v1467
        %v1486 = vunpack.c.l.b16 %v1447
        %v1487 = vunpack.c.l.b16 %v1448
        %v1488 = vunpack.c.l.b16 %v1449
        %v1489 = vunpack.c.l.b16 %v1450
        %v1490 = vunpack.c.l.b16 %v1451
        %v1491 = vunpack.c.l.b16 %v1452
        %v1492 = vunpack.c.l.b16 %v1453
        %v1493 = vunpack.c.l.b16 %v1454
        %v1494 = vunpack.c.l.b16 %v1455
        %v1495 = vunpack.c.l.b16 %v1456
        %v1496 = vunpack.c.l.b16 %v1457
        %v1497 = vunpack.c.l.b16 %v1458
        %v1498 = vunpack.c.l.b16 %v1459
        %v1499 = vunpack.c.l.b16 %v1460
        %v1500 = vunpack.c.l.b16 %v1461
        %v1501 = vunpack.c.l.b16 %v1462
        %v1502 = vpack.c.b16 %v1487, %v1486
        %v1503 = vpack.c.b16 %v1489, %v1488
        %v1504 = vpack.c.b16 %v1491, %v1490
        %v1505 = vpack.c.b16 %v1493, %v1492
        %v1506 = vpack.c.b16 %v1495, %v1494
        %v1507 = vpack.c.b16 %v1497, %v1496
        %v1508 = vpack.c.b16 %v1499, %v1498
        %v1509 = vpack.c.b16 %v1501, %v1500
        %1518 = vmatprep.subr.bf16.mxu0 0
        %1519 = vmatpush1.bf16.msra.mxu0 %v1509
        %1520 = vmatprep.subr.bf16.mxu0 0
        %1521 = vmatpush1.bf16.msra.mxu0 %v1508
        %1522 = vmatprep.subr.bf16.mxu0 0
        %1523 = vmatpush1.bf16.msra.mxu0 %v1507
        %1524 = vmatprep.subr.bf16.mxu0 0
        %1525 = vmatpush1.bf16.msra.mxu0 %v1506
        %1526 = vmatprep.subr.bf16.mxu0 0
        %1527 = vmatpush1.bf16.msra.mxu0 %v1505
        %1528 = vmatprep.subr.bf16.mxu0 0
        %1529 = vmatpush1.bf16.msra.mxu0 %v1504
        %1530 = vmatprep.subr.bf16.mxu0 0
        %1531 = vmatpush1.bf16.msra.mxu0 %v1503
        %1532 = vmatprep.subr.bf16.mxu0 0
        %1533 = vmatpush1.bf16.msra.mxu0 %v1502
        %1534 = vmatprep.subr.bf16.mxu0 0
        %1535 = vmatpush2.bf16.msra.mxu0 0
        %1536 = vmatprep.subr.bf16.mxu0 0
        %1537 = vmatpush2.bf16.msra.mxu0 0
        %1538 = vmatprep.subr.bf16.mxu0 0
        %1539 = vmatpush2.bf16.msra.mxu0 0
        %1540 = vmatprep.subr.bf16.mxu0 0
        %1541 = vmatpush2.bf16.msra.mxu0 0
        %1542 = vmatprep.subr.bf16.mxu0 0
        %1543 = vmatpush2.bf16.msra.mxu0 0
        %1544 = vmatprep.subr.bf16.mxu0 0
        %1545 = vmatpush2.bf16.msra.mxu0 0
        %1546 = vmatprep.subr.bf16.mxu0 0
        %1547 = vmatpush2.bf16.msra.mxu0 0
        %1548 = vmatprep.subr.bf16.mxu0 0
        %1549 = vmatpush2.bf16.msra.mxu0 0
        %1550 = vmatprep.mubr.bf16.mxu0 0
        %1551 = vmatmul.mubr.bf16.gmra.mxu0 %v1446
        %v1552 = vpop.f32.mrf.mxu0
        %v1553 = vadd.f32 %v1468, %v1552
        %v1554 = vpop.f32.mrf.mxu0
        %v1555 = vpop.f32.mrf.mxu0
        %v1556 = vadd.f32 %v1468, %v1555
        %v1557 = vpop.f32.mrf.mxu0
        %1558 = vdwg.mxu0
        %v1559 = vxor.u32 %v1553, 2147483648
        %v1560 = vxor.u32 %v1556, 2147483648
        %v1561 = vmul.f32 %v1559, 1.442695
        %v1562 = vpow.pop %v1561
        %v1563 = vmul.f32 %v1560, 1.442695
        %v1564 = vpow.pop %v1563
        %v1565 = vadd.f32 %v1562, 1.0
        %v1566 = vadd.f32 %v1564, 1.0
        %v1567 = vrcp.pop %v1565
        %v1568 = vmul.f32 1.0, %v1567
        %v1569 = vrcp.pop %v1566
        %v1570 = vmul.f32 1.0, %v1569
        %v1571 = vlaneseq
        %v1572 = vshrl.u32 %v1571, 7
        %v1573 = vadd.s32 %v1572, 8
        %s1574 = smul.u32 %s33, 16
        %v1575 = vstv %s1574
        %v1576 = vadd.s32 %v1572, %v1575
        %v1577 = vadd.s32 %v1573, %v1575
        %vm1578 = vcmp.lt.s32.totalorder %v1576, 36
        %vm1579 = vcmp.lt.s32.totalorder %v1577, 36
        %v1580 = vsel %vm1578, %v1568, 0.0
        %v1581 = vsel %vm1579, %v1570, 0.0
        %vm1582 = vcmask 7168
        %1583 = vst.msk [vmem:[%s463] sm:$0xff] %vm1582, %v1580
        %1584 = vst.msk [vmem:[%s463 + $0x8] sm:$0xff] %vm1582, %v1581
        %s1585 = sand.u32 %s277, 1
        %s1586 = scalar_lea.sflag [#allocation5], %s1585
        %s1587 = sand.u32 %s277, 1
        %s1588 = smul.addr %s1587, 16
        %s1589 = scalar_lea.vmem [#allocation8], %s1588
        %s1590 = smul.u32 2, %s33
        %p1591 = scmp.lt.s32.totalorder %s1590, 5
        %s1592 = scalar_select %p1591, %s1590, 5
        %s1593 = smul.addr %s1592, 8
        %s1594 = scalar_lea.vmem %s12, %s1593
        // Predicated region
        $region73: #{tpu_custom_call.1} parent=63 // pred_check
          %p1595 = pneg %p287
        $region74: #{tpu_custom_call.1} parent=63 // pred_check_branch
          %1597 = sbr.rel (%p1595) target = $region76
        $region75: #{tpu_custom_call.1} parent=63 // pred_region
          %s1598 = smul.u32 2, %s33
          %s1600 = ssub.s32 256, 256
          %1601 = vsyncadd %s1586, %s1600
          %s1602 = smul.addr %s1598, 128
          %s1603 = scalar_lea.hbm %s11, %s1602
          %s1604 = sshll.u32 %s1589, 4
          %s1605 = int_to_ptr.vmem [resolvable:$true] %s1604
          %1610 = dma.vmem_to_hbm [thread:$0]  %s1605, 256, %s1603, %s1586, 128, 128, 8
        $region76: #{tpu_custom_call.1} parent=63 // pred_fallthru
          _
        // Predicated region
        $region77: #{tpu_custom_call.1} parent=63 // pred_check
          %p1611 = pneg %p313
        $region78: #{tpu_custom_call.1} parent=63 // pred_check_branch
          %1613 = sbr.rel (%p1611) target = $region80
        $region79: #{tpu_custom_call.1} parent=63 // pred_region
          %s1614 = smul.u32 2, %s33
        $region80: #{tpu_custom_call.1} parent=63 // pred_fallthru
          _
      $region64: #{tpu_custom_call.1} parent=5 // pred_fallthru
        _
      %p1615 = scmp.le.s32.totalorder 2, %s28
      // Predicated region
      $region81: #{tpu_custom_call.1} parent=5 // pred_check
        %p1616 = pneg %p1615
      $region82: #{tpu_custom_call.1} parent=5 // pred_check_branch
        %1618 = sbr.rel (%p1616) target = $region84
      $region83: #{tpu_custom_call.1} parent=5 // pred_region
        %s1619 = ssub.s32 %s28, 2
        // Predicated region
        $region85: #{tpu_custom_call.1} parent=83 // pred_check
          %p1620 = pneg %p293
        $region86: #{tpu_custom_call.1} parent=83 // pred_check_branch
          %1622 = sbr.rel (%p1620) target = $region88
        $region87: #{tpu_custom_call.1} parent=83 // pred_region
          %s1623 = sand.u32 %s278, 1
          %s1624 = scalar_lea.sflag [#allocation5], %s1623
          %s1625 = sand.u32 %s278, 1
          %s1626 = smul.addr %s1625, 16
          %s1627 = scalar_lea.vmem [#allocation8], %s1626
          %1628 = dma.done %s1624, 256
        $region88: #{tpu_custom_call.1} parent=83 // pred_fallthru
          _
        // Predicated region
        $region89: #{tpu_custom_call.1} parent=83 // pred_check
          %p1629 = pneg %p319
        $region90: #{tpu_custom_call.1} parent=83 // pred_check_branch
          %1631 = sbr.rel (%p1629) target = $region92
        $region91: #{tpu_custom_call.1} parent=83 // pred_region
          %s1632 = smul.u32 2, %s34
          %p1633 = scmp.lt.s32.totalorder %s1632, 5
          %s1634 = scalar_select %p1633, %s1632, 5
          %s1635 = smul.addr %s1634, 8
          %s1636 = scalar_lea.vmem %s12, %s1635
        $region92: #{tpu_custom_call.1} parent=83 // pred_fallthru
          _
      $region84: #{tpu_custom_call.1} parent=5 // pred_fallthru
        _
    $region6: #{tpu_custom_call.1} parent=1 // loop_footer
      %s32 = sadd.s32 1, %s28
    $region7: #{tpu_custom_call.1} parent=1 // loop_footer_branch
      %27 = sbr.rel target = $region3
    $region8: #{tpu_custom_call.1} parent=1 // loop_exit
      _
    %1637 = vsyncpa [#allocation4], 1
    %s1638 = scalar_lea.sflag [#allocation4], 1
    %1639 = vsyncpa %s1638, 1
    %1640 = vsyncpa [#allocation7], 1
    %1641 = vsyncpa [#allocation5], 1
    %s1642 = scalar_lea.sflag [#allocation5], 1
    %1643 = vsyncpa %s1642, 1

// kernel: tpu_custom_call.1
$region0: #{tpu_custom_call.1}
  #allocation0 [shape = 'u32[]', space=smem, size = 0x4, offset = 0x4, fixed_abs, tag = 'smem constant byte address 0x4 - core index']
  #allocation1 [shape = 'u32[144,128]{1,0:T(1,128)}', space=vmem, size = 0x12000, scoped, tag = 'internal scratch']
  #allocation2 [shape = 'f32[1,1]{1,0:T(1,128)S(1)}', space=vmem, size = 0x200, scoped, tag = 'scoped memory for tpu_custom_call.1']
  %s0 = inlined_call_operand.hbm [shape: bf16[48,128], index: 0, kind: input, shape index: {}]
  %s1 = inlined_call_operand.vmem [shape: bf16[128,40], index: 1, kind: input, shape index: {}]
  %s2 = inlined_call_operand.vmem [shape: bf16[40,128], index: 2, kind: input, shape index: {}]
  %s3 = inlined_call_operand.vmem [shape: bf16[128,128], index: 3, kind: input, shape index: {}]
  %s4 = inlined_call_operand.vmem [shape: f32[1,128], index: 4, kind: input, shape index: {}]
  %s5 = inlined_call_operand.vmem [shape: bf16[128,128], index: 5, kind: input, shape index: {}]
  %s6 = inlined_call_operand.vmem [shape: f32[1,128], index: 6, kind: input, shape index: {}]
  %s7 = inlined_call_operand.hbm [shape: bf16[128,128], index: 7, kind: input, shape index: {}]
  %s8 = inlined_call_operand.vmem [shape: f32[1,128], index: 8, kind: input, shape index: {}]
  %s9 = inlined_call_operand.vmem [shape: bf16[128,1], index: 9, kind: input, shape index: {}]
  %s10 = inlined_call_operand.<no memory space> [shape: f32[1,1], index: 10, kind: input, shape index: {}]
  %s11 = inlined_call_operand.hbm [shape: f32[48,128], index: 11, kind: output, shape index: {0}]
  %s12 = inlined_call_operand.vmem [shape: f32[48,1], index: 12, kind: output, shape index: {1}]
  %13 = xla_tuple %s11, %s12
  %s14 = sld [smem:[#allocation0]]
  $region93: #{tpu_custom_call.1} parent=0
    _
  %s16 = ssub.s32 1, %s14
  %s17 = scalar_select 0, %s16, %s14
  %v18 = vstv %s10
  %19 = vst [vmem:[#allocation2] sm:$0x1] %v18
  $region1: #{tpu_custom_call.1} parent=0
    #allocation3 [shape = 'u8[8192]{0}', space=vmem, size = 0x2000, scoped, tag = 'input window, operand 0']
    #allocation4 [shape = 's32[2]{0}', space=sflag, size = 0x8, scoped, tag = 'scoped memory for tpu_custom_call.1']
    #allocation5 [shape = 's32[2]{0}', space=sflag, size = 0x8, scoped, tag = 'scoped memory for tpu_custom_call.1']
    #allocation6 [shape = 'u8[32768]{0}', space=vmem, size = 0x8000, scoped, tag = 'input window, operand 7, single buffered']
    #allocation7 [shape = 's32[1]{0}', space=sflag, size = 0x4, scoped, tag = 'scoped memory for tpu_custom_call.1']
    #allocation8 [shape = 'u8[16384]{0}', space=vmem, size = 0x4000, scoped, tag = 'output window, operand 0']
    %20 = vsyncpa [#allocation4], 0
    %s21 = scalar_lea.sflag [#allocation4], 1
    %22 = vsyncpa %s21, 0
    %23 = vsyncpa [#allocation7], 0
    %24 = vsyncpa [#allocation5], 0
    %s25 = scalar_lea.sflag [#allocation5], 1
    %26 = vsyncpa %s25, 0
    loop: start=0, step=1, limit=5
    $region2: #{tpu_custom_call.1} parent=1 // loop_pre_header
      _
    $region3: #{tpu_custom_call.1} parent=1 // loop_header
      %s28 = sphi 0, %s32
      %p29 = scmp.ge.s32.totalorder %s28, 5
      %s38 = sphi 0, %s40
      %s41 = sphi 0, %s38
      %s42 = sphi 0, %s41
      %s58 = sphi 0, %s42
      %s62 = sphi 0, %s62
      %s64 = sphi 0, %s62
      %s65 = sphi 0, %s64
      %s79 = sphi 0, %s65
      %s83 = sphi 0, %s83
      %s85 = sphi 0, %s83
      %s86 = sphi 0, %s85
      %s100 = sphi 0, %s86
      %s104 = sphi 0, %s104
      %s106 = sphi 0, %s104
      %s107 = sphi 0, %s106
      %s121 = sphi 0, %s107
      %s125 = sphi 0, %s125
      %s127 = sphi 0, %s125
      %s128 = sphi 0, %s127
      %s142 = sphi 0, %s128
      %s146 = sphi 0, %s146
      %s148 = sphi 0, %s146
      %s149 = sphi 0, %s148
      %s163 = sphi 0, %s149
      %s167 = sphi 0, %s167
      %s169 = sphi 0, %s167
      %s170 = sphi 0, %s169
      %s184 = sphi 0, %s170
      %s188 = sphi 0, %s188
      %s190 = sphi 0, %s188
      %s191 = sphi 0, %s190
      %s205 = sphi 0, %s191
      %s209 = sphi 0, %s209
      %s211 = sphi 0, %s209
      %s212 = sphi 0, %s211
      %s226 = sphi 0, %s212
      %s230 = sphi 0, %s230
      %s232 = sphi 0, %s230
      %s233 = sphi 0, %s232
      %s247 = sphi 0, %s233
      %s251 = sphi 0, %s251
      %s253 = sphi 0, %s251
      %s254 = sphi 0, %s253
      %s268 = sphi 0, %s254
      %s274 = sphi 0, %s276
      %s277 = sphi 0, %s274
      %s278 = sphi 0, %s277
      %s294 = sphi 0, %s278
      %s300 = sphi 0, %s302
      %s303 = sphi 0, %s300
      %s304 = sphi 0, %s303
      %s320 = sphi 0, %s304
    $region4: #{tpu_custom_call.1} parent=1 // loop_header_branch
      %31 = sbr.rel (%p29) target = $region8
    $region5: #{tpu_custom_call.1} parent=1 // loop_body
      %s33 = ssub.s32 %s28, 1
      %s34 = ssub.s32 %s28, 2
      %s35 = sadd.s32 %s28, 1
      %s36 = ssub.s32 %s28, %s35
      %p37 = scmp.eq.s32.totalorder %s36, 0
      %s39 = sadd.s32 %s38, 1
      %s40 = scalar_select %p37, %s38, %s39
      %p43 = pneg %p37
      %p44 = scmp.eq.s32.totalorder %s28, 2
      %p45 = por %p43, %p44
      %p46 = scmp.ne.s32.totalorder %s38, %s41
      %p47 = scmp.eq.s32.totalorder %s28, 0
      %p48 = por %p46, %p47
      %p49 = scmp.ne.s32.totalorder %s38, %s41
      %p50 = scmp.eq.s32.totalorder %s33, 2
      %p51 = por %p49, %p50
      %p52 = scmp.ne.s32.totalorder %s41, %s42
      %p53 = scmp.eq.s32.totalorder %s33, 0
      %p54 = por %p52, %p53
      %p55 = scmp.ne.s32.totalorder %s41, %s42
      %p56 = scmp.eq.s32.totalorder %s34, 2
      %p57 = por %p55, %p56
      %p59 = scmp.ne.s32.totalorder %s42, %s58
      %p60 = scmp.eq.s32.totalorder %s34, 0
      %p61 = por %p59, %p60
      %s63 = sadd.s32 %s62, 1
      %p66 = scmp.eq.s32.totalorder %s28, 2
      %p67 = scmp.ne.s32.totalorder %s62, %s64
      %p68 = scmp.eq.s32.totalorder %s28, 0
      %p69 = por %p67, %p68
      %p70 = scmp.ne.s32.totalorder %s62, %s64
      %p71 = scmp.eq.s32.totalorder %s33, 2
      %p72 = por %p70, %p71
      %p73 = scmp.ne.s32.totalorder %s64, %s65
      %p74 = scmp.eq.s32.totalorder %s33, 0
      %p75 = por %p73, %p74
      %p76 = scmp.ne.s32.totalorder %s64, %s65
      %p77 = scmp.eq.s32.totalorder %s34, 2
      %p78 = por %p76, %p77
      %p80 = scmp.ne.s32.totalorder %s65, %s79
      %p81 = scmp.eq.s32.totalorder %s34, 0
      %p82 = por %p80, %p81
      %s84 = sadd.s32 %s83, 1
      %p87 = scmp.eq.s32.totalorder %s28, 2
      %p88 = scmp.ne.s32.totalorder %s83, %s85
      %p89 = scmp.eq.s32.totalorder %s28, 0
      %p90 = por %p88, %p89
      %p91 = scmp.ne.s32.totalorder %s83, %s85
      %p92 = scmp.eq.s32.totalorder %s33, 2
      %p93 = por %p91, %p92
      %p94 = scmp.ne.s32.totalorder %s85, %s86
      %p95 = scmp.eq.s32.totalorder %s33, 0
      %p96 = por %p94, %p95
      %p97 = scmp.ne.s32.totalorder %s85, %s86
      %p98 = scmp.eq.s32.totalorder %s34, 2
      %p99 = por %p97, %p98
      %p101 = scmp.ne.s32.totalorder %s86, %s100
      %p102 = scmp.eq.s32.totalorder %s34, 0
      %p103 = por %p101, %p102
      %s105 = sadd.s32 %s104, 1
      %p108 = scmp.eq.s32.totalorder %s28, 2
      %p109 = scmp.ne.s32.totalorder %s104, %s106
      %p110 = scmp.eq.s32.totalorder %s28, 0
      %p111 = por %p109, %p110
      %p112 = scmp.ne.s32.totalorder %s104, %s106
      %p113 = scmp.eq.s32.totalorder %s33, 2
      %p114 = por %p112, %p113
      %p115 = scmp.ne.s32.totalorder %s106, %s107
      %p116 = scmp.eq.s32.totalorder %s33, 0
      %p117 = por %p115, %p116
      %p118 = scmp.ne.s32.totalorder %s106, %s107
      %p119 = scmp.eq.s32.totalorder %s34, 2
      %p120 = por %p118, %p119
      %p122 = scmp.ne.s32.totalorder %s107, %s121
      %p123 = scmp.eq.s32.totalorder %s34, 0
      %p124 = por %p122, %p123
      %s126 = sadd.s32 %s125, 1
      %p129 = scmp.eq.s32.totalorder %s28, 2
      %p130 = scmp.ne.s32.totalorder %s125, %s127
      %p131 = scmp.eq.s32.totalorder %s28, 0
      %p132 = por %p130, %p131
      %p133 = scmp.ne.s32.totalorder %s125, %s127
      %p134 = scmp.eq.s32.totalorder %s33, 2
      %p135 = por %p133, %p134
      %p136 = scmp.ne.s32.totalorder %s127, %s128
      %p137 = scmp.eq.s32.totalorder %s33, 0
      %p138 = por %p136, %p137
      %p139 = scmp.ne.s32.totalorder %s127, %s128
      %p140 = scmp.eq.s32.totalorder %s34, 2
      %p141 = por %p139, %p140
      %p143 = scmp.ne.s32.totalorder %s128, %s142
      %p144 = scmp.eq.s32.totalorder %s34, 0
      %p145 = por %p143, %p144
      %s147 = sadd.s32 %s146, 1
      %p150 = scmp.eq.s32.totalorder %s28, 2
      %p151 = scmp.ne.s32.totalorder %s146, %s148
      %p152 = scmp.eq.s32.totalorder %s28, 0
      %p153 = por %p151, %p152
      %p154 = scmp.ne.s32.totalorder %s146, %s148
      %p155 = scmp.eq.s32.totalorder %s33, 2
      %p156 = por %p154, %p155
      %p157 = scmp.ne.s32.totalorder %s148, %s149
      %p158 = scmp.eq.s32.totalorder %s33, 0
      %p159 = por %p157, %p158
      %p160 = scmp.ne.s32.totalorder %s148, %s149
      %p161 = scmp.eq.s32.totalorder %s34, 2
      %p162 = por %p160, %p161
      %p164 = scmp.ne.s32.totalorder %s149, %s163
      %p165 = scmp.eq.s32.totalorder %s34, 0
      %p166 = por %p164, %p165
      %s168 = sadd.s32 %s167, 1
      %p171 = scmp.eq.s32.totalorder %s28, 2
      %p172 = scmp.ne.s32.totalorder %s167, %s169
      %p173 = scmp.eq.s32.totalorder %s28, 0
      %p174 = por %p172, %p173
      %p175 = scmp.ne.s32.totalorder %s167, %s169
      %p176 = scmp.eq.s32.totalorder %s33, 2
      %p177 = por %p175, %p176
      %p178 = scmp.ne.s32.totalorder %s169, %s170
      %p179 = scmp.eq.s32.totalorder %s33, 0
      %p180 = por %p178, %p179
      %p181 = scmp.ne.s32.totalorder %s169, %s170
      %p182 = scmp.eq.s32.totalorder %s34, 2
      %p183 = por %p181, %p182
      %p185 = scmp.ne.s32.totalorder %s170, %s184
      %p186 = scmp.eq.s32.totalorder %s34, 0
      %p187 = por %p185, %p186
      %s189 = sadd.s32 %s188, 1
      %p192 = scmp.eq.s32.totalorder %s28, 2
      %p193 = scmp.ne.s32.totalorder %s188, %s190
      %p194 = scmp.eq.s32.totalorder %s28, 0
      %p195 = por %p193, %p194
      %p196 = scmp.ne.s32.totalorder %s188, %s190
      %p197 = scmp.eq.s32.totalorder %s33, 2
      %p198 = por %p196, %p197
      %p199 = scmp.ne.s32.totalorder %s190, %s191
      %p200 = scmp.eq.s32.totalorder %s33, 0
      %p201 = por %p199, %p200
      %p202 = scmp.ne.s32.totalorder %s190, %s191
      %p203 = scmp.eq.s32.totalorder %s34, 2
      %p204 = por %p202, %p203
      %p206 = scmp.ne.s32.totalorder %s191, %s205
      %p207 = scmp.eq.s32.totalorder %s34, 0
      %p208 = por %p206, %p207
      %s210 = sadd.s32 %s209, 1
      %p213 = scmp.eq.s32.totalorder %s28, 2
      %p214 = scmp.ne.s32.totalorder %s209, %s211
      %p215 = scmp.eq.s32.totalorder %s28, 0
      %p216 = por %p214, %p215
      %p217 = scmp.ne.s32.totalorder %s209, %s211
      %p218 = scmp.eq.s32.totalorder %s33, 2
      %p219 = por %p217, %p218
      %p220 = scmp.ne.s32.totalorder %s211, %s212
      %p221 = scmp.eq.s32.totalorder %s33, 0
      %p222 = por %p220, %p221
      %p223 = scmp.ne.s32.totalorder %s211, %s212
      %p224 = scmp.eq.s32.totalorder %s34, 2
      %p225 = por %p223, %p224
      %p227 = scmp.ne.s32.totalorder %s212, %s226
      %p228 = scmp.eq.s32.totalorder %s34, 0
      %p229 = por %p227, %p228
      %s231 = sadd.s32 %s230, 1
      %p234 = scmp.eq.s32.totalorder %s28, 2
      %p235 = scmp.ne.s32.totalorder %s230, %s232
      %p236 = scmp.eq.s32.totalorder %s28, 0
      %p237 = por %p235, %p236
      %p238 = scmp.ne.s32.totalorder %s230, %s232
      %p239 = scmp.eq.s32.totalorder %s33, 2
      %p240 = por %p238, %p239
      %p241 = scmp.ne.s32.totalorder %s232, %s233
      %p242 = scmp.eq.s32.totalorder %s33, 0
      %p243 = por %p241, %p242
      %p244 = scmp.ne.s32.totalorder %s232, %s233
      %p245 = scmp.eq.s32.totalorder %s34, 2
      %p246 = por %p244, %p245
      %p248 = scmp.ne.s32.totalorder %s233, %s247
      %p249 = scmp.eq.s32.totalorder %s34, 0
      %p250 = por %p248, %p249
      %s252 = sadd.s32 %s251, 1
      %p255 = scmp.eq.s32.totalorder %s28, 2
      %p256 = scmp.ne.s32.totalorder %s251, %s253
      %p257 = scmp.eq.s32.totalorder %s28, 0
      %p258 = por %p256, %p257
      %p259 = scmp.ne.s32.totalorder %s251, %s253
      %p260 = scmp.eq.s32.totalorder %s33, 2
      %p261 = por %p259, %p260
      %p262 = scmp.ne.s32.totalorder %s253, %s254
      %p263 = scmp.eq.s32.totalorder %s33, 0
      %p264 = por %p262, %p263
      %p265 = scmp.ne.s32.totalorder %s253, %s254
      %p266 = scmp.eq.s32.totalorder %s34, 2
      %p267 = por %p265, %p266
      %p269 = scmp.ne.s32.totalorder %s254, %s268
      %p270 = scmp.eq.s32.totalorder %s34, 0
      %p271 = por %p269, %p270
      %s272 = ssub.s32 %s28, %s35
      %p273 = scmp.eq.s32.totalorder %s272, 0
      %s275 = sadd.s32 %s274, 1
      %s276 = scalar_select %p273, %s274, %s275
      %p279 = pneg %p273
      %p280 = scmp.eq.s32.totalorder %s28, 2
      %p281 = por %p279, %p280
      %p282 = scmp.ne.s32.totalorder %s274, %s277
      %p283 = scmp.eq.s32.totalorder %s28, 0
      %p284 = por %p282, %p283
      %p285 = scmp.ne.s32.totalorder %s274, %s277
      %p286 = scmp.eq.s32.totalorder %s33, 2
      %p287 = por %p285, %p286
      %p288 = scmp.ne.s32.totalorder %s277, %s278
      %p289 = scmp.eq.s32.totalorder %s33, 0
      %p290 = por %p288, %p289
      %p291 = scmp.ne.s32.totalorder %s277, %s278
      %p292 = scmp.eq.s32.totalorder %s34, 2
      %p293 = por %p291, %p292
      %p295 = scmp.ne.s32.totalorder %s278, %s294
      %p296 = scmp.eq.s32.totalorder %s34, 0
      %p297 = por %p295, %p296
      %s298 = ssub.s32 %s28, %s35
      %p299 = scmp.eq.s32.totalorder %s298, 0
      %s301 = sadd.s32 %s300, 1
      %s302 = scalar_select %p299, %s300, %s301
      %p305 = pneg %p299
      %p306 = scmp.eq.s32.totalorder %s28, 2
      %p307 = por %p305, %p306
      %p308 = scmp.ne.s32.totalorder %s300, %s303
      %p309 = scmp.eq.s32.totalorder %s28, 0
      %p310 = por %p308, %p309
      %p311 = scmp.ne.s32.totalorder %s300, %s303
      %p312 = scmp.eq.s32.totalorder %s33, 2
      %p313 = por %p311, %p312
      %p314 = scmp.ne.s32.totalorder %s303, %s304
      %p315 = scmp.eq.s32.totalorder %s33, 0
      %p316 = por %p314, %p315
      %p317 = scmp.ne.s32.totalorder %s303, %s304
      %p318 = scmp.eq.s32.totalorder %s34, 2
      %p319 = por %p317, %p318
      %p321 = scmp.ne.s32.totalorder %s304, %s320
      %p322 = scmp.eq.s32.totalorder %s34, 0
      %p323 = por %p321, %p322
      %p324 = scmp.le.s32.totalorder 1, %s28
      %p325 = scmp.lt.s32.totalorder %s28, 4
      %p326 = pnand %p324, %p325
      %p327 = pneg %p326
      // Predicated region
      $region9: #{tpu_custom_call.1} parent=5 // pred_check
        _
      $region10: #{tpu_custom_call.1} parent=5 // pred_check_branch
        %329 = sbr.rel (%p326) target = $region12
      $region11: #{tpu_custom_call.1} parent=5 // pred_region
        %s330 = ssub.s32 %s28, 1
        // Predicated region
        $region13: #{tpu_custom_call.1} parent=11 // pred_check
          %p331 = pneg %p75
        $region14: #{tpu_custom_call.1} parent=11 // pred_check_branch
          %333 = sbr.rel (%p331) target = $region16
        $region15: #{tpu_custom_call.1} parent=11 // pred_region
          _
        $region16: #{tpu_custom_call.1} parent=11 // pred_fallthru
          _
        // Predicated region
        $region17: #{tpu_custom_call.1} parent=11 // pred_check
          %p334 = pneg %p96
        $region18: #{tpu_custom_call.1} parent=11 // pred_check_branch
          %336 = sbr.rel (%p334) target = $region20
        $region19: #{tpu_custom_call.1} parent=11 // pred_region
          _
        $region20: #{tpu_custom_call.1} parent=11 // pred_fallthru
          _
        // Predicated region
        $region21: #{tpu_custom_call.1} parent=11 // pred_check
          %p337 = pneg %p117
        $region22: #{tpu_custom_call.1} parent=11 // pred_check_branch
          %339 = sbr.rel (%p337) target = $region24
        $region23: #{tpu_custom_call.1} parent=11 // pred_region
          _
        $region24: #{tpu_custom_call.1} parent=11 // pred_fallthru
          _
        // Predicated region
        $region25: #{tpu_custom_call.1} parent=11 // pred_check
          %p340 = pneg %p138
        $region26: #{tpu_custom_call.1} parent=11 // pred_check_branch
          %342 = sbr.rel (%p340) target = $region28
        $region27: #{tpu_custom_call.1} parent=11 // pred_region
          _
        $region28: #{tpu_custom_call.1} parent=11 // pred_fallthru
          _
        // Predicated region
        $region29: #{tpu_custom_call.1} parent=11 // pred_check
          %p343 = pneg %p159
        $region30: #{tpu_custom_call.1} parent=11 // pred_check_branch
          %345 = sbr.rel (%p343) target = $region32
        $region31: #{tpu_custom_call.1} parent=11 // pred_region
          _
        $region32: #{tpu_custom_call.1} parent=11 // pred_fallthru
          _
        // Predicated region
        $region33: #{tpu_custom_call.1} parent=11 // pred_check
          %p346 = pneg %p180
        $region34: #{tpu_custom_call.1} parent=11 // pred_check_branch
          %348 = sbr.rel (%p346) target = $region36
        $region35: #{tpu_custom_call.1} parent=11 // pred_region
          _
        $region36: #{tpu_custom_call.1} parent=11 // pred_fallthru
          _
        // Predicated region
        $region37: #{tpu_custom_call.1} parent=11 // pred_check
          %p349 = pneg %p201
        $region38: #{tpu_custom_call.1} parent=11 // pred_check_branch
          %351 = sbr.rel (%p349) target = $region40
        $region39: #{tpu_custom_call.1} parent=11 // pred_region
          %s353 = ssub.s32 1024, 1024
          %354 = vsyncadd [#allocation7], %s353
          %s355 = sshll.u32 [#allocation6], 4
          %s356 = int_to_ptr.vmem [resolvable:$true] %s355
          %361 = dma.hbm_to_vmem [thread:$0]  %s7, 1024, %s356, [#allocation7], 64, 64, 4
        $region40: #{tpu_custom_call.1} parent=11 // pred_fallthru
          _
        // Predicated region
        $region41: #{tpu_custom_call.1} parent=11 // pred_check
          %p362 = pneg %p222
        $region42: #{tpu_custom_call.1} parent=11 // pred_check_branch
          %364 = sbr.rel (%p362) target = $region44
        $region43: #{tpu_custom_call.1} parent=11 // pred_region
          _
        $region44: #{tpu_custom_call.1} parent=11 // pred_fallthru
          _
        // Predicated region
        $region45: #{tpu_custom_call.1} parent=11 // pred_check
          %p365 = pneg %p243
        $region46: #{tpu_custom_call.1} parent=11 // pred_check_branch
          %367 = sbr.rel (%p365) target = $region48
        $region47: #{tpu_custom_call.1} parent=11 // pred_region
          _
        $region48: #{tpu_custom_call.1} parent=11 // pred_fallthru
          _
        // Predicated region
        $region49: #{tpu_custom_call.1} parent=11 // pred_check
          %p368 = pneg %p264
        $region50: #{tpu_custom_call.1} parent=11 // pred_check_branch
          %370 = sbr.rel (%p368) target = $region52
        $region51: #{tpu_custom_call.1} parent=11 // pred_region
          _
        $region52: #{tpu_custom_call.1} parent=11 // pred_fallthru
          _
      $region12: #{tpu_custom_call.1} parent=5 // pred_fallthru
        _
      %p371 = scmp.lt.s32.totalorder %s28, 3
      // Predicated region
      $region53: #{tpu_custom_call.1} parent=5 // pred_check
        %p372 = pneg %p371
      $region54: #{tpu_custom_call.1} parent=5 // pred_check_branch
        %374 = sbr.rel (%p372) target = $region56
      $region55: #{tpu_custom_call.1} parent=5 // pred_region
        // Predicated region
        $region57: #{tpu_custom_call.1} parent=55 // pred_check
          %p375 = pneg %p48
        $region58: #{tpu_custom_call.1} parent=55 // pred_check_branch
          %377 = sbr.rel (%p375) target = $region60
        $region59: #{tpu_custom_call.1} parent=55 // pred_region
          %s378 = sand.u32 %s38, 1
          %s379 = scalar_lea.sflag [#allocation4], %s378
          %s380 = sand.u32 %s38, 1
          %s381 = smul.addr %s380, 8
          %s382 = scalar_lea.vmem [#allocation3], %s381
          %s383 = smul.u32 2, %s28
          %s385 = ssub.s32 128, 128
          %386 = vsyncadd %s379, %s385
          %s387 = smul.addr %s383, 64
          %s388 = scalar_lea.hbm %s0, %s387
          %s389 = sshll.u32 %s382, 4
          %s390 = int_to_ptr.vmem [resolvable:$true] %s389
          %395 = dma.hbm_to_vmem [thread:$0]  %s388, 128, %s390, %s379, 64, 64, 4
        $region60: #{tpu_custom_call.1} parent=55 // pred_fallthru
          _
      $region56: #{tpu_custom_call.1} parent=5 // pred_fallthru
        _
      %p396 = scmp.le.s32.totalorder 1, %s28
      %p397 = scmp.lt.s32.totalorder %s28, 4
      %p398 = pnand %p396, %p397
      %p399 = pneg %p398
      // Predicated region
      $region61: #{tpu_custom_call.1} parent=5 // pred_check
        _
      $region62: #{tpu_custom_call.1} parent=5 // pred_check_branch
        %401 = sbr.rel (%p398) target = $region64
      $region63: #{tpu_custom_call.1} parent=5 // pred_region
        %s402 = ssub.s32 %s28, 1
        %s403 = sand.u32 %s41, 1
        %s404 = scalar_lea.sflag [#allocation4], %s403
        %s405 = sand.u32 %s41, 1
        %s406 = smul.addr %s405, 8
        %s407 = scalar_lea.vmem [#allocation3], %s406
        // Predicated region
        $region65: #{tpu_custom_call.1} parent=63 // pred_check
          %p408 = pneg %p54
        $region66: #{tpu_custom_call.1} parent=63 // pred_check_branch
          %410 = sbr.rel (%p408) target = $region68
        $region67: #{tpu_custom_call.1} parent=63 // pred_region
          %411 = dma.done %s404, 128
        $region68: #{tpu_custom_call.1} parent=63 // pred_fallthru
          _
        // Predicated region
        $region69: #{tpu_custom_call.1} parent=63 // pred_check
          %p412 = pneg %p201
        $region70: #{tpu_custom_call.1} parent=63 // pred_check_branch
          %414 = sbr.rel (%p412) target = $region72
        $region71: #{tpu_custom_call.1} parent=63 // pred_region
          %415 = dma.done [#allocation7], 1024
        $region72: #{tpu_custom_call.1} parent=63 // pred_fallthru
          _
        %s416 = sand.u32 %s41, 1
        %s417 = scalar_lea.sflag [#allocation4], %s416
        %s418 = sand.u32 %s41, 1
        %s419 = smul.addr %s418, 8
        %s420 = scalar_lea.vmem [#allocation3], %s419
        %p421 = pneg %p54
        %p422 = pneg %p51
        %p423 = pneg %p75
        %p424 = pneg %p72
        %p425 = pneg %p96
        %p426 = pneg %p93
        %p427 = pneg %p117
        %p428 = pneg %p114
        %p429 = pneg %p138
        %p430 = pneg %p135
        %p431 = pneg %p159
        %p432 = pneg %p156
        %p433 = pneg %p180
        %p434 = pneg %p177
        %p435 = pneg %p201
        %p436 = pneg %p198
        %p437 = pneg %p222
        %p438 = pneg %p219
        %p439 = pneg %p243
        %p440 = pneg %p240
        %p441 = pneg %p264
        %p442 = pneg %p261
        %p443 = pneg %p290
        %p444 = pneg %p287
        %s445 = sand.u32 %s277, 1
        %s446 = scalar_lea.sflag [#allocation5], %s445
        %s447 = sand.u32 %s277, 1
        %s448 = smul.addr %s447, 16
        %s449 = scalar_lea.vmem [#allocation8], %s448
        %p450 = pneg %p316
        %p451 = pneg %p313
        %s452 = smul.u32 2, %s33
        %p453 = scmp.lt.s32.totalorder %s452, 5
        %s454 = scalar_select %p453, %s452, 5
        %s455 = smul.addr %s454, 8
        %s456 = scalar_lea.vmem %s12, %s455
        %s457 = smul.u32 2, %s33
        %s458 = smul.u32 2, %s33
        %s459 = smul.u32 2, %s33
        %p460 = scmp.lt.s32.totalorder %s459, 5
        %s461 = scalar_select %p460, %s459, 5
        %s462 = smul.addr %s461, 8
        %s463 = scalar_lea.vmem %s12, %s462
        %s464 = smul.u32 2, %s33
        %v466 = vld [vmem:[%s407] sm:$0xf]
        %v467 = vld [vmem:[%s407 + $0x4] sm:$0xf]
        %v468 = vld [vmem:[%s3] sm:$0xf]
        %v469 = vld [vmem:[%s3 + $0x4] sm:$0xf]
        %v470 = vld [vmem:[%s3 + $0x8] sm:$0xf]
        %v471 = vld [vmem:[%s3 + $0xc] sm:$0xf]
        %v472 = vld [vmem:[%s3 + $0x10] sm:$0xf]
        %v473 = vld [vmem:[%s3 + $0x14] sm:$0xf]
        %v474 = vld [vmem:[%s3 + $0x18] sm:$0xf]
        %v475 = vld [vmem:[%s3 + $0x1c] sm:$0xf]
        %v476 = vld [vmem:[%s3 + $0x20] sm:$0xf]
        %v477 = vld [vmem:[%s3 + $0x24] sm:$0xf]
        %v478 = vld [vmem:[%s3 + $0x28] sm:$0xf]
        %v479 = vld [vmem:[%s3 + $0x2c] sm:$0xf]
        %v480 = vld [vmem:[%s3 + $0x30] sm:$0xf]
        %v481 = vld [vmem:[%s3 + $0x34] sm:$0xf]
        %v482 = vld [vmem:[%s3 + $0x38] sm:$0xf]
        %v483 = vld [vmem:[%s3 + $0x3c] sm:$0xf]
        %v484 = vld [vmem:[%s4] sm:$0x1]
        %v486 = vlaneseq
        %v487 = vshrl.u32 %v486, 7
        %v488 = vsub.s32 0, %v487
        %v489 = vrot.slane %v484, %v488
        %v493 = vunpack.c.l.b16 %v466
        %v494 = vunpack.c.l.b16 %v467
        %v495 = vpack.c.b16 %v494, %v493
        %v513 = vunpack.c.l.b16 %v468
        %v514 = vunpack.c.l.b16 %v469
        %v515 = vunpack.c.l.b16 %v470
        %v516 = vunpack.c.l.b16 %v471
        %v517 = vunpack.c.l.b16 %v472
        %v518 = vunpack.c.l.b16 %v473
        %v519 = vunpack.c.l.b16 %v474
        %v520 = vunpack.c.l.b16 %v475
        %v521 = vunpack.c.l.b16 %v476
        %v522 = vunpack.c.l.b16 %v477
        %v523 = vunpack.c.l.b16 %v478
        %v524 = vunpack.c.l.b16 %v479
        %v525 = vunpack.c.l.b16 %v480
        %v526 = vunpack.c.l.b16 %v481
        %v527 = vunpack.c.l.b16 %v482
        %v528 = vunpack.c.l.b16 %v483
        %v529 = vpack.c.b16 %v514, %v513
        %v530 = vpack.c.b16 %v516, %v515
        %v531 = vpack.c.b16 %v518, %v517
        %v532 = vpack.c.b16 %v520, %v519
        %v533 = vpack.c.b16 %v522, %v521
        %v534 = vpack.c.b16 %v524, %v523
        %v535 = vpack.c.b16 %v526, %v525
        %v536 = vpack.c.b16 %v528, %v527
        %545 = vmatprep.subr.bf16.mxu0 0
        %546 = vmatpush1.bf16.msra.mxu0 %v536
        %547 = vmatprep.subr.bf16.mxu0 0
        %548 = vmatpush1.bf16.msra.mxu0 %v535
        %549 = vmatprep.subr.bf16.mxu0 0
        %550 = vmatpush1.bf16.msra.mxu0 %v534
        %551 = vmatprep.subr.bf16.mxu0 0
        %552 = vmatpush1.bf16.msra.mxu0 %v533
        %553 = vmatprep.subr.bf16.mxu0 0
        %554 = vmatpush1.bf16.msra.mxu0 %v532
        %555 = vmatprep.subr.bf16.mxu0 0
        %556 = vmatpush1.bf16.msra.mxu0 %v531
        %557 = vmatprep.subr.bf16.mxu0 0
        %558 = vmatpush1.bf16.msra.mxu0 %v530
        %559 = vmatprep.subr.bf16.mxu0 0
        %560 = vmatpush1.bf16.msra.mxu0 %v529
        %561 = vmatprep.subr.bf16.mxu0 0
        %562 = vmatpush2.bf16.msra.mxu0 0
        %563 = vmatprep.subr.bf16.mxu0 0
        %564 = vmatpush2.bf16.msra.mxu0 0
        %565 = vmatprep.subr.bf16.mxu0 0
        %566 = vmatpush2.bf16.msra.mxu0 0
        %567 = vmatprep.subr.bf16.mxu0 0
        %568 = vmatpush2.bf16.msra.mxu0 0
        %569 = vmatprep.subr.bf16.mxu0 0
        %570 = vmatpush2.bf16.msra.mxu0 0
        %571 = vmatprep.subr.bf16.mxu0 0
        %572 = vmatpush2.bf16.msra.mxu0 0
        %573 = vmatprep.subr.bf16.mxu0 0
        %574 = vmatpush2.bf16.msra.mxu0 0
        %575 = vmatprep.subr.bf16.mxu0 0
        %576 = vmatpush2.bf16.msra.mxu0 0
        %577 = vmatprep.mubr.bf16.mxu0 0
        %578 = vmatmul.mubr.bf16.gmra.mxu0 %v495
        %v579 = vpop.f32.mrf.mxu0
        %v580 = vadd.f32 %v489, %v579
        %v581 = vpop.f32.mrf.mxu0
        %v582 = vpop.f32.mrf.mxu0
        %v583 = vadd.f32 %v489, %v582
        %v584 = vpop.f32.mrf.mxu0
        %585 = vdwg.mxu0
        %v586 = vtanh.pop %v580
        %v587 = vtanh.pop %v583
        %v588 = vld [vmem:[%s5] sm:$0xf]
        %v589 = vld [vmem:[%s5 + $0x4] sm:$0xf]
        %v590 = vld [vmem:[%s5 + $0x8] sm:$0xf]
        %v591 = vld [vmem:[%s5 + $0xc] sm:$0xf]
        %v592 = vld [vmem:[%s5 + $0x10] sm:$0xf]
        %v593 = vld [vmem:[%s5 + $0x14] sm:$0xf]
        %v594 = vld [vmem:[%s5 + $0x18] sm:$0xf]
        %v595 = vld [vmem:[%s5 + $0x1c] sm:$0xf]
        %v596 = vld [vmem:[%s5 + $0x20] sm:$0xf]
        %v597 = vld [vmem:[%s5 + $0x24] sm:$0xf]
        %v598 = vld [vmem:[%s5 + $0x28] sm:$0xf]
        %v599 = vld [vmem:[%s5 + $0x2c] sm:$0xf]
        %v600 = vld [vmem:[%s5 + $0x30] sm:$0xf]
        %v601 = vld [vmem:[%s5 + $0x34] sm:$0xf]
        %v602 = vld [vmem:[%s5 + $0x38] sm:$0xf]
        %v603 = vld [vmem:[%s5 + $0x3c] sm:$0xf]
        %v604 = vld [vmem:[%s6] sm:$0x1]
        %v606 = vlaneseq
        %v607 = vshrl.u32 %v606, 7
        %v608 = vsub.s32 0, %v607
        %v609 = vrot.slane %v604, %v608
        %v627 = vunpack.c.l.b16 %v588
        %v628 = vunpack.c.l.b16 %v589
        %v629 = vunpack.c.l.b16 %v590
        %v630 = vunpack.c.l.b16 %v591
        %v631 = vunpack.c.l.b16 %v592
        %v632 = vunpack.c.l.b16 %v593
        %v633 = vunpack.c.l.b16 %v594
        %v634 = vunpack.c.l.b16 %v595
        %v635 = vunpack.c.l.b16 %v596
        %v636 = vunpack.c.l.b16 %v597
        %v637 = vunpack.c.l.b16 %v598
        %v638 = vunpack.c.l.b16 %v599
        %v639 = vunpack.c.l.b16 %v600
        %v640 = vunpack.c.l.b16 %v601
        %v641 = vunpack.c.l.b16 %v602
        %v642 = vunpack.c.l.b16 %v603
        %v643 = vpack.c.b16 %v628, %v627
        %v644 = vpack.c.b16 %v630, %v629
        %v645 = vpack.c.b16 %v632, %v631
        %v646 = vpack.c.b16 %v634, %v633
        %v647 = vpack.c.b16 %v636, %v635
        %v648 = vpack.c.b16 %v638, %v637
        %v649 = vpack.c.b16 %v640, %v639
        %v650 = vpack.c.b16 %v642, %v641
        %659 = vmatprep.subr.bf16.mxu0 0
        %660 = vmatpush1.bf16.msra.mxu0 %v650
        %661 = vmatprep.subr.bf16.mxu0 0
        %662 = vmatpush1.bf16.msra.mxu0 %v649
        %663 = vmatprep.subr.bf16.mxu0 0
        %664 = vmatpush1.bf16.msra.mxu0 %v648
        %665 = vmatprep.subr.bf16.mxu0 0
        %666 = vmatpush1.bf16.msra.mxu0 %v647
        %667 = vmatprep.subr.bf16.mxu0 0
        %668 = vmatpush1.bf16.msra.mxu0 %v646
        %669 = vmatprep.subr.bf16.mxu0 0
        %670 = vmatpush1.bf16.msra.mxu0 %v645
        %671 = vmatprep.subr.bf16.mxu0 0
        %672 = vmatpush1.bf16.msra.mxu0 %v644
        %673 = vmatprep.subr.bf16.mxu0 0
        %674 = vmatpush1.bf16.msra.mxu0 %v643
        %675 = vmatprep.subr.bf16.mxu0 0
        %676 = vmatpush2.bf16.msra.mxu0 0
        %677 = vmatprep.subr.bf16.mxu0 0
        %678 = vmatpush2.bf16.msra.mxu0 0
        %679 = vmatprep.subr.bf16.mxu0 0
        %680 = vmatpush2.bf16.msra.mxu0 0
        %681 = vmatprep.subr.bf16.mxu0 0
        %682 = vmatpush2.bf16.msra.mxu0 0
        %683 = vmatprep.subr.bf16.mxu0 0
        %684 = vmatpush2.bf16.msra.mxu0 0
        %685 = vmatprep.subr.bf16.mxu0 0
        %686 = vmatpush2.bf16.msra.mxu0 0
        %687 = vmatprep.subr.bf16.mxu0 0
        %688 = vmatpush2.bf16.msra.mxu0 0
        %689 = vmatprep.subr.bf16.mxu0 0
        %690 = vmatpush2.bf16.msra.mxu0 0
        %691 = vmatprep.mubr.bf16.mxu0 0
        %692 = vmatmul.mubr.bf16.gmra.mxu0 %v495
        %v693 = vpop.f32.mrf.mxu0
        %v694 = vadd.f32 %v609, %v693
        %v695 = vpop.f32.mrf.mxu0
        %v696 = vpop.f32.mrf.mxu0
        %v697 = vadd.f32 %v609, %v696
        %v698 = vpop.f32.mrf.mxu0
        %699 = vdwg.mxu0
        %v700 = vpack.c.bf16 %v697, %v694
        %v701 = vlaneseq
        %v702 = vand.u32 %v701, 127
        %vm703 = vcmp.lt.s32.totalorder %v702, 36
        %v704 = vsel %vm703, 0.0, -1e+30
        %v705 = vld [vmem:[%s1] sm:$0xf]
        %v706 = vld [vmem:[%s1 + $0x4] sm:$0xf]
        %v707 = vld [vmem:[%s1 + $0x8] sm:$0xf]
        %v708 = vld [vmem:[%s1 + $0xc] sm:$0xf]
        %v709 = vld [vmem:[%s2] sm:$0xf]
        %v710 = vld [vmem:[%s2 + $0x4] sm:$0xf]
        %v711 = vld [vmem:[%s2 + $0x8] sm:$0xf]
        %v712 = vld [vmem:[%s2 + $0xc] sm:$0xf]
        %v713 = vld [vmem:[%s2 + $0x10] sm:$0xf]
        %v718 = vunpack.c.l.b16 %v705
        %v719 = vunpack.c.l.b16 %v706
        %v720 = vunpack.c.l.b16 %v707
        %v721 = vunpack.c.l.b16 %v708
        %v722 = vpack.c.b16 %v719, %v718
        %v723 = vpack.c.b16 %v721, %v720
        %vm726 = vcmask 261120
        %v728 = vsel %vm726, %v700, 0
        %730 = vmatprep.subr.bf16.mxu0 0
        %731 = vmatpush1.bf16.msra.mxu0 0
        %732 = vmatprep.subr.bf16.mxu0 0
        %733 = vmatpush1.bf16.msra.mxu0 0
        %734 = vmatprep.subr.bf16.mxu0 0
        %735 = vmatpush1.bf16.msra.mxu0 0
        %736 = vmatprep.subr.bf16.mxu0 0
        %737 = vmatpush1.bf16.msra.mxu0 0
        %738 = vmatprep.subr.bf16.mxu0 0
        %739 = vmatpush1.bf16.msra.mxu0 0
        %740 = vmatprep.subr.bf16.mxu0 0
        %741 = vmatpush1.bf16.msra.mxu0 0
        %742 = vmatprep.subr.bf16.mxu0 0
        %743 = vmatpush1.bf16.msra.mxu0 %v723
        %744 = vmatprep.subr.bf16.mxu0 0
        %745 = vmatpush1.bf16.msra.mxu0 %v722
        %746 = vmatprep.subr.bf16.mxu0 0
        %747 = vmatpush2.bf16.msra.mxu0 0
        %748 = vmatprep.subr.bf16.mxu0 0
        %749 = vmatpush2.bf16.msra.mxu0 0
        %750 = vmatprep.subr.bf16.mxu0 0
        %751 = vmatpush2.bf16.msra.mxu0 0
        %752 = vmatprep.subr.bf16.mxu0 0
        %753 = vmatpush2.bf16.msra.mxu0 0
        %754 = vmatprep.subr.bf16.mxu0 0
        %755 = vmatpush2.bf16.msra.mxu0 0
        %756 = vmatprep.subr.bf16.mxu0 0
        %757 = vmatpush2.bf16.msra.mxu0 0
        %758 = vmatprep.subr.bf16.mxu0 0
        %759 = vmatpush2.bf16.msra.mxu0 0
        %760 = vmatprep.subr.bf16.mxu0 0
        %761 = vmatpush2.bf16.msra.mxu0 0
        %762 = vmatprep.mubr.bf16.mxu0 0
        %763 = vmatmul.mubr.bf16.gmra.mxu0 %v728
        %v764 = vpop.f32.mrf.mxu0
        %v765 = vadd.f32 0.0, %v764
        %v766 = vpop.f32.mrf.mxu0
        %v767 = vpop.f32.mrf.mxu0
        %v768 = vadd.f32 0.0, %v767
        %v769 = vpop.f32.mrf.mxu0
        %770 = vdwg.mxu0
        %v771 = vmul.f32 %v765, 0.17677669
        %v772 = vmul.f32 %v768, 0.17677669
        %v773 = vadd.f32 %v771, %v704
        %v774 = vadd.f32 %v772, %v704
        %vm775 = vcmask 326656
        %v776 = vsel %vm775, %v773, -inf
        %777 = vmax.xlane.f32.xlu0 %v776
        %v778 = vpop.xlane.xlu0 %777
        %v779 = vsel %vm775, %v774, -inf
        %780 = vmax.xlane.f32.xlu0 %v779
        %v781 = vpop.xlane.xlu0 %780
        %v782 = vsub.f32 %v773, %v778
        %v783 = vsub.f32 %v774, %v781
        %v784 = vmul.f32 %v782, 1.442695
        %v785 = vpow.pop %v784
        %v786 = vmul.f32 %v783, 1.442695
        %v787 = vpow.pop %v786
        %v788 = vsel %vm775, %v785, 0.0
        %789 = vadd.xlane.f32.xlu0 %v788
        %v790 = vpop.xlane.xlu0 %789
        %v791 = vsel %vm775, %v787, 0.0
        %792 = vadd.xlane.f32.xlu0 %v791
        %v793 = vpop.xlane.xlu0 %792
        %v794 = vrcp.pop %v790
        %v795 = vrcp.pop %v793
        %v796 = vmul.f32 %v785, %v794
        %v797 = vmul.f32 %v787, %v795
        %v798 = vpack.c.bf16 %v797, %v796
        %v804 = vunpack.c.l.b16 %v709
        %v805 = vunpack.c.l.b16 %v710
        %v806 = vunpack.c.l.b16 %v711
        %v807 = vunpack.c.l.b16 %v712
        %v808 = vunpack.c.l.b16 %v713
        %v809 = vpack.c.b16 %v805, %v804
        %v810 = vpack.c.b16 %v807, %v806
        %v811 = vpack.c.b16 %v808, %v808
        %v815 = vsel %vm775, %v798, 0
        %vm817 = vcmask 1043456
        %v819 = vsel %vm817, %v811, 0
        %821 = vmatprep.subr.bf16.mxu0 0
        %822 = vmatpush1.bf16.msra.mxu0 0
        %823 = vmatprep.subr.bf16.mxu0 0
        %824 = vmatpush1.bf16.msra.mxu0 0
        %825 = vmatprep.subr.bf16.mxu0 0
        %826 = vmatpush1.bf16.msra.mxu0 0
        %827 = vmatprep.subr.bf16.mxu0 0
        %828 = vmatpush1.bf16.msra.mxu0 0
        %829 = vmatprep.subr.bf16.mxu0 0
        %830 = vmatpush1.bf16.msra.mxu0 0
        %831 = vmatprep.subr.bf16.mxu0 0
        %832 = vmatpush1.bf16.msra.mxu0 %v819
        %833 = vmatprep.subr.bf16.mxu0 0
        %834 = vmatpush1.bf16.msra.mxu0 %v810
        %835 = vmatprep.subr.bf16.mxu0 0
        %836 = vmatpush1.bf16.msra.mxu0 %v809
        %837 = vmatprep.subr.bf16.mxu0 0
        %838 = vmatpush2.bf16.msra.mxu0 0
        %839 = vmatprep.subr.bf16.mxu0 0
        %840 = vmatpush2.bf16.msra.mxu0 0
        %841 = vmatprep.subr.bf16.mxu0 0
        %842 = vmatpush2.bf16.msra.mxu0 0
        %843 = vmatprep.subr.bf16.mxu0 0
        %844 = vmatpush2.bf16.msra.mxu0 0
        %845 = vmatprep.subr.bf16.mxu0 0
        %846 = vmatpush2.bf16.msra.mxu0 0
        %847 = vmatprep.subr.bf16.mxu0 0
        %848 = vmatpush2.bf16.msra.mxu0 0
        %849 = vmatprep.subr.bf16.mxu0 0
        %850 = vmatpush2.bf16.msra.mxu0 0
        %851 = vmatprep.subr.bf16.mxu0 0
        %852 = vmatpush2.bf16.msra.mxu0 0
        %853 = vmatprep.mubr.bf16.mxu0 0
        %854 = vmatmul.mubr.bf16.gmra.mxu0 %v815
        %v855 = vpop.f32.mrf.mxu0
        %v856 = vadd.f32 0.0, %v855
        %v857 = vpop.f32.mrf.mxu0
        %v858 = vpop.f32.mrf.mxu0
        %v859 = vadd.f32 0.0, %v858
        %v860 = vpop.f32.mrf.mxu0
        %861 = vdwg.mxu0
        %v862 = vld [vmem:[%s1 + $0x10] sm:$0xf]
        %v863 = vld [vmem:[%s1 + $0x14] sm:$0xf]
        %v864 = vld [vmem:[%s1 + $0x18] sm:$0xf]
        %v865 = vld [vmem:[%s1 + $0x1c] sm:$0xf]
        %867 = vrot.lane.b32.xlu0 %v700, 96
        %v868 = vpop.permute.xlu0 %867
        %v873 = vunpack.c.l.b16 %v862
        %v874 = vunpack.c.l.b16 %v863
        %v875 = vunpack.c.l.b16 %v864
        %v876 = vunpack.c.l.b16 %v865
        %v877 = vpack.c.b16 %v874, %v873
        %v878 = vpack.c.b16 %v876, %v875
        %v882 = vsel %vm726, %v868, 0
        %884 = vmatprep.subr.bf16.mxu0 0
        %885 = vmatpush1.bf16.msra.mxu0 0
        %886 = vmatprep.subr.bf16.mxu0 0
        %887 = vmatpush1.bf16.msra.mxu0 0
        %888 = vmatprep.subr.bf16.mxu0 0
        %889 = vmatpush1.bf16.msra.mxu0 0
        %890 = vmatprep.subr.bf16.mxu0 0
        %891 = vmatpush1.bf16.msra.mxu0 0
        %892 = vmatprep.subr.bf16.mxu0 0
        %893 = vmatpush1.bf16.msra.mxu0 0
        %894 = vmatprep.subr.bf16.mxu0 0
        %895 = vmatpush1.bf16.msra.mxu0 0
        %896 = vmatprep.subr.bf16.mxu0 0
        %897 = vmatpush1.bf16.msra.mxu0 %v878
        %898 = vmatprep.subr.bf16.mxu0 0
        %899 = vmatpush1.bf16.msra.mxu0 %v877
        %900 = vmatprep.subr.bf16.mxu0 0
        %901 = vmatpush2.bf16.msra.mxu0 0
        %902 = vmatprep.subr.bf16.mxu0 0
        %903 = vmatpush2.bf16.msra.mxu0 0
        %904 = vmatprep.subr.bf16.mxu0 0
        %905 = vmatpush2.bf16.msra.mxu0 0
        %906 = vmatprep.subr.bf16.mxu0 0
        %907 = vmatpush2.bf16.msra.mxu0 0
        %908 = vmatprep.subr.bf16.mxu0 0
        %909 = vmatpush2.bf16.msra.mxu0 0
        %910 = vmatprep.subr.bf16.mxu0 0
        %911 = vmatpush2.bf16.msra.mxu0 0
        %912 = vmatprep.subr.bf16.mxu0 0
        %913 = vmatpush2.bf16.msra.mxu0 0
        %914 = vmatprep.subr.bf16.mxu0 0
        %915 = vmatpush2.bf16.msra.mxu0 0
        %916 = vmatprep.mubr.bf16.mxu0 0
        %917 = vmatmul.mubr.bf16.gmra.mxu0 %v882
        %v918 = vpop.f32.mrf.mxu0
        %v919 = vadd.f32 0.0, %v918
        %v920 = vpop.f32.mrf.mxu0
        %v921 = vpop.f32.mrf.mxu0
        %v922 = vadd.f32 0.0, %v921
        %v923 = vpop.f32.mrf.mxu0
        %924 = vdwg.mxu0
        %v925 = vmul.f32 %v919, 0.17677669
        %v926 = vmul.f32 %v922, 0.17677669
        %v927 = vadd.f32 %v925, %v704
        %v928 = vadd.f32 %v926, %v704
        %v929 = vsel %vm775, %v927, -inf
        %930 = vmax.xlane.f32.xlu0 %v929
        %v931 = vpop.xlane.xlu0 %930
        %v932 = vsel %vm775, %v928, -inf
        %933 = vmax.xlane.f32.xlu0 %v932
        %v934 = vpop.xlane.xlu0 %933
        %v935 = vsub.f32 %v927, %v931
        %v936 = vsub.f32 %v928, %v934
        %v937 = vmul.f32 %v935, 1.442695
        %v938 = vpow.pop %v937
        %v939 = vmul.f32 %v936, 1.442695
        %v940 = vpow.pop %v939
        %v941 = vsel %vm775, %v938, 0.0
        %942 = vadd.xlane.f32.xlu0 %v941
        %v943 = vpop.xlane.xlu0 %942
        %v944 = vsel %vm775, %v940, 0.0
        %945 = vadd.xlane.f32.xlu0 %v944
        %v946 = vpop.xlane.xlu0 %945
        %v947 = vrcp.pop %v943
        %v948 = vrcp.pop %v946
        %v949 = vmul.f32 %v938, %v947
        %v950 = vmul.f32 %v940, %v948
        %v951 = vpack.c.bf16 %v950, %v949
        %952 = vrot.lane.b32.xlu0 %v809, 96
        %v953 = vpop.permute.xlu0 %952
        %954 = vrot.lane.b32.xlu0 %v810, 96
        %v955 = vpop.permute.xlu0 %954
        %956 = vrot.lane.b32.xlu0 %v811, 96
        %v957 = vpop.permute.xlu0 %956
        %v961 = vsel %vm775, %v951, 0
        %v964 = vsel %vm817, %v957, 0
        %966 = vmatprep.subr.bf16.mxu0 0
        %967 = vmatpush1.bf16.msra.mxu0 0
        %968 = vmatprep.subr.bf16.mxu0 0
        %969 = vmatpush1.bf16.msra.mxu0 0
        %970 = vmatprep.subr.bf16.mxu0 0
        %971 = vmatpush1.bf16.msra.mxu0 0
        %972 = vmatprep.subr.bf16.mxu0 0
        %973 = vmatpush1.bf16.msra.mxu0 0
        %974 = vmatprep.subr.bf16.mxu0 0
        %975 = vmatpush1.bf16.msra.mxu0 0
        %976 = vmatprep.subr.bf16.mxu0 0
        %977 = vmatpush1.bf16.msra.mxu0 %v964
        %978 = vmatprep.subr.bf16.mxu0 0
        %979 = vmatpush1.bf16.msra.mxu0 %v955
        %980 = vmatprep.subr.bf16.mxu0 0
        %981 = vmatpush1.bf16.msra.mxu0 %v953
        %982 = vmatprep.subr.bf16.mxu0 0
        %983 = vmatpush2.bf16.msra.mxu0 0
        %984 = vmatprep.subr.bf16.mxu0 0
        %985 = vmatpush2.bf16.msra.mxu0 0
        %986 = vmatprep.subr.bf16.mxu0 0
        %987 = vmatpush2.bf16.msra.mxu0 0
        %988 = vmatprep.subr.bf16.mxu0 0
        %989 = vmatpush2.bf16.msra.mxu0 0
        %990 = vmatprep.subr.bf16.mxu0 0
        %991 = vmatpush2.bf16.msra.mxu0 0
        %992 = vmatprep.subr.bf16.mxu0 0
        %993 = vmatpush2.bf16.msra.mxu0 0
        %994 = vmatprep.subr.bf16.mxu0 0
        %995 = vmatpush2.bf16.msra.mxu0 0
        %996 = vmatprep.subr.bf16.mxu0 0
        %997 = vmatpush2.bf16.msra.mxu0 0
        %998 = vmatprep.mubr.bf16.mxu0 0
        %999 = vmatmul.mubr.bf16.gmra.mxu0 %v961
        %v1000 = vpop.f32.mrf.mxu0
        %v1001 = vadd.f32 0.0, %v1000
        %v1002 = vpop.f32.mrf.mxu0
        %v1003 = vpop.f32.mrf.mxu0
        %v1004 = vadd.f32 0.0, %v1003
        %v1005 = vpop.f32.mrf.mxu0
        %1006 = vdwg.mxu0
        %v1007 = vld [vmem:[%s1 + $0x20] sm:$0xf]
        %v1008 = vld [vmem:[%s1 + $0x24] sm:$0xf]
        %v1009 = vld [vmem:[%s1 + $0x28] sm:$0xf]
        %v1010 = vld [vmem:[%s1 + $0x2c] sm:$0xf]
        %1011 = vrot.lane.b32.xlu0 %v700, 64
        %v1012 = vpop.permute.xlu0 %1011
        %v1017 = vunpack.c.l.b16 %v1007
        %v1018 = vunpack.c.l.b16 %v1008
        %v1019 = vunpack.c.l.b16 %v1009
        %v1020 = vunpack.c.l.b16 %v1010
        %v1021 = vpack.c.b16 %v1018, %v1017
        %v1022 = vpack.c.b16 %v1020, %v1019
        %v1026 = vsel %vm726, %v1012, 0
        %1028 = vmatprep.subr.bf16.mxu0 0
        %1029 = vmatpush1.bf16.msra.mxu0 0
        %1030 = vmatprep.subr.bf16.mxu0 0
        %1031 = vmatpush1.bf16.msra.mxu0 0
        %1032 = vmatprep.subr.bf16.mxu0 0
        %1033 = vmatpush1.bf16.msra.mxu0 0
        %1034 = vmatprep.subr.bf16.mxu0 0
        %1035 = vmatpush1.bf16.msra.mxu0 0
        %1036 = vmatprep.subr.bf16.mxu0 0
        %1037 = vmatpush1.bf16.msra.mxu0 0
        %1038 = vmatprep.subr.bf16.mxu0 0
        %1039 = vmatpush1.bf16.msra.mxu0 0
        %1040 = vmatprep.subr.bf16.mxu0 0
        %1041 = vmatpush1.bf16.msra.mxu0 %v1022
        %1042 = vmatprep.subr.bf16.mxu0 0
        %1043 = vmatpush1.bf16.msra.mxu0 %v1021
        %1044 = vmatprep.subr.bf16.mxu0 0
        %1045 = vmatpush2.bf16.msra.mxu0 0
        %1046 = vmatprep.subr.bf16.mxu0 0
        %1047 = vmatpush2.bf16.msra.mxu0 0
        %1048 = vmatprep.subr.bf16.mxu0 0
        %1049 = vmatpush2.bf16.msra.mxu0 0
        %1050 = vmatprep.subr.bf16.mxu0 0
        %1051 = vmatpush2.bf16.msra.mxu0 0
        %1052 = vmatprep.subr.bf16.mxu0 0
        %1053 = vmatpush2.bf16.msra.mxu0 0
        %1054 = vmatprep.subr.bf16.mxu0 0
        %1055 = vmatpush2.bf16.msra.mxu0 0
        %1056 = vmatprep.subr.bf16.mxu0 0
        %1057 = vmatpush2.bf16.msra.mxu0 0
        %1058 = vmatprep.subr.bf16.mxu0 0
        %1059 = vmatpush2.bf16.msra.mxu0 0
        %1060 = vmatprep.mubr.bf16.mxu0 0
        %1061 = vmatmul.mubr.bf16.gmra.mxu0 %v1026
        %v1062 = vpop.f32.mrf.mxu0
        %v1063 = vadd.f32 0.0, %v1062
        %v1064 = vpop.f32.mrf.mxu0
        %v1065 = vpop.f32.mrf.mxu0
        %v1066 = vadd.f32 0.0, %v1065
        %v1067 = vpop.f32.mrf.mxu0
        %1068 = vdwg.mxu0
        %v1069 = vmul.f32 %v1063, 0.17677669
        %v1070 = vmul.f32 %v1066, 0.17677669
        %v1071 = vadd.f32 %v1069, %v704
        %v1072 = vadd.f32 %v1070, %v704
        %v1073 = vsel %vm775, %v1071, -inf
        %1074 = vmax.xlane.f32.xlu0 %v1073
        %v1075 = vpop.xlane.xlu0 %1074
        %v1076 = vsel %vm775, %v1072, -inf
        %1077 = vmax.xlane.f32.xlu0 %v1076
        %v1078 = vpop.xlane.xlu0 %1077
        %v1079 = vsub.f32 %v1071, %v1075
        %v1080 = vsub.f32 %v1072, %v1078
        %v1081 = vmul.f32 %v1079, 1.442695
        %v1082 = vpow.pop %v1081
        %v1083 = vmul.f32 %v1080, 1.442695
        %v1084 = vpow.pop %v1083
        %v1085 = vsel %vm775, %v1082, 0.0
        %1086 = vadd.xlane.f32.xlu0 %v1085
        %v1087 = vpop.xlane.xlu0 %1086
        %v1088 = vsel %vm775, %v1084, 0.0
        %1089 = vadd.xlane.f32.xlu0 %v1088
        %v1090 = vpop.xlane.xlu0 %1089
        %v1091 = vrcp.pop %v1087
        %v1092 = vrcp.pop %v1090
        %v1093 = vmul.f32 %v1082, %v1091
        %v1094 = vmul.f32 %v1084, %v1092
        %v1095 = vpack.c.bf16 %v1094, %v1093
        %1096 = vrot.lane.b32.xlu0 %v809, 64
        %v1097 = vpop.permute.xlu0 %1096
        %1098 = vrot.lane.b32.xlu0 %v810, 64
        %v1099 = vpop.permute.xlu0 %1098
        %1100 = vrot.lane.b32.xlu0 %v811, 64
        %v1101 = vpop.permute.xlu0 %1100
        %v1105 = vsel %vm775, %v1095, 0
        %v1108 = vsel %vm817, %v1101, 0
        %1110 = vmatprep.subr.bf16.mxu0 0
        %1111 = vmatpush1.bf16.msra.mxu0 0
        %1112 = vmatprep.subr.bf16.mxu0 0
        %1113 = vmatpush1.bf16.msra.mxu0 0
        %1114 = vmatprep.subr.bf16.mxu0 0
        %1115 = vmatpush1.bf16.msra.mxu0 0
        %1116 = vmatprep.subr.bf16.mxu0 0
        %1117 = vmatpush1.bf16.msra.mxu0 0
        %1118 = vmatprep.subr.bf16.mxu0 0
        %1119 = vmatpush1.bf16.msra.mxu0 0
        %1120 = vmatprep.subr.bf16.mxu0 0
        %1121 = vmatpush1.bf16.msra.mxu0 %v1108
        %1122 = vmatprep.subr.bf16.mxu0 0
        %1123 = vmatpush1.bf16.msra.mxu0 %v1099
        %1124 = vmatprep.subr.bf16.mxu0 0
        %1125 = vmatpush1.bf16.msra.mxu0 %v1097
        %1126 = vmatprep.subr.bf16.mxu0 0
        %1127 = vmatpush2.bf16.msra.mxu0 0
        %1128 = vmatprep.subr.bf16.mxu0 0
        %1129 = vmatpush2.bf16.msra.mxu0 0
        %1130 = vmatprep.subr.bf16.mxu0 0
        %1131 = vmatpush2.bf16.msra.mxu0 0
        %1132 = vmatprep.subr.bf16.mxu0 0
        %1133 = vmatpush2.bf16.msra.mxu0 0
        %1134 = vmatprep.subr.bf16.mxu0 0
        %1135 = vmatpush2.bf16.msra.mxu0 0
        %1136 = vmatprep.subr.bf16.mxu0 0
        %1137 = vmatpush2.bf16.msra.mxu0 0
        %1138 = vmatprep.subr.bf16.mxu0 0
        %1139 = vmatpush2.bf16.msra.mxu0 0
        %1140 = vmatprep.subr.bf16.mxu0 0
        %1141 = vmatpush2.bf16.msra.mxu0 0
        %1142 = vmatprep.mubr.bf16.mxu0 0
        %1143 = vmatmul.mubr.bf16.gmra.mxu0 %v1105
        %v1144 = vpop.f32.mrf.mxu0
        %v1145 = vadd.f32 0.0, %v1144
        %v1146 = vpop.f32.mrf.mxu0
        %v1147 = vpop.f32.mrf.mxu0
        %v1148 = vadd.f32 0.0, %v1147
        %v1149 = vpop.f32.mrf.mxu0
        %1150 = vdwg.mxu0
        %v1151 = vld [vmem:[%s1 + $0x30] sm:$0xf]
        %v1152 = vld [vmem:[%s1 + $0x34] sm:$0xf]
        %v1153 = vld [vmem:[%s1 + $0x38] sm:$0xf]
        %v1154 = vld [vmem:[%s1 + $0x3c] sm:$0xf]
        %1155 = vrot.lane.b32.xlu0 %v700, 32
        %v1156 = vpop.permute.xlu0 %1155
        %v1161 = vunpack.c.l.b16 %v1151
        %v1162 = vunpack.c.l.b16 %v1152
        %v1163 = vunpack.c.l.b16 %v1153
        %v1164 = vunpack.c.l.b16 %v1154
        %v1165 = vpack.c.b16 %v1162, %v1161
        %v1166 = vpack.c.b16 %v1164, %v1163
        %v1170 = vsel %vm726, %v1156, 0
        %1172 = vmatprep.subr.bf16.mxu0 0
        %1173 = vmatpush1.bf16.msra.mxu0 0
        %1174 = vmatprep.subr.bf16.mxu0 0
        %1175 = vmatpush1.bf16.msra.mxu0 0
        %1176 = vmatprep.subr.bf16.mxu0 0
        %1177 = vmatpush1.bf16.msra.mxu0 0
        %1178 = vmatprep.subr.bf16.mxu0 0
        %1179 = vmatpush1.bf16.msra.mxu0 0
        %1180 = vmatprep.subr.bf16.mxu0 0
        %1181 = vmatpush1.bf16.msra.mxu0 0
        %1182 = vmatprep.subr.bf16.mxu0 0
        %1183 = vmatpush1.bf16.msra.mxu0 0
        %1184 = vmatprep.subr.bf16.mxu0 0
        %1185 = vmatpush1.bf16.msra.mxu0 %v1166
        %1186 = vmatprep.subr.bf16.mxu0 0
        %1187 = vmatpush1.bf16.msra.mxu0 %v1165
        %1188 = vmatprep.subr.bf16.mxu0 0
        %1189 = vmatpush2.bf16.msra.mxu0 0
        %1190 = vmatprep.subr.bf16.mxu0 0
        %1191 = vmatpush2.bf16.msra.mxu0 0
        %1192 = vmatprep.subr.bf16.mxu0 0
        %1193 = vmatpush2.bf16.msra.mxu0 0
        %1194 = vmatprep.subr.bf16.mxu0 0
        %1195 = vmatpush2.bf16.msra.mxu0 0
        %1196 = vmatprep.subr.bf16.mxu0 0
        %1197 = vmatpush2.bf16.msra.mxu0 0
        %1198 = vmatprep.subr.bf16.mxu0 0
        %1199 = vmatpush2.bf16.msra.mxu0 0
        %1200 = vmatprep.subr.bf16.mxu0 0
        %1201 = vmatpush2.bf16.msra.mxu0 0
        %1202 = vmatprep.subr.bf16.mxu0 0
        %1203 = vmatpush2.bf16.msra.mxu0 0
        %1204 = vmatprep.mubr.bf16.mxu0 0
        %1205 = vmatmul.mubr.bf16.gmra.mxu0 %v1170
        %v1206 = vpop.f32.mrf.mxu0
        %v1207 = vadd.f32 0.0, %v1206
        %v1208 = vpop.f32.mrf.mxu0
        %v1209 = vpop.f32.mrf.mxu0
        %v1210 = vadd.f32 0.0, %v1209
        %v1211 = vpop.f32.mrf.mxu0
        %1212 = vdwg.mxu0
        %v1213 = vmul.f32 %v1207, 0.17677669
        %v1214 = vmul.f32 %v1210, 0.17677669
        %v1215 = vadd.f32 %v1213, %v704
        %v1216 = vadd.f32 %v1214, %v704
        %v1217 = vsel %vm775, %v1215, -inf
        %1218 = vmax.xlane.f32.xlu0 %v1217
        %v1219 = vpop.xlane.xlu0 %1218
        %v1220 = vsel %vm775, %v1216, -inf
        %1221 = vmax.xlane.f32.xlu0 %v1220
        %v1222 = vpop.xlane.xlu0 %1221
        %v1223 = vsub.f32 %v1215, %v1219
        %v1224 = vsub.f32 %v1216, %v1222
        %v1225 = vmul.f32 %v1223, 1.442695
        %v1226 = vpow.pop %v1225
        %v1227 = vmul.f32 %v1224, 1.442695
        %v1228 = vpow.pop %v1227
        %v1229 = vsel %vm775, %v1226, 0.0
        %1230 = vadd.xlane.f32.xlu0 %v1229
        %v1231 = vpop.xlane.xlu0 %1230
        %v1232 = vsel %vm775, %v1228, 0.0
        %1233 = vadd.xlane.f32.xlu0 %v1232
        %v1234 = vpop.xlane.xlu0 %1233
        %v1235 = vrcp.pop %v1231
        %v1236 = vrcp.pop %v1234
        %v1237 = vmul.f32 %v1226, %v1235
        %v1238 = vmul.f32 %v1228, %v1236
        %v1239 = vpack.c.bf16 %v1238, %v1237
        %1240 = vrot.lane.b32.xlu0 %v809, 32
        %v1241 = vpop.permute.xlu0 %1240
        %1242 = vrot.lane.b32.xlu0 %v810, 32
        %v1243 = vpop.permute.xlu0 %1242
        %1244 = vrot.lane.b32.xlu0 %v811, 32
        %v1245 = vpop.permute.xlu0 %1244
        %v1249 = vsel %vm775, %v1239, 0
        %v1252 = vsel %vm817, %v1245, 0
        %1254 = vmatprep.subr.bf16.mxu0 0
        %1255 = vmatpush1.bf16.msra.mxu0 0
        %1256 = vmatprep.subr.bf16.mxu0 0
        %1257 = vmatpush1.bf16.msra.mxu0 0
        %1258 = vmatprep.subr.bf16.mxu0 0
        %1259 = vmatpush1.bf16.msra.mxu0 0
        %1260 = vmatprep.subr.bf16.mxu0 0
        %1261 = vmatpush1.bf16.msra.mxu0 0
        %1262 = vmatprep.subr.bf16.mxu0 0
        %1263 = vmatpush1.bf16.msra.mxu0 0
        %1264 = vmatprep.subr.bf16.mxu0 0
        %1265 = vmatpush1.bf16.msra.mxu0 %v1252
        %1266 = vmatprep.subr.bf16.mxu0 0
        %1267 = vmatpush1.bf16.msra.mxu0 %v1243
        %1268 = vmatprep.subr.bf16.mxu0 0
        %1269 = vmatpush1.bf16.msra.mxu0 %v1241
        %1270 = vmatprep.subr.bf16.mxu0 0
        %1271 = vmatpush2.bf16.msra.mxu0 0
        %1272 = vmatprep.subr.bf16.mxu0 0
        %1273 = vmatpush2.bf16.msra.mxu0 0
        %1274 = vmatprep.subr.bf16.mxu0 0
        %1275 = vmatpush2.bf16.msra.mxu0 0
        %1276 = vmatprep.subr.bf16.mxu0 0
        %1277 = vmatpush2.bf16.msra.mxu0 0
        %1278 = vmatprep.subr.bf16.mxu0 0
        %1279 = vmatpush2.bf16.msra.mxu0 0
        %1280 = vmatprep.subr.bf16.mxu0 0
        %1281 = vmatpush2.bf16.msra.mxu0 0
        %1282 = vmatprep.subr.bf16.mxu0 0
        %1283 = vmatpush2.bf16.msra.mxu0 0
        %1284 = vmatprep.subr.bf16.mxu0 0
        %1285 = vmatpush2.bf16.msra.mxu0 0
        %1286 = vmatprep.mubr.bf16.mxu0 0
        %1287 = vmatmul.mubr.bf16.gmra.mxu0 %v1249
        %v1288 = vpop.f32.mrf.mxu0
        %v1289 = vadd.f32 0.0, %v1288
        %v1290 = vpop.f32.mrf.mxu0
        %v1291 = vpop.f32.mrf.mxu0
        %v1292 = vadd.f32 0.0, %v1291
        %v1293 = vpop.f32.mrf.mxu0
        %1294 = vdwg.mxu0
        %1297 = vrot.lane.b32.xlu0 %v1001, 32
        %v1298 = vpop.permute.xlu0 %1297
        %1299 = vrot.lane.b32.xlu0 %v1004, 32
        %v1300 = vpop.permute.xlu0 %1299
        %1305 = vrot.lane.b32.xlu0 %v1145, 64
        %v1306 = vpop.permute.xlu0 %1305
        %1307 = vrot.lane.b32.xlu0 %v1148, 64
        %v1308 = vpop.permute.xlu0 %1307
        %1313 = vrot.lane.b32.xlu0 %v1289, 96
        %v1314 = vpop.permute.xlu0 %1313
        %1315 = vrot.lane.b32.xlu0 %v1292, 96
        %v1316 = vpop.permute.xlu0 %1315
        %v1319 = vsel %vm726, %v856, %v1298
        %v1320 = vsel %vm726, %v859, %v1300
        %vm1321 = vcmask 523264
        %v1322 = vsel %vm1321, %v1319, %v1306
        %v1323 = vsel %vm1321, %v1320, %v1308
        %vm1324 = vcmask 785408
        %v1325 = vsel %vm1324, %v1322, %v1314
        %v1326 = vsel %vm1324, %v1323, %v1316
        %v1327 = vpack.c.bf16 %v1326, %v1325
        %v1328 = vld [vmem:[#allocation6] sm:$0xf]
        %v1329 = vld [vmem:[#allocation6 + $0x4] sm:$0xf]
        %v1330 = vld [vmem:[#allocation6 + $0x8] sm:$0xf]
        %v1331 = vld [vmem:[#allocation6 + $0xc] sm:$0xf]
        %v1332 = vld [vmem:[#allocation6 + $0x10] sm:$0xf]
        %v1333 = vld [vmem:[#allocation6 + $0x14] sm:$0xf]
        %v1334 = vld [vmem:[#allocation6 + $0x18] sm:$0xf]
        %v1335 = vld [vmem:[#allocation6 + $0x1c] sm:$0xf]
        %v1336 = vld [vmem:[#allocation6 + $0x20] sm:$0xf]
        %v1337 = vld [vmem:[#allocation6 + $0x24] sm:$0xf]
        %v1338 = vld [vmem:[#allocation6 + $0x28] sm:$0xf]
        %v1339 = vld [vmem:[#allocation6 + $0x2c] sm:$0xf]
        %v1340 = vld [vmem:[#allocation6 + $0x30] sm:$0xf]
        %v1341 = vld [vmem:[#allocation6 + $0x34] sm:$0xf]
        %v1342 = vld [vmem:[#allocation6 + $0x38] sm:$0xf]
        %v1343 = vld [vmem:[#allocation6 + $0x3c] sm:$0xf]
        %v1344 = vld [vmem:[%s8] sm:$0x1]
        %v1346 = vlaneseq
        %v1347 = vshrl.u32 %v1346, 7
        %v1348 = vsub.s32 0, %v1347
        %v1349 = vrot.slane %v1344, %v1348
        %v1367 = vunpack.c.l.b16 %v1328
        %v1368 = vunpack.c.l.b16 %v1329
        %v1369 = vunpack.c.l.b16 %v1330
        %v1370 = vunpack.c.l.b16 %v1331
        %v1371 = vunpack.c.l.b16 %v1332
        %v1372 = vunpack.c.l.b16 %v1333
        %v1373 = vunpack.c.l.b16 %v1334
        %v1374 = vunpack.c.l.b16 %v1335
        %v1375 = vunpack.c.l.b16 %v1336
        %v1376 = vunpack.c.l.b16 %v1337
        %v1377 = vunpack.c.l.b16 %v1338
        %v1378 = vunpack.c.l.b16 %v1339
        %v1379 = vunpack.c.l.b16 %v1340
        %v1380 = vunpack.c.l.b16 %v1341
        %v1381 = vunpack.c.l.b16 %v1342
        %v1382 = vunpack.c.l.b16 %v1343
        %v1383 = vpack.c.b16 %v1368, %v1367
        %v1384 = vpack.c.b16 %v1370, %v1369
        %v1385 = vpack.c.b16 %v1372, %v1371
        %v1386 = vpack.c.b16 %v1374, %v1373
        %v1387 = vpack.c.b16 %v1376, %v1375
        %v1388 = vpack.c.b16 %v1378, %v1377
        %v1389 = vpack.c.b16 %v1380, %v1379
        %v1390 = vpack.c.b16 %v1382, %v1381
        %1399 = vmatprep.subr.bf16.mxu0 0
        %1400 = vmatpush1.bf16.msra.mxu0 %v1390
        %1401 = vmatprep.subr.bf16.mxu0 0
        %1402 = vmatpush1.bf16.msra.mxu0 %v1389
        %1403 = vmatprep.subr.bf16.mxu0 0
        %1404 = vmatpush1.bf16.msra.mxu0 %v1388
        %1405 = vmatprep.subr.bf16.mxu0 0
        %1406 = vmatpush1.bf16.msra.mxu0 %v1387
        %1407 = vmatprep.subr.bf16.mxu0 0
        %1408 = vmatpush1.bf16.msra.mxu0 %v1386
        %1409 = vmatprep.subr.bf16.mxu0 0
        %1410 = vmatpush1.bf16.msra.mxu0 %v1385
        %1411 = vmatprep.subr.bf16.mxu0 0
        %1412 = vmatpush1.bf16.msra.mxu0 %v1384
        %1413 = vmatprep.subr.bf16.mxu0 0
        %1414 = vmatpush1.bf16.msra.mxu0 %v1383
        %1415 = vmatprep.subr.bf16.mxu0 0
        %1416 = vmatpush2.bf16.msra.mxu0 0
        %1417 = vmatprep.subr.bf16.mxu0 0
        %1418 = vmatpush2.bf16.msra.mxu0 0
        %1419 = vmatprep.subr.bf16.mxu0 0
        %1420 = vmatpush2.bf16.msra.mxu0 0
        %1421 = vmatprep.subr.bf16.mxu0 0
        %1422 = vmatpush2.bf16.msra.mxu0 0
        %1423 = vmatprep.subr.bf16.mxu0 0
        %1424 = vmatpush2.bf16.msra.mxu0 0
        %1425 = vmatprep.subr.bf16.mxu0 0
        %1426 = vmatpush2.bf16.msra.mxu0 0
        %1427 = vmatprep.subr.bf16.mxu0 0
        %1428 = vmatpush2.bf16.msra.mxu0 0
        %1429 = vmatprep.subr.bf16.mxu0 0
        %1430 = vmatpush2.bf16.msra.mxu0 0
        %1431 = vmatprep.mubr.bf16.mxu0 0
        %1432 = vmatmul.mubr.bf16.gmra.mxu0 %v1327
        %v1433 = vpop.f32.mrf.mxu0
        %v1434 = vadd.f32 %v1349, %v1433
        %v1435 = vpop.f32.mrf.mxu0
        %v1436 = vpop.f32.mrf.mxu0
        %v1437 = vadd.f32 %v1349, %v1436
        %v1438 = vpop.f32.mrf.mxu0
        %1439 = vdwg.mxu0
        %v1440 = vsub.f32 %v586, %v1434
        %v1441 = vsub.f32 %v587, %v1437
        %v1442 = vmul.f32 %v1440, %v1440
        %v1443 = vmul.f32 %v1441, %v1441
        %1444 = vst [vmem:[%s449] sm:$0xff] %v1442
        %1445 = vst [vmem:[%s449 + $0x8] sm:$0xff] %v1443
        %v1446 = vpack.c.bf16 %v1443, %v1442
        %v1447 = vld [vmem:[%s9] sm:$0xf]
        %v1448 = vld [vmem:[%s9 + $0x4] sm:$0xf]
        %v1449 = vld [vmem:[%s9 + $0x8] sm:$0xf]
        %v1450 = vld [vmem:[%s9 + $0xc] sm:$0xf]
        %v1451 = vld [vmem:[%s9 + $0x10] sm:$0xf]
        %v1452 = vld [vmem:[%s9 + $0x14] sm:$0xf]
        %v1453 = vld [vmem:[%s9 + $0x18] sm:$0xf]
        %v1454 = vld [vmem:[%s9 + $0x1c] sm:$0xf]
        %v1455 = vld [vmem:[%s9 + $0x20] sm:$0xf]
        %v1456 = vld [vmem:[%s9 + $0x24] sm:$0xf]
        %v1457 = vld [vmem:[%s9 + $0x28] sm:$0xf]
        %v1458 = vld [vmem:[%s9 + $0x2c] sm:$0xf]
        %v1459 = vld [vmem:[%s9 + $0x30] sm:$0xf]
        %v1460 = vld [vmem:[%s9 + $0x34] sm:$0xf]
        %v1461 = vld [vmem:[%s9 + $0x38] sm:$0xf]
        %v1462 = vld [vmem:[%s9 + $0x3c] sm:$0xf]
        %v1463 = vld [vmem:[#allocation2] sm:$0x1]
        %v1465 = vlaneseq
        %v1466 = vshrl.u32 %v1465, 7
        %v1467 = vsub.s32 0, %v1466
        %v1468 = vrot.slane %v1463, %v1467
        %v1486 = vunpack.c.l.b16 %v1447
        %v1487 = vunpack.c.l.b16 %v1448
        %v1488 = vunpack.c.l.b16 %v1449
        %v1489 = vunpack.c.l.b16 %v1450
        %v1490 = vunpack.c.l.b16 %v1451
        %v1491 = vunpack.c.l.b16 %v1452
        %v1492 = vunpack.c.l.b16 %v1453
        %v1493 = vunpack.c.l.b16 %v1454
        %v1494 = vunpack.c.l.b16 %v1455
        %v1495 = vunpack.c.l.b16 %v1456
        %v1496 = vunpack.c.l.b16 %v1457
        %v1497 = vunpack.c.l.b16 %v1458
        %v1498 = vunpack.c.l.b16 %v1459
        %v1499 = vunpack.c.l.b16 %v1460
        %v1500 = vunpack.c.l.b16 %v1461
        %v1501 = vunpack.c.l.b16 %v1462
        %v1502 = vpack.c.b16 %v1487, %v1486
        %v1503 = vpack.c.b16 %v1489, %v1488
        %v1504 = vpack.c.b16 %v1491, %v1490
        %v1505 = vpack.c.b16 %v1493, %v1492
        %v1506 = vpack.c.b16 %v1495, %v1494
        %v1507 = vpack.c.b16 %v1497, %v1496
        %v1508 = vpack.c.b16 %v1499, %v1498
        %v1509 = vpack.c.b16 %v1501, %v1500
        %1518 = vmatprep.subr.bf16.mxu0 0
        %1519 = vmatpush1.bf16.msra.mxu0 %v1509
        %1520 = vmatprep.subr.bf16.mxu0 0
        %1521 = vmatpush1.bf16.msra.mxu0 %v1508
        %1522 = vmatprep.subr.bf16.mxu0 0
        %1523 = vmatpush1.bf16.msra.mxu0 %v1507
        %1524 = vmatprep.subr.bf16.mxu0 0
        %1525 = vmatpush1.bf16.msra.mxu0 %v1506
        %1526 = vmatprep.subr.bf16.mxu0 0
        %1527 = vmatpush1.bf16.msra.mxu0 %v1505
        %1528 = vmatprep.subr.bf16.mxu0 0
        %1529 = vmatpush1.bf16.msra.mxu0 %v1504
        %1530 = vmatprep.subr.bf16.mxu0 0
        %1531 = vmatpush1.bf16.msra.mxu0 %v1503
        %1532 = vmatprep.subr.bf16.mxu0 0
        %1533 = vmatpush1.bf16.msra.mxu0 %v1502
        %1534 = vmatprep.subr.bf16.mxu0 0
        %1535 = vmatpush2.bf16.msra.mxu0 0
        %1536 = vmatprep.subr.bf16.mxu0 0
        %1537 = vmatpush2.bf16.msra.mxu0 0
        %1538 = vmatprep.subr.bf16.mxu0 0
        %1539 = vmatpush2.bf16.msra.mxu0 0
        %1540 = vmatprep.subr.bf16.mxu0 0
        %1541 = vmatpush2.bf16.msra.mxu0 0
        %1542 = vmatprep.subr.bf16.mxu0 0
        %1543 = vmatpush2.bf16.msra.mxu0 0
        %1544 = vmatprep.subr.bf16.mxu0 0
        %1545 = vmatpush2.bf16.msra.mxu0 0
        %1546 = vmatprep.subr.bf16.mxu0 0
        %1547 = vmatpush2.bf16.msra.mxu0 0
        %1548 = vmatprep.subr.bf16.mxu0 0
        %1549 = vmatpush2.bf16.msra.mxu0 0
        %1550 = vmatprep.mubr.bf16.mxu0 0
        %1551 = vmatmul.mubr.bf16.gmra.mxu0 %v1446
        %v1552 = vpop.f32.mrf.mxu0
        %v1553 = vadd.f32 %v1468, %v1552
        %v1554 = vpop.f32.mrf.mxu0
        %v1555 = vpop.f32.mrf.mxu0
        %v1556 = vadd.f32 %v1468, %v1555
        %v1557 = vpop.f32.mrf.mxu0
        %1558 = vdwg.mxu0
        %v1559 = vxor.u32 %v1553, 2147483648
        %v1560 = vxor.u32 %v1556, 2147483648
        %v1561 = vmul.f32 %v1559, 1.442695
        %v1562 = vpow.pop %v1561
        %v1563 = vmul.f32 %v1560, 1.442695
        %v1564 = vpow.pop %v1563
        %v1565 = vadd.f32 %v1562, 1.0
        %v1566 = vadd.f32 %v1564, 1.0
        %v1567 = vrcp.pop %v1565
        %v1568 = vmul.f32 1.0, %v1567
        %v1569 = vrcp.pop %v1566
        %v1570 = vmul.f32 1.0, %v1569
        %v1571 = vlaneseq
        %v1572 = vshrl.u32 %v1571, 7
        %v1573 = vadd.s32 %v1572, 8
        %s1574 = smul.u32 %s33, 16
        %v1575 = vstv %s1574
        %v1576 = vadd.s32 %v1572, %v1575
        %v1577 = vadd.s32 %v1573, %v1575
        %vm1578 = vcmp.lt.s32.totalorder %v1576, 36
        %vm1579 = vcmp.lt.s32.totalorder %v1577, 36
        %v1580 = vsel %vm1578, %v1568, 0.0
        %v1581 = vsel %vm1579, %v1570, 0.0
        %vm1582 = vcmask 7168
        %1583 = vst.msk [vmem:[%s463] sm:$0xff] %vm1582, %v1580
        %1584 = vst.msk [vmem:[%s463 + $0x8] sm:$0xff] %vm1582, %v1581
        %s1585 = sand.u32 %s277, 1
        %s1586 = scalar_lea.sflag [#allocation5], %s1585
        %s1587 = sand.u32 %s277, 1
        %s1588 = smul.addr %s1587, 16
        %s1589 = scalar_lea.vmem [#allocation8], %s1588
        %s1590 = smul.u32 2, %s33
        %p1591 = scmp.lt.s32.totalorder %s1590, 5
        %s1592 = scalar_select %p1591, %s1590, 5
        %s1593 = smul.addr %s1592, 8
        %s1594 = scalar_lea.vmem %s12, %s1593
        // Predicated region
        $region73: #{tpu_custom_call.1} parent=63 // pred_check
          %p1595 = pneg %p287
        $region74: #{tpu_custom_call.1} parent=63 // pred_check_branch
          %1597 = sbr.rel (%p1595) target = $region76
        $region75: #{tpu_custom_call.1} parent=63 // pred_region
          %s1598 = smul.u32 2, %s33
          %s1600 = ssub.s32 256, 256
          %1601 = vsyncadd %s1586, %s1600
          %s1602 = smul.addr %s1598, 128
          %s1603 = scalar_lea.hbm %s11, %s1602
          %s1604 = sshll.u32 %s1589, 4
          %s1605 = int_to_ptr.vmem [resolvable:$true] %s1604
          %1610 = dma.vmem_to_hbm [thread:$0]  %s1605, 256, %s1603, %s1586, 128, 128, 8
        $region76: #{tpu_custom_call.1} parent=63 // pred_fallthru
          _
        // Predicated region
        $region77: #{tpu_custom_call.1} parent=63 // pred_check
          %p1611 = pneg %p313
        $region78: #{tpu_custom_call.1} parent=63 // pred_check_branch
          %1613 = sbr.rel (%p1611) target = $region80
        $region79: #{tpu_custom_call.1} parent=63 // pred_region
          %s1614 = smul.u32 2, %s33
        $region80: #{tpu_custom_call.1} parent=63 // pred_fallthru
          _
      $region64: #{tpu_custom_call.1} parent=5 // pred_fallthru
        _
      %p1615 = scmp.le.s32.totalorder 2, %s28
      // Predicated region
      $region81: #{tpu_custom_call.1} parent=5 // pred_check
        %p1616 = pneg %p1615
      $region82: #{tpu_custom_call.1} parent=5 // pred_check_branch
        %1618 = sbr.rel (%p1616) target = $region84
      $region83: #{tpu_custom_call.1} parent=5 // pred_region
        %s1619 = ssub.s32 %s28, 2
        // Predicated region
        $region85: #{tpu_custom_call.1} parent=83 // pred_check
          %p1620 = pneg %p293
        $region86: #{tpu_custom_call.1} parent=83 // pred_check_branch
          %1622 = sbr.rel (%p1620) target = $region88
        $region87: #{tpu_custom_call.1} parent=83 // pred_region
          %s1623 = sand.u32 %s278, 1
          %s1624 = scalar_lea.sflag [#allocation5], %s1623
          %s1625 = sand.u32 %s278, 1
          %s1626 = smul.addr %s1625, 16
          %s1627 = scalar_lea.vmem [#allocation8], %s1626
          %1628 = dma.done %s1624, 256
        $region88: #{tpu_custom_call.1} parent=83 // pred_fallthru
          _
        // Predicated region
        $region89: #{tpu_custom_call.1} parent=83 // pred_check
          %p1629 = pneg %p319
        $region90: #{tpu_custom_call.1} parent=83 // pred_check_branch
          %1631 = sbr.rel (%p1629) target = $region92
        $region91: #{tpu_custom_call.1} parent=83 // pred_region
          %s1632 = smul.u32 2, %s34
          %p1633 = scmp.lt.s32.totalorder %s1632, 5
          %s1634 = scalar_select %p1633, %s1632, 5
          %s1635 = smul.addr %s1634, 8
          %s1636 = scalar_lea.vmem %s12, %s1635
        $region92: #{tpu_custom_call.1} parent=83 // pred_fallthru
          _
      $region84: #{tpu_custom_call.1} parent=5 // pred_fallthru
        _
    $region6: #{tpu_custom_call.1} parent=1 // loop_footer
      %s32 = sadd.s32 1, %s28
    $region7: #{tpu_custom_call.1} parent=1 // loop_footer_branch
      %27 = sbr.rel target = $region3
    $region8: #{tpu_custom_call.1} parent=1 // loop_exit
      _
    %1637 = vsyncpa [#allocation4], 1
    %s1638 = scalar_lea.sflag [#allocation4], 1
    %1639 = vsyncpa %s1638, 1
    %1640 = vsyncpa [#allocation7], 1
    %1641 = vsyncpa [#allocation5], 1
    %s1642 = scalar_lea.sflag [#allocation5], 1
    %1643 = vsyncpa %s1642, 1

</llo_original>
